<compile_context>
chip_gen: v7x
topology: tpu7x:2x2x1
jax: 0.10.0
libtpu: 0.0.40
codegen_flags: <defaults>
</compile_context>

<pallas_src>
import functools

import jax
import jax.numpy as jnp
from jax import lax
from jax.experimental import pallas as pl
from jax.experimental.pallas import tpu as pltpu


# --------------------------- Pallas kernels ---------------------------------

def _fused_conv_kernel(x2_ref, w2_ref, wsub_ref, h_ref, stats_ref, ypad_ref,
                       *, B, Ho, Wo, cin, ni, nf):
    """B images per grid step:
       LeakyReLU(0.2) -> Conv2d(k4,s2,p1) -> ReLU -> ConvT(k4,s2,p1) + BN stats.

       x2_ref:   (B, Ho+1, Wo+1, 4*cin) f32  space-to-depth view of padded x
       w2_ref:   (4, 4*cin, ni)         bf16 down-conv taps, one per (dh, dw)
       wsub_ref: (4, 4, ni, nf)         bf16 ConvT taps, [parity, tap]
       h_ref:    (B, Ho*Wo, 4*nf)       bf16 pre-BN ConvT output, parity-packed
       stats_ref:(1, 2, nf)             f32  [sum; sumsq] per BN channel
       ypad_ref: VMEM scratch (B, Ho+2, Wo+2, ni) f32 (zero-haloed y)
    """
    M = B * Ho * Wo

    # ---- LeakyReLU(0.2) on the space-to-depth input (f32, done once) ----
    x2 = x2_ref[...]
    x2 = jnp.where(x2 >= 0, x2, 0.2 * x2)

    # ---- down conv: 4 accumulating per-tap matmuls (no concat) ----
    acc = None
    for dh in (0, 1):
        for dw in (0, 1):
            patch = x2[:, dh:dh + Ho, dw:dw + Wo, :].reshape(M, 4 * cin)
            term = jnp.dot(patch.astype(jnp.bfloat16), w2_ref[2 * dh + dw],
                           preferred_element_type=jnp.float32)
            acc = term if acc is None else acc + term
    y = jnp.maximum(acc, 0.0).reshape(B, Ho, Wo, ni)          # uprelu (f32)

    # ---- refresh only the 1-wide zero halo, then write the interior ----
    zrow = jnp.zeros((B, 1, Wo + 2, ni), jnp.float32)
    zcol = jnp.zeros((B, Ho + 2, 1, ni), jnp.float32)
    ypad_ref[:, 0:1, :, :] = zrow
    ypad_ref[:, Ho + 1:Ho + 2, :, :] = zrow
    ypad_ref[:, :, 0:1, :] = zcol
    ypad_ref[:, :, Wo + 1:Wo + 2, :] = zcol
    ypad_ref[:, 1:Ho + 1, 1:Wo + 1, :] = y

    # ---- up conv: sub-pixel ConvTranspose2d, 4 parities x 4 taps ----
    s_tot = None
    ss_tot = None
    for a in (0, 1):
        for b in (0, 1):
            p = 2 * a + b
            acc_p = None
            for dh in (0, 1):
                for dw in (0, 1):
                    tap = ypad_ref[:, a + dh:a + dh + Ho,
                                   b + dw:b + dw + Wo, :].reshape(M, ni)
                    term = jnp.dot(tap.astype(jnp.bfloat16),
                                   wsub_ref[p, 2 * dh + dw],
                                   preferred_element_type=jnp.float32)
                    acc_p = term if acc_p is None else acc_p + term
            # direct per-parity store into its lane slice (no concat copy)
            h_ref[:, :, p * nf:(p + 1) * nf] = (
                acc_p.reshape(B, Ho * Wo, nf).astype(jnp.bfloat16))
            # BN partial statistics, accumulated from the f32 accumulator
            s_p = jnp.sum(acc_p, axis=0, keepdims=True)            # (1, nf)
            ss_p = jnp.sum(acc_p * acc_p, axis=0, keepdims=True)   # (1, nf)
            s_tot = s_p if s_tot is None else s_tot + s_p
            ss_tot = ss_p if ss_tot is None else ss_tot + ss_p

    stats_ref[0, 0:1, :] = s_tot
    stats_ref[0, 1:2, :] = ss_tot


def _bn_kernel(h_ref, scale_ref, shift_ref, o_ref):
    """Second BN pass: upcast bf16 h, apply precomputed per-channel affine."""
    h = h_ref[...].astype(jnp.float32)
    o_ref[...] = h * scale_ref[...] + shift_ref[...]


# --------------------------- pallas_call wrappers ----------------------------

def _pick_vmem_limit():
    cap = 128 * 1024 * 1024
    try:
        cap = int(pltpu.get_tpu_info().vmem_capacity_bytes)
    except Exception:
        pass
    # ~96 MiB on 128-MiB chips (v5e/v6e), ~48 MiB on v7x (64 MiB VMEM).
    return min(96 * 1024 * 1024, (cap * 3) // 4)


def _pick_batch_block(N, Ho, Wo, cin, ni, nf, vmem_limit):
    """Largest divisor of N that fits the budget; prefer M = B*Ho*Wo >= 256."""
    budget = int(vmem_limit * 0.75)
    x2_b = (Ho + 1) * (Wo + 1) * 4 * cin * 4      # f32 input block / image
    h_b = Ho * Wo * 4 * nf * 2                    # bf16 output block / image
    ypad_b = (Ho + 2) * (Wo + 2) * ni * 4         # f32 scratch / image
    per_img = 2 * (x2_b + h_b) + ypad_b           # in/out double-buffered
    fixed = 2 * 2 * (16 * cin * ni + 16 * ni * nf) + 64 * 1024
    best = 1
    for b in range(1, N + 1):
        if N % b:
            continue
        if fixed + b * per_img > budget:
            break
        best = b
        if b * Ho * Wo >= 256:
            break
    return best


def _fused_conv_call(x2, w2, wsub, N, B, Ho, Wo, cin, ni, nf, vmem_limit):
    Hp, Wp = Ho + 1, Wo + 1
    nblk = N // B
    kernel = functools.partial(_fused_conv_kernel,
                               B=B, Ho=Ho, Wo=Wo, cin=cin, ni=ni, nf=nf)
    return pl.pallas_call(
        kernel,
        out_shape=(jax.ShapeDtypeStruct((N, Ho * Wo, 4 * nf), jnp.bfloat16),
                   jax.ShapeDtypeStruct((nblk, 2, nf), jnp.float32)),
        grid=(nblk,),
        in_specs=[pl.BlockSpec((B, Hp, Wp, 4 * cin), lambda n: (n, 0, 0, 0)),
                  pl.BlockSpec((4, 4 * cin, ni), lambda n: (0, 0, 0)),
                  pl.BlockSpec((4, 4, ni, nf), lambda n: (0, 0, 0, 0))],
        out_specs=(pl.BlockSpec((B, Ho * Wo, 4 * nf), lambda n: (n, 0, 0)),
                   pl.BlockSpec((1, 2, nf), lambda n: (n, 0, 0))),
        scratch_shapes=[pltpu.VMEM((B, Ho + 2, Wo + 2, ni), jnp.float32)],
        compiler_params=pltpu.CompilerParams(
            dimension_semantics=("parallel",),
            vmem_limit_bytes=vmem_limit),
    )(x2, w2, wsub)


def _bn_call(h2d, scale, shift, vmem_limit):
    M, C = h2d.shape
    tm = None
    for cand in (4096, 2048, 1024, 512, 256, 128, 64, 32, 16, 8):
        if M % cand == 0:
            tm = cand
            break
    if tm is None:                       # fallback: single padded / cdiv tiles
        tm = M if M < 8 else min(((M + 7) // 8) * 8, 4096)
    return pl.pallas_call(
        _bn_kernel,
        out_shape=jax.ShapeDtypeStruct((M, C), jnp.float32),
        grid=(pl.cdiv(M, tm),),
        in_specs=[pl.BlockSpec((tm, C), lambda i: (i, 0)),
                  pl.BlockSpec((1, C), lambda i: (0, 0)),
                  pl.BlockSpec((1, C), lambda i: (0, 0))],
        out_specs=pl.BlockSpec((tm, C), lambda i: (i, 0)),
        compiler_params=pltpu.CompilerParams(
            dimension_semantics=("parallel",),
            vmem_limit_bytes=vmem_limit),
    )(h2d, scale, shift)


# --------------------------- weight re-layout (trace-time, tiny) -------------

def _build_down_weights(w_down):
    """w_down (ni, cin, 4, 4) OIHW -> (4, 4*cin, ni): tap (dh,dw) maps
       space-to-depth channel (q, s, c) -> o with kh=2*dh+q, kw=2*dw+s."""
    blocks = []
    for dh in (0, 1):
        for dw in (0, 1):
            taps = [w_down[:, :, 2 * dh + q, 2 * dw + s].T      # (cin, ni)
                    for q in (0, 1) for s in (0, 1)]
            blocks.append(jnp.concatenate(taps, axis=0))        # (4*cin, ni)
    return jnp.stack(blocks, axis=0)


def _build_up_weights(w_up):
    """w_up (ni, nf, 4, 4) IOHW -> (4, 4, ni, nf): sub-pixel decomposition.
       Output (2i+a, 2j+b) is a 2x2 stride-1 conv over zero-padded y with
       tap (dh, dw) using kernel element kh=3-a-2*dh, kw=3-b-2*dw."""
    pars = []
    for a in (0, 1):
        for b in (0, 1):
            taps = [w_up[:, :, 3 - a - 2 * dh, 3 - b - 2 * dw]  # (ni, nf)
                    for dh in (0, 1) for dw in (0, 1)]
            pars.append(jnp.stack(taps, axis=0))                # (4, ni, nf)
    return jnp.stack(pars, axis=0)                              # (4, 4, ni, nf)


# --------------------------- forward (public interface: NCHW) ----------------

def unet_block_innermost_forward(x_nchw, w_down, w_up, gamma, beta):
    """x_nchw: (N, input_c, H, W) f32
       w_down: (ni, input_c, 4, 4)  nn.Conv2d weight (OIHW), bias=False
       w_up:   (ni, nf, 4, 4)       nn.ConvTranspose2d weight (IOHW), bias=False
       gamma, beta: (nf,)           BatchNorm2d affine params (training-mode stats)
       returns (N, input_c + nf, H, W)  == torch.cat([x, model(x)], 1)
    """
    N, cin, H, W = x_nchw.shape
    ni = w_down.shape[0]
    nf = w_up.shape[1]
    assert H % 2 == 0 and W % 2 == 0
    Ho, Wo = H // 2, W // 2
    Hp, Wp = Ho + 1, Wo + 1

    vmem_limit = _pick_vmem_limit()
    B = _pick_batch_block(N, Ho, Wo, cin, ni, nf, vmem_limit)

    # ---- thin layout plumbing (byte-neutral; no im2col / dilation blowup) ----
    x_nhwc = jnp.transpose(x_nchw, (0, 2, 3, 1))
    x_pad = jnp.pad(x_nhwc, ((0, 0), (1, 1), (1, 1), (0, 0)))  # LeakyReLU(0)=0
    x2 = (x_pad.reshape(N, Hp, 2, Wp, 2, cin)
               .transpose(0, 1, 3, 2, 4, 5)
               .reshape(N, Hp, Wp, 4 * cin))                   # space-to-depth

    w2 = _build_down_weights(w_down).astype(jnp.bfloat16)
    wsub = _build_up_weights(w_up).astype(jnp.bfloat16)

    # ---- fused LeakyReLU -> Conv2d -> ReLU -> ConvT (+ BN partial stats) ----
    h, stats = _fused_conv_call(x2, w2, wsub, N, B, Ho, Wo, cin, ni, nf,
                                vmem_limit)

    # ---- BatchNorm2d finalize: training-mode batch stats, biased var, eps=1e-5
    cnt = N * H * W
    tot = jnp.sum(stats, axis=0)                          # (2, nf)
    mean = tot[0] / cnt
    var = jnp.maximum(tot[1] / cnt - mean * mean, 0.0)    # clamp (review)
    inv = lax.rsqrt(var + 1e-5)
    scale = gamma * inv
    shift = beta - mean * scale
    scale_p = jnp.tile(scale, 4).reshape(1, 4 * nf)
    shift_p = jnp.tile(shift, 4).reshape(1, 4 * nf)

    out_p = _bn_call(h.reshape(N * Ho * Wo, 4 * nf), scale_p, shift_p,
                     vmem_limit)

    # ---- depth-to-space (parity unpack) back to NCHW, then skip-concat ----
    out_nhwc = (out_p.reshape(N, Ho, Wo, 2, 2, nf)
                     .transpose(0, 1, 3, 2, 4, 5)
                     .reshape(N, H, W, nf))
    out_nchw = jnp.transpose(out_nhwc, (0, 3, 1, 2))
    return jnp.concatenate([x_nchw, out_nchw], axis=1)


# --------------------------- pure-JAX f32 reference (sanity check) -----------

def _reference(x, w_down, w_up, gamma, beta):
    h = jnp.where(x >= 0, x, 0.2 * x)
    h = lax.conv_general_dilated(h, w_down, (2, 2), [(1, 1), (1, 1)],
                                 dimension_numbers=("NCHW", "OIHW", "NCHW"))
    h = jnp.maximum(h, 0.0)
    w_up_conv = jnp.transpose(jnp.flip(w_up, (2, 3)), (1, 0, 2, 3))
    h = lax.conv_general_dilated(h, w_up_conv, (1, 1), [(2, 2), (2, 2)],
                                 lhs_dilation=(2, 2),
                                 dimension_numbers=("NCHW", "OIHW", "NCHW"))
    mean = h.mean(axis=(0, 2, 3), keepdims=True)
    var = h.var(axis=(0, 2, 3), keepdims=True)
    h = (h - mean) * lax.rsqrt(var + 1e-5) * gamma.reshape(1, -1, 1, 1) \
        + beta.reshape(1, -1, 1, 1)
    return jnp.concatenate([x, h], axis=1)


if __name__ == "__main__":
    key = jax.random.PRNGKey(0)
    kx, kd, ku, kg, kb = jax.random.split(key, 5)

    # UnetBlock(nf=4, ni=8, innermost=True)  => input_c = nf = 4
    N, nf, ni, H, W = 2, 4, 8, 16, 16
    input_c = nf

    x = jax.random.normal(kx, (N, input_c, H, W), jnp.float32)
    w_down = 0.1 * jax.random.normal(kd, (ni, input_c, 4, 4), jnp.float32)
    w_up = 0.1 * jax.random.normal(ku, (ni, nf, 4, 4), jnp.float32)
    gamma = 1.0 + 0.1 * jax.random.normal(kg, (nf,), jnp.float32)
    beta = 0.1 * jax.random.normal(kb, (nf,), jnp.float32)

    out = jax.jit(unet_block_innermost_forward)(x, w_down, w_up, gamma, beta)
    out = jax.block_until_ready(out)
    assert out.shape == (N, input_c + nf, H, W), out.shape

    ref = _reference(x, w_down, w_up, gamma, beta)
    # bf16 MXU inputs / bf16 pre-BN h (f32 accumulation & stats) vs. pure-f32
    # reference => relaxed tolerance.
    assert jnp.allclose(out, ref, atol=5e-2, rtol=5e-2), \
        float(jnp.max(jnp.abs(out - ref)))

    print("KERNEL_OK")
</pallas_src>

<mosaic_0001>
module attributes {stable_mosaic.version = 11 : i64} {
  func.func @_fused_conv_kernel(%arg0: i32, %arg1: memref<2x9x9x16xf32, #tpu.memory_space<vmem>>, %arg2: memref<4x16x8xbf16, #tpu.memory_space<vmem>>, %arg3: memref<4x4x8x4xbf16, #tpu.memory_space<vmem>>, %arg4: memref<2x64x16xbf16, #tpu.memory_space<vmem>>, %arg5: memref<1x2x4xf32, #tpu.memory_space<vmem>>, %arg6: memref<2x10x10x8xf32, #tpu.memory_space<vmem>>) attributes {dimension_semantics = [#tpu.dimension_semantics<parallel>], iteration_bounds = array<i64: 1>, scalar_prefetch = 0 : i64, scratch_operands = 1 : i64, tpu.core_type = #tpu.core_type<tc>, window_params = [{transform_indices = @transform_0, window_bounds = array<i64: 2, 9, 9, 16>}, {pipeline_mode = #tpu.pipeline_mode<synchronous>, transform_indices = @transform_1, window_bounds = array<i64: 4, 16, 8>}, {pipeline_mode = #tpu.pipeline_mode<synchronous>, transform_indices = @transform_2, window_bounds = array<i64: 4, 4, 8, 4>}, {transform_indices = @transform_3, window_bounds = array<i64: 2, 64, 16>}, {transform_indices = @transform_4, window_bounds = array<i64: 1, 2, 4>}]} {
    %c0 = arith.constant 0 : index
    %c0_0 = arith.constant 0 : index
    %c0_1 = arith.constant 0 : index
    %c0_2 = arith.constant 0 : index
    %0 = vector.load %arg1[%c0, %c0_0, %c0_1, %c0_2] : memref<2x9x9x16xf32, #tpu.memory_space<vmem>>, vector<2x9x9x16xf32>
    %cst = arith.constant 0.000000e+00 : f32
    %1 = vector.broadcast %cst : f32 to vector<2x9x9x16xf32>
    %2 = arith.cmpf oge, %0, %1 : vector<2x9x9x16xf32>
    %cst_3 = arith.constant 2.000000e-01 : f32
    %3 = vector.broadcast %cst_3 : f32 to vector<2x9x9x16xf32>
    %4 = arith.mulf %3, %0 : vector<2x9x9x16xf32>
    %5 = arith.select %2, %0, %4 : vector<2x9x9x16xi1>, vector<2x9x9x16xf32>
    %6 = vector.extract_strided_slice %5 {offsets = [0, 0, 0, 0], sizes = [2, 8, 8, 16], strides = [1, 1, 1, 1]} : vector<2x9x9x16xf32> to vector<2x8x8x16xf32>
    %7 = vector.shape_cast %6 : vector<2x8x8x16xf32> to vector<128x16xf32>
    %8 = arith.truncf %7 : vector<128x16xf32> to vector<128x16xbf16>
    %c0_4 = arith.constant 0 : index
    %c0_5 = arith.constant 0 : index
    %c0_6 = arith.constant 0 : index
    %9 = vector.load %arg2[%c0_4, %c0_5, %c0_6] : memref<4x16x8xbf16, #tpu.memory_space<vmem>>, vector<1x16x8xbf16>
    %10 = vector.shape_cast %9 : vector<1x16x8xbf16> to vector<16x8xbf16>
    %cst_7 = arith.constant dense<0.000000e+00> : vector<128x8xf32>
    %11 = tpu.matmul %8, %10, %cst_7 {dimension_numbers = #tpu.dot_dimension_numbers<[1], [0], [0], [1], [0, 0, 1, 1], [], []>} : vector<128x16xbf16>, vector<16x8xbf16>, vector<128x8xf32> -> vector<128x8xf32>
    %12 = vector.extract_strided_slice %5 {offsets = [0, 0, 1, 0], sizes = [2, 8, 8, 16], strides = [1, 1, 1, 1]} : vector<2x9x9x16xf32> to vector<2x8x8x16xf32>
    %13 = vector.shape_cast %12 : vector<2x8x8x16xf32> to vector<128x16xf32>
    %14 = arith.truncf %13 : vector<128x16xf32> to vector<128x16xbf16>
    %c1 = arith.constant 1 : index
    %c0_8 = arith.constant 0 : index
    %c0_9 = arith.constant 0 : index
    %15 = vector.load %arg2[%c1, %c0_8, %c0_9] : memref<4x16x8xbf16, #tpu.memory_space<vmem>>, vector<1x16x8xbf16>
    %16 = vector.shape_cast %15 : vector<1x16x8xbf16> to vector<16x8xbf16>
    %cst_10 = arith.constant dense<0.000000e+00> : vector<128x8xf32>
    %17 = tpu.matmul %14, %16, %cst_10 {dimension_numbers = #tpu.dot_dimension_numbers<[1], [0], [0], [1], [0, 0, 1, 1], [], []>} : vector<128x16xbf16>, vector<16x8xbf16>, vector<128x8xf32> -> vector<128x8xf32>
    %18 = arith.addf %11, %17 : vector<128x8xf32>
    %19 = vector.extract_strided_slice %5 {offsets = [0, 1, 0, 0], sizes = [2, 8, 8, 16], strides = [1, 1, 1, 1]} : vector<2x9x9x16xf32> to vector<2x8x8x16xf32>
    %20 = vector.shape_cast %19 : vector<2x8x8x16xf32> to vector<128x16xf32>
    %21 = arith.truncf %20 : vector<128x16xf32> to vector<128x16xbf16>
    %c2 = arith.constant 2 : index
    %c0_11 = arith.constant 0 : index
    %c0_12 = arith.constant 0 : index
    %22 = vector.load %arg2[%c2, %c0_11, %c0_12] : memref<4x16x8xbf16, #tpu.memory_space<vmem>>, vector<1x16x8xbf16>
    %23 = vector.shape_cast %22 : vector<1x16x8xbf16> to vector<16x8xbf16>
    %cst_13 = arith.constant dense<0.000000e+00> : vector<128x8xf32>
    %24 = tpu.matmul %21, %23, %cst_13 {dimension_numbers = #tpu.dot_dimension_numbers<[1], [0], [0], [1], [0, 0, 1, 1], [], []>} : vector<128x16xbf16>, vector<16x8xbf16>, vector<128x8xf32> -> vector<128x8xf32>
    %25 = arith.addf %18, %24 : vector<128x8xf32>
    %26 = vector.extract_strided_slice %5 {offsets = [0, 1, 1, 0], sizes = [2, 8, 8, 16], strides = [1, 1, 1, 1]} : vector<2x9x9x16xf32> to vector<2x8x8x16xf32>
    %27 = vector.shape_cast %26 : vector<2x8x8x16xf32> to vector<128x16xf32>
    %28 = arith.truncf %27 : vector<128x16xf32> to vector<128x16xbf16>
    %c3 = arith.constant 3 : index
    %c0_14 = arith.constant 0 : index
    %c0_15 = arith.constant 0 : index
    %29 = vector.load %arg2[%c3, %c0_14, %c0_15] : memref<4x16x8xbf16, #tpu.memory_space<vmem>>, vector<1x16x8xbf16>
    %30 = vector.shape_cast %29 : vector<1x16x8xbf16> to vector<16x8xbf16>
    %cst_16 = arith.constant dense<0.000000e+00> : vector<128x8xf32>
    %31 = tpu.matmul %28, %30, %cst_16 {dimension_numbers = #tpu.dot_dimension_numbers<[1], [0], [0], [1], [0, 0, 1, 1], [], []>} : vector<128x16xbf16>, vector<16x8xbf16>, vector<128x8xf32> -> vector<128x8xf32>
    %32 = arith.addf %25, %31 : vector<128x8xf32>
    %cst_17 = arith.constant 0.000000e+00 : f32
    %33 = vector.broadcast %cst_17 : f32 to vector<128x8xf32>
    %34 = arith.maximumf %32, %33 : vector<128x8xf32>
    %35 = vector.shape_cast %34 : vector<128x8xf32> to vector<2x8x8x8xf32>
    %cst_18 = arith.constant 0.000000e+00 : f32
    %36 = vector.broadcast %cst_18 : f32 to vector<2x1x10x8xf32>
    %cst_19 = arith.constant 0.000000e+00 : f32
    %37 = vector.broadcast %cst_19 : f32 to vector<2x10x1x8xf32>
    %c0_20 = arith.constant 0 : index
    %c0_21 = arith.constant 0 : index
    %c0_22 = arith.constant 0 : index
    %c0_23 = arith.constant 0 : index
    %38 = vector.load %arg6[%c0_20, %c0_21, %c0_22, %c0_23] : memref<2x10x10x8xf32, #tpu.memory_space<vmem>>, vector<2x1x10x8xf32>
    tpu.vector_store %arg6[%c0_20, %c0_21, %c0_22, %c0_23], %36 {strides = array<i32>} : memref<2x10x10x8xf32, #tpu.memory_space<vmem>>, vector<2x1x10x8xf32>,
    %c0_24 = arith.constant 0 : index
    %c9 = arith.constant 9 : index
    %c0_25 = arith.constant 0 : index
    %c0_26 = arith.constant 0 : index
    %39 = vector.load %arg6[%c0_24, %c9, %c0_25, %c0_26] : memref<2x10x10x8xf32, #tpu.memory_space<vmem>>, vector<2x1x10x8xf32>
    tpu.vector_store %arg6[%c0_24, %c9, %c0_25, %c0_26], %36 {strides = array<i32>} : memref<2x10x10x8xf32, #tpu.memory_space<vmem>>, vector<2x1x10x8xf32>,
    %c0_27 = arith.constant 0 : index
    %c0_28 = arith.constant 0 : index
    %c0_29 = arith.constant 0 : index
    %c0_30 = arith.constant 0 : index
    %40 = vector.load %arg6[%c0_27, %c0_28, %c0_29, %c0_30] : memref<2x10x10x8xf32, #tpu.memory_space<vmem>>, vector<2x10x1x8xf32>
    tpu.vector_store %arg6[%c0_27, %c0_28, %c0_29, %c0_30], %37 {strides = array<i32>} : memref<2x10x10x8xf32, #tpu.memory_space<vmem>>, vector<2x10x1x8xf32>,
    %c0_31 = arith.constant 0 : index
    %c0_32 = arith.constant 0 : index
    %c9_33 = arith.constant 9 : index
    %c0_34 = arith.constant 0 : index
    %41 = vector.load %arg6[%c0_31, %c0_32, %c9_33, %c0_34] : memref<2x10x10x8xf32, #tpu.memory_space<vmem>>, vector<2x10x1x8xf32>
    tpu.vector_store %arg6[%c0_31, %c0_32, %c9_33, %c0_34], %37 {strides = array<i32>} : memref<2x10x10x8xf32, #tpu.memory_space<vmem>>, vector<2x10x1x8xf32>,
    %c0_35 = arith.constant 0 : index
    %c1_36 = arith.constant 1 : index
    %c1_37 = arith.constant 1 : index
    %c0_38 = arith.constant 0 : index
    %42 = vector.load %arg6[%c0_35, %c1_36, %c1_37, %c0_38] : memref<2x10x10x8xf32, #tpu.memory_space<vmem>>, vector<2x8x8x8xf32>
    tpu.vector_store %arg6[%c0_35, %c1_36, %c1_37, %c0_38], %35 {strides = array<i32>} : memref<2x10x10x8xf32, #tpu.memory_space<vmem>>, vector<2x8x8x8xf32>,
    %c0_39 = arith.constant 0 : index
    %c0_40 = arith.constant 0 : index
    %c0_41 = arith.constant 0 : index
    %c0_42 = arith.constant 0 : index
    %43 = vector.load %arg6[%c0_39, %c0_40, %c0_41, %c0_42] : memref<2x10x10x8xf32, #tpu.memory_space<vmem>>, vector<2x8x8x8xf32>
    %44 = vector.shape_cast %43 : vector<2x8x8x8xf32> to vector<128x8xf32>
    %45 = arith.truncf %44 : vector<128x8xf32> to vector<128x8xbf16>
    %c0_43 = arith.constant 0 : index
    %c0_44 = arith.constant 0 : index
    %c0_45 = arith.constant 0 : index
    %c0_46 = arith.constant 0 : index
    %46 = vector.load %arg3[%c0_43, %c0_44, %c0_45, %c0_46] : memref<4x4x8x4xbf16, #tpu.memory_space<vmem>>, vector<1x1x8x4xbf16>
    %47 = vector.shape_cast %46 : vector<1x1x8x4xbf16> to vector<8x4xbf16>
    %cst_47 = arith.constant dense<0.000000e+00> : vector<128x4xf32>
    %48 = tpu.matmul %45, %47, %cst_47 {dimension_numbers = #tpu.dot_dimension_numbers<[1], [0], [0], [1], [0, 0, 1, 1], [], []>} : vector<128x8xbf16>, vector<8x4xbf16>, vector<128x4xf32> -> vector<128x4xf32>
    %c0_48 = arith.constant 0 : index
    %c0_49 = arith.constant 0 : index
    %c1_50 = arith.constant 1 : index
    %c0_51 = arith.constant 0 : index
    %49 = vector.load %arg6[%c0_48, %c0_49, %c1_50, %c0_51] : memref<2x10x10x8xf32, #tpu.memory_space<vmem>>, vector<2x8x8x8xf32>
    %50 = vector.shape_cast %49 : vector<2x8x8x8xf32> to vector<128x8xf32>
    %51 = arith.truncf %50 : vector<128x8xf32> to vector<128x8xbf16>
    %c0_52 = arith.constant 0 : index
    %c1_53 = arith.constant 1 : index
    %c0_54 = arith.constant 0 : index
    %c0_55 = arith.constant 0 : index
    %52 = vector.load %arg3[%c0_52, %c1_53, %c0_54, %c0_55] : memref<4x4x8x4xbf16, #tpu.memory_space<vmem>>, vector<1x1x8x4xbf16>
    %53 = vector.shape_cast %52 : vector<1x1x8x4xbf16> to vector<8x4xbf16>
    %cst_56 = arith.constant dense<0.000000e+00> : vector<128x4xf32>
    %54 = tpu.matmul %51, %53, %cst_56 {dimension_numbers = #tpu.dot_dimension_numbers<[1], [0], [0], [1], [0, 0, 1, 1], [], []>} : vector<128x8xbf16>, vector<8x4xbf16>, vector<128x4xf32> -> vector<128x4xf32>
    %55 = arith.addf %48, %54 : vector<128x4xf32>
    %c0_57 = arith.constant 0 : index
    %c1_58 = arith.constant 1 : index
    %c0_59 = arith.constant 0 : index
    %c0_60 = arith.constant 0 : index
    %56 = vector.load %arg6[%c0_57, %c1_58, %c0_59, %c0_60] : memref<2x10x10x8xf32, #tpu.memory_space<vmem>>, vector<2x8x8x8xf32>
    %57 = vector.shape_cast %56 : vector<2x8x8x8xf32> to vector<128x8xf32>
    %58 = arith.truncf %57 : vector<128x8xf32> to vector<128x8xbf16>
    %c0_61 = arith.constant 0 : index
    %c2_62 = arith.constant 2 : index
    %c0_63 = arith.constant 0 : index
    %c0_64 = arith.constant 0 : index
    %59 = vector.load %arg3[%c0_61, %c2_62, %c0_63, %c0_64] : memref<4x4x8x4xbf16, #tpu.memory_space<vmem>>, vector<1x1x8x4xbf16>
    %60 = vector.shape_cast %59 : vector<1x1x8x4xbf16> to vector<8x4xbf16>
    %cst_65 = arith.constant dense<0.000000e+00> : vector<128x4xf32>
    %61 = tpu.matmul %58, %60, %cst_65 {dimension_numbers = #tpu.dot_dimension_numbers<[1], [0], [0], [1], [0, 0, 1, 1], [], []>} : vector<128x8xbf16>, vector<8x4xbf16>, vector<128x4xf32> -> vector<128x4xf32>
    %62 = arith.addf %55, %61 : vector<128x4xf32>
    %c0_66 = arith.constant 0 : index
    %c1_67 = arith.constant 1 : index
    %c1_68 = arith.constant 1 : index
    %c0_69 = arith.constant 0 : index
    %63 = vector.load %arg6[%c0_66, %c1_67, %c1_68, %c0_69] : memref<2x10x10x8xf32, #tpu.memory_space<vmem>>, vector<2x8x8x8xf32>
    %64 = vector.shape_cast %63 : vector<2x8x8x8xf32> to vector<128x8xf32>
    %65 = arith.truncf %64 : vector<128x8xf32> to vector<128x8xbf16>
    %c0_70 = arith.constant 0 : index
    %c3_71 = arith.constant 3 : index
    %c0_72 = arith.constant 0 : index
    %c0_73 = arith.constant 0 : index
    %66 = vector.load %arg3[%c0_70, %c3_71, %c0_72, %c0_73] : memref<4x4x8x4xbf16, #tpu.memory_space<vmem>>, vector<1x1x8x4xbf16>
    %67 = vector.shape_cast %66 : vector<1x1x8x4xbf16> to vector<8x4xbf16>
    %cst_74 = arith.constant dense<0.000000e+00> : vector<128x4xf32>
    %68 = tpu.matmul %65, %67, %cst_74 {dimension_numbers = #tpu.dot_dimension_numbers<[1], [0], [0], [1], [0, 0, 1, 1], [], []>} : vector<128x8xbf16>, vector<8x4xbf16>, vector<128x4xf32> -> vector<128x4xf32>
    %69 = arith.addf %62, %68 : vector<128x4xf32>
    %70 = vector.shape_cast %69 : vector<128x4xf32> to vector<2x64x4xf32>
    %71 = arith.truncf %70 : vector<2x64x4xf32> to vector<2x64x4xbf16>
    %c0_75 = arith.constant 0 : index
    %c0_76 = arith.constant 0 : index
    %c0_77 = arith.constant 0 : index
    %72 = vector.load %arg4[%c0_75, %c0_76, %c0_77] : memref<2x64x16xbf16, #tpu.memory_space<vmem>>, vector<2x64x4xbf16>
    tpu.vector_store %arg4[%c0_75, %c0_76, %c0_77], %71 {strides = array<i32>} : memref<2x64x16xbf16, #tpu.memory_space<vmem>>, vector<2x64x4xbf16>,
    %cst_78 = arith.constant dense<0.000000e+00> : vector<4xf32>
    %73 = vector.multi_reduction <add>, %69, %cst_78 [0] : vector<128x4xf32> to vector<4xf32>
    %74 = vector.shape_cast %73 : vector<4xf32> to vector<1x4xf32>
    %75 = arith.mulf %69, %69 : vector<128x4xf32>
    %cst_79 = arith.constant dense<0.000000e+00> : vector<4xf32>
    %76 = vector.multi_reduction <add>, %75, %cst_79 [0] : vector<128x4xf32> to vector<4xf32>
    %77 = vector.shape_cast %76 : vector<4xf32> to vector<1x4xf32>
    %c0_80 = arith.constant 0 : index
    %c0_81 = arith.constant 0 : index
    %c1_82 = arith.constant 1 : index
    %c0_83 = arith.constant 0 : index
    %78 = vector.load %arg6[%c0_80, %c0_81, %c1_82, %c0_83] : memref<2x10x10x8xf32, #tpu.memory_space<vmem>>, vector<2x8x8x8xf32>
    %79 = vector.shape_cast %78 : vector<2x8x8x8xf32> to vector<128x8xf32>
    %80 = arith.truncf %79 : vector<128x8xf32> to vector<128x8xbf16>
    %c1_84 = arith.constant 1 : index
    %c0_85 = arith.constant 0 : index
    %c0_86 = arith.constant 0 : index
    %c0_87 = arith.constant 0 : index
    %81 = vector.load %arg3[%c1_84, %c0_85, %c0_86, %c0_87] : memref<4x4x8x4xbf16, #tpu.memory_space<vmem>>, vector<1x1x8x4xbf16>
    %82 = vector.shape_cast %81 : vector<1x1x8x4xbf16> to vector<8x4xbf16>
    %cst_88 = arith.constant dense<0.000000e+00> : vector<128x4xf32>
    %83 = tpu.matmul %80, %82, %cst_88 {dimension_numbers = #tpu.dot_dimension_numbers<[1], [0], [0], [1], [0, 0, 1, 1], [], []>} : vector<128x8xbf16>, vector<8x4xbf16>, vector<128x4xf32> -> vector<128x4xf32>
    %c0_89 = arith.constant 0 : index
    %c0_90 = arith.constant 0 : index
    %c2_91 = arith.constant 2 : index
    %c0_92 = arith.constant 0 : index
    %84 = vector.load %arg6[%c0_89, %c0_90, %c2_91, %c0_92] : memref<2x10x10x8xf32, #tpu.memory_space<vmem>>, vector<2x8x8x8xf32>
    %85 = vector.shape_cast %84 : vector<2x8x8x8xf32> to vector<128x8xf32>
    %86 = arith.truncf %85 : vector<128x8xf32> to vector<128x8xbf16>
    %c1_93 = arith.constant 1 : index
    %c1_94 = arith.constant 1 : index
    %c0_95 = arith.constant 0 : index
    %c0_96 = arith.constant 0 : index
    %87 = vector.load %arg3[%c1_93, %c1_94, %c0_95, %c0_96] : memref<4x4x8x4xbf16, #tpu.memory_space<vmem>>, vector<1x1x8x4xbf16>
    %88 = vector.shape_cast %87 : vector<1x1x8x4xbf16> to vector<8x4xbf16>
    %cst_97 = arith.constant dense<0.000000e+00> : vector<128x4xf32>
    %89 = tpu.matmul %86, %88, %cst_97 {dimension_numbers = #tpu.dot_dimension_numbers<[1], [0], [0], [1], [0, 0, 1, 1], [], []>} : vector<128x8xbf16>, vector<8x4xbf16>, vector<128x4xf32> -> vector<128x4xf32>
    %90 = arith.addf %83, %89 : vector<128x4xf32>
    %c0_98 = arith.constant 0 : index
    %c1_99 = arith.constant 1 : index
    %c1_100 = arith.constant 1 : index
    %c0_101 = arith.constant 0 : index
    %91 = vector.load %arg6[%c0_98, %c1_99, %c1_100, %c0_101] : memref<2x10x10x8xf32, #tpu.memory_space<vmem>>, vector<2x8x8x8xf32>
    %92 = vector.shape_cast %91 : vector<2x8x8x8xf32> to vector<128x8xf32>
    %93 = arith.truncf %92 : vector<128x8xf32> to vector<128x8xbf16>
    %c1_102 = arith.constant 1 : index
    %c2_103 = arith.constant 2 : index
    %c0_104 = arith.constant 0 : index
    %c0_105 = arith.constant 0 : index
    %94 = vector.load %arg3[%c1_102, %c2_103, %c0_104, %c0_105] : memref<4x4x8x4xbf16, #tpu.memory_space<vmem>>, vector<1x1x8x4xbf16>
    %95 = vector.shape_cast %94 : vector<1x1x8x4xbf16> to vector<8x4xbf16>
    %cst_106 = arith.constant dense<0.000000e+00> : vector<128x4xf32>
    %96 = tpu.matmul %93, %95, %cst_106 {dimension_numbers = #tpu.dot_dimension_numbers<[1], [0], [0], [1], [0, 0, 1, 1], [], []>} : vector<128x8xbf16>, vector<8x4xbf16>, vector<128x4xf32> -> vector<128x4xf32>
    %97 = arith.addf %90, %96 : vector<128x4xf32>
    %c0_107 = arith.constant 0 : index
    %c1_108 = arith.constant 1 : index
    %c2_109 = arith.constant 2 : index
    %c0_110 = arith.constant 0 : index
    %98 = vector.load %arg6[%c0_107, %c1_108, %c2_109, %c0_110] : memref<2x10x10x8xf32, #tpu.memory_space<vmem>>, vector<2x8x8x8xf32>
    %99 = vector.shape_cast %98 : vector<2x8x8x8xf32> to vector<128x8xf32>
    %100 = arith.truncf %99 : vector<128x8xf32> to vector<128x8xbf16>
    %c1_111 = arith.constant 1 : index
    %c3_112 = arith.constant 3 : index
    %c0_113 = arith.constant 0 : index
    %c0_114 = arith.constant 0 : index
    %101 = vector.load %arg3[%c1_111, %c3_112, %c0_113, %c0_114] : memref<4x4x8x4xbf16, #tpu.memory_space<vmem>>, vector<1x1x8x4xbf16>
    %102 = vector.shape_cast %101 : vector<1x1x8x4xbf16> to vector<8x4xbf16>
    %cst_115 = arith.constant dense<0.000000e+00> : vector<128x4xf32>
    %103 = tpu.matmul %100, %102, %cst_115 {dimension_numbers = #tpu.dot_dimension_numbers<[1], [0], [0], [1], [0, 0, 1, 1], [], []>} : vector<128x8xbf16>, vector<8x4xbf16>, vector<128x4xf32> -> vector<128x4xf32>
    %104 = arith.addf %97, %103 : vector<128x4xf32>
    %105 = vector.shape_cast %104 : vector<128x4xf32> to vector<2x64x4xf32>
    %106 = arith.truncf %105 : vector<2x64x4xf32> to vector<2x64x4xbf16>
    %c0_116 = arith.constant 0 : index
    %c0_117 = arith.constant 0 : index
    %c4 = arith.constant 4 : index
    %107 = vector.load %arg4[%c0_116, %c0_117, %c4] : memref<2x64x16xbf16, #tpu.memory_space<vmem>>, vector<2x64x4xbf16>
    tpu.vector_store %arg4[%c0_116, %c0_117, %c4], %106 {strides = array<i32>} : memref<2x64x16xbf16, #tpu.memory_space<vmem>>, vector<2x64x4xbf16>,
    %cst_118 = arith.constant dense<0.000000e+00> : vector<4xf32>
    %108 = vector.multi_reduction <add>, %104, %cst_118 [0] : vector<128x4xf32> to vector<4xf32>
    %109 = vector.shape_cast %108 : vector<4xf32> to vector<1x4xf32>
    %110 = arith.mulf %104, %104 : vector<128x4xf32>
    %cst_119 = arith.constant dense<0.000000e+00> : vector<4xf32>
    %111 = vector.multi_reduction <add>, %110, %cst_119 [0] : vector<128x4xf32> to vector<4xf32>
    %112 = vector.shape_cast %111 : vector<4xf32> to vector<1x4xf32>
    %113 = arith.addf %74, %109 : vector<1x4xf32>
    %114 = arith.addf %77, %112 : vector<1x4xf32>
    %c0_120 = arith.constant 0 : index
    %c1_121 = arith.constant 1 : index
    %c0_122 = arith.constant 0 : index
    %c0_123 = arith.constant 0 : index
    %115 = vector.load %arg6[%c0_120, %c1_121, %c0_122, %c0_123] : memref<2x10x10x8xf32, #tpu.memory_space<vmem>>, vector<2x8x8x8xf32>
    %116 = vector.shape_cast %115 : vector<2x8x8x8xf32> to vector<128x8xf32>
    %117 = arith.truncf %116 : vector<128x8xf32> to vector<128x8xbf16>
    %c2_124 = arith.constant 2 : index
    %c0_125 = arith.constant 0 : index
    %c0_126 = arith.constant 0 : index
    %c0_127 = arith.constant 0 : index
    %118 = vector.load %arg3[%c2_124, %c0_125, %c0_126, %c0_127] : memref<4x4x8x4xbf16, #tpu.memory_space<vmem>>, vector<1x1x8x4xbf16>
    %119 = vector.shape_cast %118 : vector<1x1x8x4xbf16> to vector<8x4xbf16>
    %cst_128 = arith.constant dense<0.000000e+00> : vector<128x4xf32>
    %120 = tpu.matmul %117, %119, %cst_128 {dimension_numbers = #tpu.dot_dimension_numbers<[1], [0], [0], [1], [0, 0, 1, 1], [], []>} : vector<128x8xbf16>, vector<8x4xbf16>, vector<128x4xf32> -> vector<128x4xf32>
    %c0_129 = arith.constant 0 : index
    %c1_130 = arith.constant 1 : index
    %c1_131 = arith.constant 1 : index
    %c0_132 = arith.constant 0 : index
    %121 = vector.load %arg6[%c0_129, %c1_130, %c1_131, %c0_132] : memref<2x10x10x8xf32, #tpu.memory_space<vmem>>, vector<2x8x8x8xf32>
    %122 = vector.shape_cast %121 : vector<2x8x8x8xf32> to vector<128x8xf32>
    %123 = arith.truncf %122 : vector<128x8xf32> to vector<128x8xbf16>
    %c2_133 = arith.constant 2 : index
    %c1_134 = arith.constant 1 : index
    %c0_135 = arith.constant 0 : index
    %c0_136 = arith.constant 0 : index
    %124 = vector.load %arg3[%c2_133, %c1_134, %c0_135, %c0_136] : memref<4x4x8x4xbf16, #tpu.memory_space<vmem>>, vector<1x1x8x4xbf16>
    %125 = vector.shape_cast %124 : vector<1x1x8x4xbf16> to vector<8x4xbf16>
    %cst_137 = arith.constant dense<0.000000e+00> : vector<128x4xf32>
    %126 = tpu.matmul %123, %125, %cst_137 {dimension_numbers = #tpu.dot_dimension_numbers<[1], [0], [0], [1], [0, 0, 1, 1], [], []>} : vector<128x8xbf16>, vector<8x4xbf16>, vector<128x4xf32> -> vector<128x4xf32>
    %127 = arith.addf %120, %126 : vector<128x4xf32>
    %c0_138 = arith.constant 0 : index
    %c2_139 = arith.constant 2 : index
    %c0_140 = arith.constant 0 : index
    %c0_141 = arith.constant 0 : index
    %128 = vector.load %arg6[%c0_138, %c2_139, %c0_140, %c0_141] : memref<2x10x10x8xf32, #tpu.memory_space<vmem>>, vector<2x8x8x8xf32>
    %129 = vector.shape_cast %128 : vector<2x8x8x8xf32> to vector<128x8xf32>
    %130 = arith.truncf %129 : vector<128x8xf32> to vector<128x8xbf16>
    %c2_142 = arith.constant 2 : index
    %c2_143 = arith.constant 2 : index
    %c0_144 = arith.constant 0 : index
    %c0_145 = arith.constant 0 : index
    %131 = vector.load %arg3[%c2_142, %c2_143, %c0_144, %c0_145] : memref<4x4x8x4xbf16, #tpu.memory_space<vmem>>, vector<1x1x8x4xbf16>
    %132 = vector.shape_cast %131 : vector<1x1x8x4xbf16> to vector<8x4xbf16>
    %cst_146 = arith.constant dense<0.000000e+00> : vector<128x4xf32>
    %133 = tpu.matmul %130, %132, %cst_146 {dimension_numbers = #tpu.dot_dimension_numbers<[1], [0], [0], [1], [0, 0, 1, 1], [], []>} : vector<128x8xbf16>, vector<8x4xbf16>, vector<128x4xf32> -> vector<128x4xf32>
    %134 = arith.addf %127, %133 : vector<128x4xf32>
    %c0_147 = arith.constant 0 : index
    %c2_148 = arith.constant 2 : index
    %c1_149 = arith.constant 1 : index
    %c0_150 = arith.constant 0 : index
    %135 = vector.load %arg6[%c0_147, %c2_148, %c1_149, %c0_150] : memref<2x10x10x8xf32, #tpu.memory_space<vmem>>, vector<2x8x8x8xf32>
    %136 = vector.shape_cast %135 : vector<2x8x8x8xf32> to vector<128x8xf32>
    %137 = arith.truncf %136 : vector<128x8xf32> to vector<128x8xbf16>
    %c2_151 = arith.constant 2 : index
    %c3_152 = arith.constant 3 : index
    %c0_153 = arith.constant 0 : index
    %c0_154 = arith.constant 0 : index
    %138 = vector.load %arg3[%c2_151, %c3_152, %c0_153, %c0_154] : memref<4x4x8x4xbf16, #tpu.memory_space<vmem>>, vector<1x1x8x4xbf16>
    %139 = vector.shape_cast %138 : vector<1x1x8x4xbf16> to vector<8x4xbf16>
    %cst_155 = arith.constant dense<0.000000e+00> : vector<128x4xf32>
    %140 = tpu.matmul %137, %139, %cst_155 {dimension_numbers = #tpu.dot_dimension_numbers<[1], [0], [0], [1], [0, 0, 1, 1], [], []>} : vector<128x8xbf16>, vector<8x4xbf16>, vector<128x4xf32> -> vector<128x4xf32>
    %141 = arith.addf %134, %140 : vector<128x4xf32>
    %142 = vector.shape_cast %141 : vector<128x4xf32> to vector<2x64x4xf32>
    %143 = arith.truncf %142 : vector<2x64x4xf32> to vector<2x64x4xbf16>
    %c0_156 = arith.constant 0 : index
    %c0_157 = arith.constant 0 : index
    %c8 = arith.constant 8 : index
    %144 = vector.load %arg4[%c0_156, %c0_157, %c8] : memref<2x64x16xbf16, #tpu.memory_space<vmem>>, vector<2x64x4xbf16>
    tpu.vector_store %arg4[%c0_156, %c0_157, %c8], %143 {strides = array<i32>} : memref<2x64x16xbf16, #tpu.memory_space<vmem>>, vector<2x64x4xbf16>,
    %cst_158 = arith.constant dense<0.000000e+00> : vector<4xf32>
    %145 = vector.multi_reduction <add>, %141, %cst_158 [0] : vector<128x4xf32> to vector<4xf32>
    %146 = vector.shape_cast %145 : vector<4xf32> to vector<1x4xf32>
    %147 = arith.mulf %141, %141 : vector<128x4xf32>
    %cst_159 = arith.constant dense<0.000000e+00> : vector<4xf32>
    %148 = vector.multi_reduction <add>, %147, %cst_159 [0] : vector<128x4xf32> to vector<4xf32>
    %149 = vector.shape_cast %148 : vector<4xf32> to vector<1x4xf32>
    %150 = arith.addf %113, %146 : vector<1x4xf32>
    %151 = arith.addf %114, %149 : vector<1x4xf32>
    %c0_160 = arith.constant 0 : index
    %c1_161 = arith.constant 1 : index
    %c1_162 = arith.constant 1 : index
    %c0_163 = arith.constant 0 : index
    %152 = vector.load %arg6[%c0_160, %c1_161, %c1_162, %c0_163] : memref<2x10x10x8xf32, #tpu.memory_space<vmem>>, vector<2x8x8x8xf32>
    %153 = vector.shape_cast %152 : vector<2x8x8x8xf32> to vector<128x8xf32>
    %154 = arith.truncf %153 : vector<128x8xf32> to vector<128x8xbf16>
    %c3_164 = arith.constant 3 : index
    %c0_165 = arith.constant 0 : index
    %c0_166 = arith.constant 0 : index
    %c0_167 = arith.constant 0 : index
    %155 = vector.load %arg3[%c3_164, %c0_165, %c0_166, %c0_167] : memref<4x4x8x4xbf16, #tpu.memory_space<vmem>>, vector<1x1x8x4xbf16>
    %156 = vector.shape_cast %155 : vector<1x1x8x4xbf16> to vector<8x4xbf16>
    %cst_168 = arith.constant dense<0.000000e+00> : vector<128x4xf32>
    %157 = tpu.matmul %154, %156, %cst_168 {dimension_numbers = #tpu.dot_dimension_numbers<[1], [0], [0], [1], [0, 0, 1, 1], [], []>} : vector<128x8xbf16>, vector<8x4xbf16>, vector<128x4xf32> -> vector<128x4xf32>
    %c0_169 = arith.constant 0 : index
    %c1_170 = arith.constant 1 : index
    %c2_171 = arith.constant 2 : index
    %c0_172 = arith.constant 0 : index
    %158 = vector.load %arg6[%c0_169, %c1_170, %c2_171, %c0_172] : memref<2x10x10x8xf32, #tpu.memory_space<vmem>>, vector<2x8x8x8xf32>
    %159 = vector.shape_cast %158 : vector<2x8x8x8xf32> to vector<128x8xf32>
    %160 = arith.truncf %159 : vector<128x8xf32> to vector<128x8xbf16>
    %c3_173 = arith.constant 3 : index
    %c1_174 = arith.constant 1 : index
    %c0_175 = arith.constant 0 : index
    %c0_176 = arith.constant 0 : index
    %161 = vector.load %arg3[%c3_173, %c1_174, %c0_175, %c0_176] : memref<4x4x8x4xbf16, #tpu.memory_space<vmem>>, vector<1x1x8x4xbf16>
    %162 = vector.shape_cast %161 : vector<1x1x8x4xbf16> to vector<8x4xbf16>
    %cst_177 = arith.constant dense<0.000000e+00> : vector<128x4xf32>
    %163 = tpu.matmul %160, %162, %cst_177 {dimension_numbers = #tpu.dot_dimension_numbers<[1], [0], [0], [1], [0, 0, 1, 1], [], []>} : vector<128x8xbf16>, vector<8x4xbf16>, vector<128x4xf32> -> vector<128x4xf32>
    %164 = arith.addf %157, %163 : vector<128x4xf32>
    %c0_178 = arith.constant 0 : index
    %c2_179 = arith.constant 2 : index
    %c1_180 = arith.constant 1 : index
    %c0_181 = arith.constant 0 : index
    %165 = vector.load %arg6[%c0_178, %c2_179, %c1_180, %c0_181] : memref<2x10x10x8xf32, #tpu.memory_space<vmem>>, vector<2x8x8x8xf32>
    %166 = vector.shape_cast %165 : vector<2x8x8x8xf32> to vector<128x8xf32>
    %167 = arith.truncf %166 : vector<128x8xf32> to vector<128x8xbf16>
    %c3_182 = arith.constant 3 : index
    %c2_183 = arith.constant 2 : index
    %c0_184 = arith.constant 0 : index
    %c0_185 = arith.constant 0 : index
    %168 = vector.load %arg3[%c3_182, %c2_183, %c0_184, %c0_185] : memref<4x4x8x4xbf16, #tpu.memory_space<vmem>>, vector<1x1x8x4xbf16>
    %169 = vector.shape_cast %168 : vector<1x1x8x4xbf16> to vector<8x4xbf16>
    %cst_186 = arith.constant dense<0.000000e+00> : vector<128x4xf32>
    %170 = tpu.matmul %167, %169, %cst_186 {dimension_numbers = #tpu.dot_dimension_numbers<[1], [0], [0], [1], [0, 0, 1, 1], [], []>} : vector<128x8xbf16>, vector<8x4xbf16>, vector<128x4xf32> -> vector<128x4xf32>
    %171 = arith.addf %164, %170 : vector<128x4xf32>
    %c0_187 = arith.constant 0 : index
    %c2_188 = arith.constant 2 : index
    %c2_189 = arith.constant 2 : index
    %c0_190 = arith.constant 0 : index
    %172 = vector.load %arg6[%c0_187, %c2_188, %c2_189, %c0_190] : memref<2x10x10x8xf32, #tpu.memory_space<vmem>>, vector<2x8x8x8xf32>
    %173 = vector.shape_cast %172 : vector<2x8x8x8xf32> to vector<128x8xf32>
    %174 = arith.truncf %173 : vector<128x8xf32> to vector<128x8xbf16>
    %c3_191 = arith.constant 3 : index
    %c3_192 = arith.constant 3 : index
    %c0_193 = arith.constant 0 : index
    %c0_194 = arith.constant 0 : index
    %175 = vector.load %arg3[%c3_191, %c3_192, %c0_193, %c0_194] : memref<4x4x8x4xbf16, #tpu.memory_space<vmem>>, vector<1x1x8x4xbf16>
    %176 = vector.shape_cast %175 : vector<1x1x8x4xbf16> to vector<8x4xbf16>
    %cst_195 = arith.constant dense<0.000000e+00> : vector<128x4xf32>
    %177 = tpu.matmul %174, %176, %cst_195 {dimension_numbers = #tpu.dot_dimension_numbers<[1], [0], [0], [1], [0, 0, 1, 1], [], []>} : vector<128x8xbf16>, vector<8x4xbf16>, vector<128x4xf32> -> vector<128x4xf32>
    %178 = arith.addf %171, %177 : vector<128x4xf32>
    %179 = vector.shape_cast %178 : vector<128x4xf32> to vector<2x64x4xf32>
    %180 = arith.truncf %179 : vector<2x64x4xf32> to vector<2x64x4xbf16>
    %c0_196 = arith.constant 0 : index
    %c0_197 = arith.constant 0 : index
    %c12 = arith.constant 12 : index
    %181 = vector.load %arg4[%c0_196, %c0_197, %c12] : memref<2x64x16xbf16, #tpu.memory_space<vmem>>, vector<2x64x4xbf16>
    tpu.vector_store %arg4[%c0_196, %c0_197, %c12], %180 {strides = array<i32>} : memref<2x64x16xbf16, #tpu.memory_space<vmem>>, vector<2x64x4xbf16>,
    %cst_198 = arith.constant dense<0.000000e+00> : vector<4xf32>
    %182 = vector.multi_reduction <add>, %178, %cst_198 [0] : vector<128x4xf32> to vector<4xf32>
    %183 = vector.shape_cast %182 : vector<4xf32> to vector<1x4xf32>
    %184 = arith.mulf %178, %178 : vector<128x4xf32>
    %cst_199 = arith.constant dense<0.000000e+00> : vector<4xf32>
    %185 = vector.multi_reduction <add>, %184, %cst_199 [0] : vector<128x4xf32> to vector<4xf32>
    %186 = vector.shape_cast %185 : vector<4xf32> to vector<1x4xf32>
    %187 = arith.addf %150, %183 : vector<1x4xf32>
    %188 = arith.addf %151, %186 : vector<1x4xf32>
    %c0_200 = arith.constant 0 : index
    %c0_201 = arith.constant 0 : index
    %c0_202 = arith.constant 0 : index
    %189 = vector.load %arg5[%c0_200, %c0_201, %c0_202] : memref<1x2x4xf32, #tpu.memory_space<vmem>>, vector<1x1x4xf32>
    %190 = vector.shape_cast %189 : vector<1x1x4xf32> to vector<1x4xf32>
    %191 = vector.shape_cast %187 : vector<1x4xf32> to vector<1x1x4xf32>
    tpu.vector_store %arg5[%c0_200, %c0_201, %c0_202], %191 {strides = array<i32>} : memref<1x2x4xf32, #tpu.memory_space<vmem>>, vector<1x1x4xf32>,
    %c0_203 = arith.constant 0 : index
    %c1_204 = arith.constant 1 : index
    %c0_205 = arith.constant 0 : index
    %192 = vector.load %arg5[%c0_203, %c1_204, %c0_205] : memref<1x2x4xf32, #tpu.memory_space<vmem>>, vector<1x1x4xf32>
    %193 = vector.shape_cast %192 : vector<1x1x4xf32> to vector<1x4xf32>
    %194 = vector.shape_cast %188 : vector<1x4xf32> to vector<1x1x4xf32>
    tpu.vector_store %arg5[%c0_203, %c1_204, %c0_205], %194 {strides = array<i32>} : memref<1x2x4xf32, #tpu.memory_space<vmem>>, vector<1x1x4xf32>,
    return
  }
  func.func @transform_0(%arg0: i32) -> (i32, i32, i32, i32) {
    %c0_i32 = arith.constant 0 : i32
    %c0_i32_0 = arith.constant 0 : i32
    %c0_i32_1 = arith.constant 0 : i32
    %c0_i32_2 = arith.constant 0 : i32
    return %arg0, %c0_i32, %c0_i32_0, %c0_i32_1 : i32, i32, i32, i32
  }
  func.func @transform_1(%arg0: i32) -> (i32, i32, i32) {
    %c0_i32 = arith.constant 0 : i32
    %c0_i32_0 = arith.constant 0 : i32
    %c0_i32_1 = arith.constant 0 : i32
    %c0_i32_2 = arith.constant 0 : i32
    return %c0_i32, %c0_i32_0, %c0_i32_1 : i32, i32, i32
  }
  func.func @transform_2(%arg0: i32) -> (i32, i32, i32, i32) {
    %c0_i32 = arith.constant 0 : i32
    %c0_i32_0 = arith.constant 0 : i32
    %c0_i32_1 = arith.constant 0 : i32
    %c0_i32_2 = arith.constant 0 : i32
    %c0_i32_3 = arith.constant 0 : i32
    return %c0_i32, %c0_i32_0, %c0_i32_1, %c0_i32_2 : i32, i32, i32, i32
  }
  func.func @transform_3(%arg0: i32) -> (i32, i32, i32) {
    %c0_i32 = arith.constant 0 : i32
    %c0_i32_0 = arith.constant 0 : i32
    %c0_i32_1 = arith.constant 0 : i32
    return %arg0, %c0_i32, %c0_i32_0 : i32, i32, i32
  }
  func.func @transform_4(%arg0: i32) -> (i32, i32, i32) {
    %c0_i32 = arith.constant 0 : i32
    %c0_i32_0 = arith.constant 0 : i32
    %c0_i32_1 = arith.constant 0 : i32
    return %arg0, %c0_i32, %c0_i32_0 : i32, i32, i32
  }
}

module attributes {stable_mosaic.version = 11 : i64} {
  func.func @_bn_kernel(%arg0: i32, %arg1: memref<128x16xbf16, #tpu.memory_space<vmem>>, %arg2: memref<1x16xf32, #tpu.memory_space<vmem>>, %arg3: memref<1x16xf32, #tpu.memory_space<vmem>>, %arg4: memref<128x16xf32, #tpu.memory_space<vmem>>) attributes {dimension_semantics = [#tpu.dimension_semantics<parallel>], iteration_bounds = array<i64: 1>, scalar_prefetch = 0 : i64, scratch_operands = 0 : i64, tpu.core_type = #tpu.core_type<tc>, window_params = [{transform_indices = @transform_0, window_bounds = array<i64: 128, 16>}, {pipeline_mode = #tpu.pipeline_mode<synchronous>, transform_indices = @transform_1, window_bounds = array<i64: 1, 16>}, {pipeline_mode = #tpu.pipeline_mode<synchronous>, transform_indices = @transform_2, window_bounds = array<i64: 1, 16>}, {transform_indices = @transform_3, window_bounds = array<i64: 128, 16>}]} {
    %c0 = arith.constant 0 : index
    %c0_0 = arith.constant 0 : index
    %0 = vector.load %arg1[%c0, %c0_0] : memref<128x16xbf16, #tpu.memory_space<vmem>>, vector<128x16xbf16>
    %1 = arith.extf %0 : vector<128x16xbf16> to vector<128x16xf32>
    %c0_1 = arith.constant 0 : index
    %c0_2 = arith.constant 0 : index
    %2 = vector.load %arg2[%c0_1, %c0_2] : memref<1x16xf32, #tpu.memory_space<vmem>>, vector<1x16xf32>
    %3 = vector.broadcast %2 : vector<1x16xf32> to vector<128x16xf32>
    %4 = arith.mulf %1, %3 : vector<128x16xf32>
    %c0_3 = arith.constant 0 : index
    %c0_4 = arith.constant 0 : index
    %5 = vector.load %arg3[%c0_3, %c0_4] : memref<1x16xf32, #tpu.memory_space<vmem>>, vector<1x16xf32>
    %6 = vector.broadcast %5 : vector<1x16xf32> to vector<128x16xf32>
    %7 = arith.addf %4, %6 : vector<128x16xf32>
    %c0_5 = arith.constant 0 : index
    %c0_6 = arith.constant 0 : index
    %8 = vector.load %arg4[%c0_5, %c0_6] : memref<128x16xf32, #tpu.memory_space<vmem>>, vector<128x16xf32>
    tpu.vector_store %arg4[%c0_5, %c0_6], %7 {strides = array<i32>} : memref<128x16xf32, #tpu.memory_space<vmem>>, vector<128x16xf32>,
    return
  }
  func.func @transform_0(%arg0: i32) -> (i32, i32) {
    %c0_i32 = arith.constant 0 : i32
    %c0_i32_0 = arith.constant 0 : i32
    return %arg0, %c0_i32 : i32, i32
  }
  func.func @transform_1(%arg0: i32) -> (i32, i32) {
    %c0_i32 = arith.constant 0 : i32
    %c0_i32_0 = arith.constant 0 : i32
    %c0_i32_1 = arith.constant 0 : i32
    return %c0_i32, %c0_i32_0 : i32, i32
  }
  func.func @transform_2(%arg0: i32) -> (i32, i32) {
    %c0_i32 = arith.constant 0 : i32
    %c0_i32_0 = arith.constant 0 : i32
    %c0_i32_1 = arith.constant 0 : i32
    return %c0_i32, %c0_i32_0 : i32, i32
  }
  func.func @transform_3(%arg0: i32) -> (i32, i32) {
    %c0_i32 = arith.constant 0 : i32
    %c0_i32_0 = arith.constant 0 : i32
    return %arg0, %c0_i32 : i32, i32
  }
}

</mosaic_0001>

<llo_original>
// kernel: tile.18
$region0: #{tile.18}
  #allocation0 [shape = 's32[1]{0}', space=sflag, size = 0x4, scoped, tag = 'scoped memory for tile.18']
  %s0 = inlined_call_operand.vmem [shape: f32[4], index: 0, kind: input, shape index: {}]
  %s1 = inlined_call_operand.vmem [shape: f32[4,4], index: 1, kind: output, shape index: {}]
  // Predicated region
  $region2: #{tile.18} parent=0 // pred_check
    _
  $region3: #{tile.18} parent=0 // pred_check_branch
    %3 = sbr.rel (0) target = $region5
  $region4: #{tile.18} parent=0 // pred_region
    _
  $region5: #{tile.18} parent=0 // pred_fallthru
    _
  %v4 = vld [vmem:[%s0] ss:$0 sm:$0xff]
  %5 = vst [vmem:[%s1] sm:$0xf] %v4

// kernel: tile.19
$region0: #{tile.19}
  %s0 = inlined_call_operand.vmem [shape: f32[4,4], index: 0, kind: input, shape index: {}]
  %s1 = inlined_call_operand.hbm [shape: f32[1,16], index: 1, kind: output, shape index: {}]
  $region1: #{tile.19} parent=0
    #allocation0 [shape = 'u8[512]{0}', space=vmem, size = 0x400, scoped, tag = 'operand span for operand 1']
    #allocation1 [shape = 's32[1]{0}', space=sflag, size = 0x4, scoped, tag = 'scoped memory for tile.19']
    #allocation2 [shape = 'u8[4096]{0}', space=vmem, size = 0x1000, scoped, tag = 'scoped mem for output reshape']
    #allocation3 [shape = 'u8[4096]{0}', space=vmem, size = 0x1000, scoped, tag = 'scoped mem for input reshape']
    %2 = vsyncpa [#allocation1], 0
    %s4 = sshllo.u32 0, 4
    %v5 = vld [vmem:[%s0] sm:%s4]
    %6 = vst [vmem:[#allocation3] sm:%s4] %v5
    %v7 = vld [vmem:[#allocation3] sm:$0x1]
    %vm8 = vcmask 31744
    %9 = vst.msk [vmem:[#allocation2] sm:$0x1] %vm8, %v7
    %s10 = scalar_lea.vmem [#allocation3], 3
    %v11 = vld [vmem:[%s10] sm:$0x1]
    %12 = vrot.lane.b32.xlu0 %v11, 12
    %v13 = vpop.permute.xlu0 %12
    %vm14 = vcmask 130144
    %15 = vst.msk [vmem:[#allocation2] sm:$0x1] %vm14, %v13
    %s16 = scalar_lea.vmem [#allocation3], 2
    %v17 = vld [vmem:[%s16] sm:$0x1]
    %18 = vrot.lane.b32.xlu0 %v17, 8
    %v19 = vpop.permute.xlu0 %18
    %vm20 = vcmask 97344
    %21 = vst.msk [vmem:[#allocation2] sm:$0x1] %vm20, %v19
    %s22 = scalar_lea.vmem [#allocation3], 1
    %v23 = vld [vmem:[%s22] sm:$0x1]
    %24 = vrot.lane.b32.xlu0 %v23, 4
    %v25 = vpop.permute.xlu0 %24
    %vm26 = vcmask 64544
    %27 = vst.msk [vmem:[#allocation2] sm:$0x1] %vm26, %v25
    %s29 = sshllo.u32 0, 1
    %v31 = vld [vmem:[#allocation2] sm:%s29]
    %s32 = sshllo.u32 0, 1
    %33 = vst [vmem:[#allocation0] sm:%s32] %v31
    %s35 = ssub.s32 16, 16
    %36 = vsyncadd [#allocation1], %s35
    %s38 = sshll.u32 [#allocation0], 4
    %s39 = int_to_ptr.vmem [resolvable:$true] %s38
    %41 = dma.vmem_to_hbm [thread:$0]  %s39, 16, %s1, [#allocation1]
    %42 = dma.done [#allocation1], 16
    %43 = vsyncpa [#allocation1], 1

// kernel: unet_block_innermost_forward.3
$region0: #{unet_block_innermost_forward.3}
  #allocation0 [shape = 'u32[]', space=smem, size = 0x4, offset = 0x4, fixed_abs, tag = 'smem constant byte address 0x4 - core index']
  #allocation1 [shape = 'u32[144,128]{1,0:T(1,128)}', space=vmem, size = 0x12000, scoped, tag = 'internal scratch']
  %s0 = inlined_call_operand.hbm [shape: bf16[128,16], index: 0, kind: input, shape index: {}]
  %s1 = inlined_call_operand.hbm [shape: f32[1,16], index: 1, kind: input, shape index: {}]
  %s2 = inlined_call_operand.hbm [shape: f32[1,16], index: 2, kind: input, shape index: {}]
  %s3 = inlined_call_operand.hbm [shape: f32[128,16], index: 3, kind: output, shape index: {}]
  %s4 = sld [smem:[#allocation0]]
  $region34: #{unet_block_innermost_forward.3} parent=0
    _
  %s6 = ssub.s32 1, %s4
  %s7 = scalar_select 0, %s6, %s4
  $region1: #{unet_block_innermost_forward.3} parent=0
    #allocation2 [shape = 'u8[32768]{0}', space=vmem, size = 0x8000, scoped, tag = 'input window, operand 0, single buffered']
    #allocation3 [shape = 's32[1]{0}', space=sflag, size = 0x4, scoped, tag = 'scoped memory for unet_block_innermost_forward.3']
    #allocation4 [shape = 's32[1]{0}', space=sflag, size = 0x4, scoped, tag = 'scoped memory for unet_block_innermost_forward.3']
    #allocation5 [shape = 'u8[512]{0}', space=vmem, size = 0x400, scoped, tag = 'input window, operand 1, single buffered']
    #allocation6 [shape = 's32[1]{0}', space=sflag, size = 0x4, scoped, tag = 'scoped memory for unet_block_innermost_forward.3']
    #allocation7 [shape = 'u8[512]{0}', space=vmem, size = 0x400, scoped, tag = 'input window, operand 2, single buffered']
    #allocation8 [shape = 'u8[65536]{0}', space=vmem, size = 0x10000, scoped, tag = 'output window, operand 0, single buffered']
    %8 = vsyncpa [#allocation3], 0
    %9 = vsyncpa [#allocation6], 0
    %10 = vsyncpa [#allocation4], 0
    // Predicated region
    $region2: #{unet_block_innermost_forward.3} parent=1 // pred_check
      _
    $region3: #{unet_block_innermost_forward.3} parent=1 // pred_check_branch
      %12 = sbr.rel (0) target = $region5
    $region4: #{unet_block_innermost_forward.3} parent=1 // pred_region
      %s14 = ssub.s32 1024, 1024
      %15 = vsyncadd [#allocation3], %s14
      %s16 = sshll.u32 [#allocation2], 4
      %s17 = int_to_ptr.vmem [resolvable:$true] %s16
      %22 = dma.hbm_to_vmem [thread:$0]  %s0, 1024, %s17, [#allocation3], 64, 64, 4
    $region5: #{unet_block_innermost_forward.3} parent=1 // pred_fallthru
      _
    // Predicated region
    $region6: #{unet_block_innermost_forward.3} parent=1 // pred_check
      _
    $region7: #{unet_block_innermost_forward.3} parent=1 // pred_check_branch
      %24 = sbr.rel (0) target = $region9
    $region8: #{unet_block_innermost_forward.3} parent=1 // pred_region
      %s26 = ssub.s32 16, 16
      %27 = vsyncadd [#allocation6], %s26
      %s29 = sshll.u32 [#allocation5], 4
      %s30 = int_to_ptr.vmem [resolvable:$true] %s29
      %32 = dma.hbm_to_vmem [thread:$0]  %s1, 16, %s30, [#allocation6]
    $region9: #{unet_block_innermost_forward.3} parent=1 // pred_fallthru
      _
    // Predicated region
    $region10: #{unet_block_innermost_forward.3} parent=1 // pred_check
      _
    $region11: #{unet_block_innermost_forward.3} parent=1 // pred_check_branch
      %34 = sbr.rel (0) target = $region13
    $region12: #{unet_block_innermost_forward.3} parent=1 // pred_region
      %s36 = ssub.s32 16, 16
      %37 = vsyncadd [#allocation6], %s36
      %s39 = sshll.u32 [#allocation7], 4
      %s40 = int_to_ptr.vmem [resolvable:$true] %s39
      %42 = dma.hbm_to_vmem [thread:$0]  %s2, 16, %s40, [#allocation6]
    $region13: #{unet_block_innermost_forward.3} parent=1 // pred_fallthru
      _
    // Predicated region
    $region14: #{unet_block_innermost_forward.3} parent=1 // pred_check
      _
    $region15: #{unet_block_innermost_forward.3} parent=1 // pred_check_branch
      %44 = sbr.rel (0) target = $region17
    $region16: #{unet_block_innermost_forward.3} parent=1 // pred_region
      %45 = dma.done [#allocation3], 1024
    $region17: #{unet_block_innermost_forward.3} parent=1 // pred_fallthru
      _
    // Predicated region
    $region18: #{unet_block_innermost_forward.3} parent=1 // pred_check
      _
    $region19: #{unet_block_innermost_forward.3} parent=1 // pred_check_branch
      %47 = sbr.rel (0) target = $region21
    $region20: #{unet_block_innermost_forward.3} parent=1 // pred_region
      %48 = dma.done [#allocation6], 16
    $region21: #{unet_block_innermost_forward.3} parent=1 // pred_fallthru
      _
    // Predicated region
    $region22: #{unet_block_innermost_forward.3} parent=1 // pred_check
      _
    $region23: #{unet_block_innermost_forward.3} parent=1 // pred_check_branch
      %50 = sbr.rel (0) target = $region25
    $region24: #{unet_block_innermost_forward.3} parent=1 // pred_region
      %51 = dma.done [#allocation6], 16
    $region25: #{unet_block_innermost_forward.3} parent=1 // pred_fallthru
      _
    %v52 = vld [vmem:[#allocation2] sm:$0xf]
    %v53 = vld [vmem:[#allocation2 + $0x4] sm:$0xf]
    %v54 = vld [vmem:[#allocation2 + $0x8] sm:$0xf]
    %v55 = vld [vmem:[#allocation2 + $0xc] sm:$0xf]
    %v56 = vld [vmem:[#allocation2 + $0x10] sm:$0xf]
    %v57 = vld [vmem:[#allocation2 + $0x14] sm:$0xf]
    %v58 = vld [vmem:[#allocation2 + $0x18] sm:$0xf]
    %v59 = vld [vmem:[#allocation2 + $0x1c] sm:$0xf]
    %v60 = vld [vmem:[#allocation2 + $0x20] sm:$0xf]
    %v61 = vld [vmem:[#allocation2 + $0x24] sm:$0xf]
    %v62 = vld [vmem:[#allocation2 + $0x28] sm:$0xf]
    %v63 = vld [vmem:[#allocation2 + $0x2c] sm:$0xf]
    %v64 = vld [vmem:[#allocation2 + $0x30] sm:$0xf]
    %v65 = vld [vmem:[#allocation2 + $0x34] sm:$0xf]
    %v66 = vld [vmem:[#allocation2 + $0x38] sm:$0xf]
    %v67 = vld [vmem:[#allocation2 + $0x3c] sm:$0xf]
    %v68 = vunpack.c.l.bf16 %v52
    %v69 = vunpack.c.l.bf16 %v53
    %v70 = vunpack.c.l.bf16 %v54
    %v71 = vunpack.c.l.bf16 %v55
    %v72 = vunpack.c.l.bf16 %v56
    %v73 = vunpack.c.l.bf16 %v57
    %v74 = vunpack.c.l.bf16 %v58
    %v75 = vunpack.c.l.bf16 %v59
    %v76 = vunpack.c.l.bf16 %v60
    %v77 = vunpack.c.l.bf16 %v61
    %v78 = vunpack.c.l.bf16 %v62
    %v79 = vunpack.c.l.bf16 %v63
    %v80 = vunpack.c.l.bf16 %v64
    %v81 = vunpack.c.l.bf16 %v65
    %v82 = vunpack.c.l.bf16 %v66
    %v83 = vunpack.c.l.bf16 %v67
    %v84 = vld [vmem:[#allocation5] sm:$0x1]
    %v86 = vlaneseq
    %v87 = vshrl.u32 %v86, 7
    %v88 = vsub.s32 0, %v87
    %v89 = vrot.slane %v84, %v88
    %v91 = vmul.f32 %v68, %v89
    %v92 = vmul.f32 %v69, %v89
    %v93 = vmul.f32 %v70, %v89
    %v94 = vmul.f32 %v71, %v89
    %v95 = vmul.f32 %v72, %v89
    %v96 = vmul.f32 %v73, %v89
    %v97 = vmul.f32 %v74, %v89
    %v98 = vmul.f32 %v75, %v89
    %v99 = vmul.f32 %v76, %v89
    %v100 = vmul.f32 %v77, %v89
    %v101 = vmul.f32 %v78, %v89
    %v102 = vmul.f32 %v79, %v89
    %v103 = vmul.f32 %v80, %v89
    %v104 = vmul.f32 %v81, %v89
    %v105 = vmul.f32 %v82, %v89
    %v106 = vmul.f32 %v83, %v89
    %v107 = vld [vmem:[#allocation7] sm:$0x1]
    %v109 = vlaneseq
    %v110 = vshrl.u32 %v109, 7
    %v111 = vsub.s32 0, %v110
    %v112 = vrot.slane %v107, %v111
    %v114 = vadd.f32 %v91, %v112
    %v115 = vadd.f32 %v92, %v112
    %v116 = vadd.f32 %v93, %v112
    %v117 = vadd.f32 %v94, %v112
    %v118 = vadd.f32 %v95, %v112
    %v119 = vadd.f32 %v96, %v112
    %v120 = vadd.f32 %v97, %v112
    %v121 = vadd.f32 %v98, %v112
    %v122 = vadd.f32 %v99, %v112
    %v123 = vadd.f32 %v100, %v112
    %v124 = vadd.f32 %v101, %v112
    %v125 = vadd.f32 %v102, %v112
    %v126 = vadd.f32 %v103, %v112
    %v127 = vadd.f32 %v104, %v112
    %v128 = vadd.f32 %v105, %v112
    %v129 = vadd.f32 %v106, %v112
    %vm130 = vcmask 130048
    %131 = vst.msk [vmem:[#allocation8] sm:$0xff] %vm130, %v114
    %132 = vst.msk [vmem:[#allocation8 + $0x8] sm:$0xff] %vm130, %v115
    %133 = vst.msk [vmem:[#allocation8 + $0x10] sm:$0xff] %vm130, %v116
    %134 = vst.msk [vmem:[#allocation8 + $0x18] sm:$0xff] %vm130, %v117
    %135 = vst.msk [vmem:[#allocation8 + $0x20] sm:$0xff] %vm130, %v118
    %136 = vst.msk [vmem:[#allocation8 + $0x28] sm:$0xff] %vm130, %v119
    %137 = vst.msk [vmem:[#allocation8 + $0x30] sm:$0xff] %vm130, %v120
    %138 = vst.msk [vmem:[#allocation8 + $0x38] sm:$0xff] %vm130, %v121
    %139 = vst.msk [vmem:[#allocation8 + $0x40] sm:$0xff] %vm130, %v122
    %140 = vst.msk [vmem:[#allocation8 + $0x48] sm:$0xff] %vm130, %v123
    %141 = vst.msk [vmem:[#allocation8 + $0x50] sm:$0xff] %vm130, %v124
    %142 = vst.msk [vmem:[#allocation8 + $0x58] sm:$0xff] %vm130, %v125
    %143 = vst.msk [vmem:[#allocation8 + $0x60] sm:$0xff] %vm130, %v126
    %144 = vst.msk [vmem:[#allocation8 + $0x68] sm:$0xff] %vm130, %v127
    %145 = vst.msk [vmem:[#allocation8 + $0x70] sm:$0xff] %vm130, %v128
    %146 = vst.msk [vmem:[#allocation8 + $0x78] sm:$0xff] %vm130, %v129
    // Predicated region
    $region26: #{unet_block_innermost_forward.3} parent=1 // pred_check
      _
    $region27: #{unet_block_innermost_forward.3} parent=1 // pred_check_branch
      %148 = sbr.rel (0) target = $region29
    $region28: #{unet_block_innermost_forward.3} parent=1 // pred_region
      %s150 = ssub.s32 2048, 2048
      %151 = vsyncadd [#allocation4], %s150
      %s152 = sshll.u32 [#allocation8], 4
      %s153 = int_to_ptr.vmem [resolvable:$true] %s152
      %158 = dma.vmem_to_hbm [thread:$0]  %s153, 2048, %s3, [#allocation4], 128, 128, 8
    $region29: #{unet_block_innermost_forward.3} parent=1 // pred_fallthru
      _
    // Predicated region
    $region30: #{unet_block_innermost_forward.3} parent=1 // pred_check
      _
    $region31: #{unet_block_innermost_forward.3} parent=1 // pred_check_branch
      %160 = sbr.rel (0) target = $region33
    $region32: #{unet_block_innermost_forward.3} parent=1 // pred_region
      %161 = dma.done [#allocation4], 2048
    $region33: #{unet_block_innermost_forward.3} parent=1 // pred_fallthru
      _
    %162 = vsyncpa [#allocation3], 1
    %163 = vsyncpa [#allocation6], 1
    %164 = vsyncpa [#allocation4], 1

// kernel: unet_block_innermost_forward.2
$region0: #{unet_block_innermost_forward.2}
  #allocation0 [shape = 'u32[]', space=smem, size = 0x4, offset = 0x4, fixed_abs, tag = 'smem constant byte address 0x4 - core index']
  #allocation1 [shape = 'u32[144,128]{1,0:T(1,128)}', space=vmem, size = 0x12000, scoped, tag = 'internal scratch']
  #allocation2 [shape = 'f32[2,10,10,8]{3,2,1,0:T(8,128)}', space=vmem, size = 0x28000, scoped, tag = 'scratch operand']
  %s0 = inlined_call_operand.hbm [shape: f32[2,9,9,16], index: 0, kind: input, shape index: {}]
  %s1 = inlined_call_operand.hbm [shape: bf16[4,16,8], index: 1, kind: input, shape index: {}]
  %s2 = inlined_call_operand.hbm [shape: bf16[4,4,8,4], index: 2, kind: input, shape index: {}]
  %s3 = inlined_call_operand.hbm [shape: bf16[2,64,16], index: 3, kind: output, shape index: {0}]
  %s4 = inlined_call_operand.hbm [shape: f32[1,2,4], index: 4, kind: output, shape index: {1}]
  %5 = xla_tuple %s3, %s4
  %s6 = sld [smem:[#allocation0]]
  $region42: #{unet_block_innermost_forward.2} parent=0
    _
  %s8 = ssub.s32 1, %s6
  %s9 = scalar_select 0, %s8, %s6
  $region1: #{unet_block_innermost_forward.2} parent=0
    #allocation3 [shape = 'u8[147456]{0}', space=vmem, size = 0x24000, scoped, tag = 'input window, operand 0, single buffered']
    #allocation4 [shape = 's32[1]{0}', space=sflag, size = 0x4, scoped, tag = 'scoped memory for unet_block_innermost_forward.2']
    #allocation5 [shape = 's32[1]{0}', space=sflag, size = 0x4, scoped, tag = 'scoped memory for unet_block_innermost_forward.2']
    #allocation6 [shape = 'u8[16384]{0}', space=vmem, size = 0x4000, scoped, tag = 'input window, operand 1, single buffered']
    #allocation7 [shape = 's32[1]{0}', space=sflag, size = 0x4, scoped, tag = 'scoped memory for unet_block_innermost_forward.2']
    #allocation8 [shape = 'u8[32768]{0}', space=vmem, size = 0x8000, scoped, tag = 'input window, operand 2, single buffered']
    #allocation9 [shape = 'u8[32768]{0}', space=vmem, size = 0x8000, scoped, tag = 'output window, operand 0, single buffered']
    #allocation10 [shape = 'u8[1024]{0}', space=vmem, size = 0x400, scoped, tag = 'output window, operand 1, single buffered']
    #allocation11 [shape = 's32[1]{0}', space=sflag, size = 0x4, scoped, tag = 'scoped memory for unet_block_innermost_forward.2']
    %10 = vsyncpa [#allocation4], 0
    %11 = vsyncpa [#allocation7], 0
    %12 = vsyncpa [#allocation5], 0
    %13 = vsyncpa [#allocation11], 0
    // Predicated region
    $region2: #{unet_block_innermost_forward.2} parent=1 // pred_check
      _
    $region3: #{unet_block_innermost_forward.2} parent=1 // pred_check_branch
      %15 = sbr.rel (0) target = $region5
    $region4: #{unet_block_innermost_forward.2} parent=1 // pred_region
      %s17 = ssub.s32 4608, 4608
      %18 = vsyncadd [#allocation4], %s17
      %s19 = sshll.u32 [#allocation3], 4
      %s20 = int_to_ptr.vmem [resolvable:$true] %s19
      %25 = dma.hbm_to_vmem [thread:$0]  %s0, 4608, %s20, [#allocation4], 128, 128, 8
    $region5: #{unet_block_innermost_forward.2} parent=1 // pred_fallthru
      _
    // Predicated region
    $region6: #{unet_block_innermost_forward.2} parent=1 // pred_check
      _
    $region7: #{unet_block_innermost_forward.2} parent=1 // pred_check_branch
      %27 = sbr.rel (0) target = $region9
    $region8: #{unet_block_innermost_forward.2} parent=1 // pred_region
      %s29 = ssub.s32 512, 512
      %30 = vsyncadd [#allocation7], %s29
      %s31 = sshll.u32 [#allocation6], 4
      %s32 = int_to_ptr.vmem [resolvable:$true] %s31
      %37 = dma.hbm_to_vmem [thread:$0]  %s1, 512, %s32, [#allocation7], 64, 64, 4
    $region9: #{unet_block_innermost_forward.2} parent=1 // pred_fallthru
      _
    // Predicated region
    $region10: #{unet_block_innermost_forward.2} parent=1 // pred_check
      _
    $region11: #{unet_block_innermost_forward.2} parent=1 // pred_check_branch
      %39 = sbr.rel (0) target = $region13
    $region12: #{unet_block_innermost_forward.2} parent=1 // pred_region
      %s41 = ssub.s32 1024, 1024
      %42 = vsyncadd [#allocation7], %s41
      %s43 = sshll.u32 [#allocation8], 4
      %s44 = int_to_ptr.vmem [resolvable:$true] %s43
      %49 = dma.hbm_to_vmem [thread:$0]  %s2, 1024, %s44, [#allocation7], 64, 64, 4
    $region13: #{unet_block_innermost_forward.2} parent=1 // pred_fallthru
      _
    // Predicated region
    $region14: #{unet_block_innermost_forward.2} parent=1 // pred_check
      _
    $region15: #{unet_block_innermost_forward.2} parent=1 // pred_check_branch
      %51 = sbr.rel (0) target = $region17
    $region16: #{unet_block_innermost_forward.2} parent=1 // pred_region
      %52 = dma.done [#allocation4], 4608
    $region17: #{unet_block_innermost_forward.2} parent=1 // pred_fallthru
      _
    // Predicated region
    $region18: #{unet_block_innermost_forward.2} parent=1 // pred_check
      _
    $region19: #{unet_block_innermost_forward.2} parent=1 // pred_check_branch
      %54 = sbr.rel (0) target = $region21
    $region20: #{unet_block_innermost_forward.2} parent=1 // pred_region
      %55 = dma.done [#allocation7], 512
    $region21: #{unet_block_innermost_forward.2} parent=1 // pred_fallthru
      _
    // Predicated region
    $region22: #{unet_block_innermost_forward.2} parent=1 // pred_check
      _
    $region23: #{unet_block_innermost_forward.2} parent=1 // pred_check_branch
      %57 = sbr.rel (0) target = $region25
    $region24: #{unet_block_innermost_forward.2} parent=1 // pred_region
      %58 = dma.done [#allocation7], 1024
    $region25: #{unet_block_innermost_forward.2} parent=1 // pred_fallthru
      _
    %v60 = vld [vmem:[#allocation3] sm:$0xff]
    %v61 = vld [vmem:[#allocation3 + $0x8] sm:$0x1]
    %v62 = vld [vmem:[#allocation3 + $0x10] sm:$0xff]
    %v63 = vld [vmem:[#allocation3 + $0x18] sm:$0x1]
    %v64 = vld [vmem:[#allocation3 + $0x20] sm:$0xff]
    %v65 = vld [vmem:[#allocation3 + $0x28] sm:$0x1]
    %v66 = vld [vmem:[#allocation3 + $0x30] sm:$0xff]
    %v67 = vld [vmem:[#allocation3 + $0x38] sm:$0x1]
    %v68 = vld [vmem:[#allocation3 + $0x40] sm:$0xff]
    %v69 = vld [vmem:[#allocation3 + $0x48] sm:$0x1]
    %v70 = vld [vmem:[#allocation3 + $0x50] sm:$0xff]
    %v71 = vld [vmem:[#allocation3 + $0x58] sm:$0x1]
    %v72 = vld [vmem:[#allocation3 + $0x60] sm:$0xff]
    %v73 = vld [vmem:[#allocation3 + $0x68] sm:$0x1]
    %v74 = vld [vmem:[#allocation3 + $0x70] sm:$0xff]
    %v75 = vld [vmem:[#allocation3 + $0x78] sm:$0x1]
    %v76 = vld [vmem:[#allocation3 + $0x80] sm:$0xff]
    %v77 = vld [vmem:[#allocation3 + $0x88] sm:$0x1]
    %v78 = vld [vmem:[#allocation3 + $0x90] sm:$0xff]
    %v79 = vld [vmem:[#allocation3 + $0x98] sm:$0x1]
    %v80 = vld [vmem:[#allocation3 + $0xa0] sm:$0xff]
    %v81 = vld [vmem:[#allocation3 + $0xa8] sm:$0x1]
    %v82 = vld [vmem:[#allocation3 + $0xb0] sm:$0xff]
    %v83 = vld [vmem:[#allocation3 + $0xb8] sm:$0x1]
    %v84 = vld [vmem:[#allocation3 + $0xc0] sm:$0xff]
    %v85 = vld [vmem:[#allocation3 + $0xc8] sm:$0x1]
    %v86 = vld [vmem:[#allocation3 + $0xd0] sm:$0xff]
    %v87 = vld [vmem:[#allocation3 + $0xd8] sm:$0x1]
    %v88 = vld [vmem:[#allocation3 + $0xe0] sm:$0xff]
    %v89 = vld [vmem:[#allocation3 + $0xe8] sm:$0x1]
    %v90 = vld [vmem:[#allocation3 + $0xf0] sm:$0xff]
    %v91 = vld [vmem:[#allocation3 + $0xf8] sm:$0x1]
    %v92 = vld [vmem:[#allocation3 + $0x100] sm:$0xff]
    %v93 = vld [vmem:[#allocation3 + $0x108] sm:$0x1]
    %v94 = vld [vmem:[#allocation3 + $0x110] sm:$0xff]
    %v95 = vld [vmem:[#allocation3 + $0x118] sm:$0x1]
    %vm96 = vcmp.ge.f32.partialorder %v60, 0.0
    %vm97 = vcmp.ge.f32.partialorder %v61, 0.0
    %vm98 = vcmp.ge.f32.partialorder %v62, 0.0
    %vm99 = vcmp.ge.f32.partialorder %v63, 0.0
    %vm100 = vcmp.ge.f32.partialorder %v64, 0.0
    %vm101 = vcmp.ge.f32.partialorder %v65, 0.0
    %vm102 = vcmp.ge.f32.partialorder %v66, 0.0
    %vm103 = vcmp.ge.f32.partialorder %v67, 0.0
    %vm104 = vcmp.ge.f32.partialorder %v68, 0.0
    %vm105 = vcmp.ge.f32.partialorder %v69, 0.0
    %vm106 = vcmp.ge.f32.partialorder %v70, 0.0
    %vm107 = vcmp.ge.f32.partialorder %v71, 0.0
    %vm108 = vcmp.ge.f32.partialorder %v72, 0.0
    %vm109 = vcmp.ge.f32.partialorder %v73, 0.0
    %vm110 = vcmp.ge.f32.partialorder %v74, 0.0
    %vm111 = vcmp.ge.f32.partialorder %v75, 0.0
    %vm112 = vcmp.ge.f32.partialorder %v76, 0.0
    %vm113 = vcmp.ge.f32.partialorder %v77, 0.0
    %vm114 = vcmp.ge.f32.partialorder %v78, 0.0
    %vm115 = vcmp.ge.f32.partialorder %v79, 0.0
    %vm116 = vcmp.ge.f32.partialorder %v80, 0.0
    %vm117 = vcmp.ge.f32.partialorder %v81, 0.0
    %vm118 = vcmp.ge.f32.partialorder %v82, 0.0
    %vm119 = vcmp.ge.f32.partialorder %v83, 0.0
    %vm120 = vcmp.ge.f32.partialorder %v84, 0.0
    %vm121 = vcmp.ge.f32.partialorder %v85, 0.0
    %vm122 = vcmp.ge.f32.partialorder %v86, 0.0
    %vm123 = vcmp.ge.f32.partialorder %v87, 0.0
    %vm124 = vcmp.ge.f32.partialorder %v88, 0.0
    %vm125 = vcmp.ge.f32.partialorder %v89, 0.0
    %vm126 = vcmp.ge.f32.partialorder %v90, 0.0
    %vm127 = vcmp.ge.f32.partialorder %v91, 0.0
    %vm128 = vcmp.ge.f32.partialorder %v92, 0.0
    %vm129 = vcmp.ge.f32.partialorder %v93, 0.0
    %vm130 = vcmp.ge.f32.partialorder %v94, 0.0
    %vm131 = vcmp.ge.f32.partialorder %v95, 0.0
    %v132 = vmul.f32 %v60, 0.2
    %v133 = vmul.f32 %v61, 0.2
    %v134 = vmul.f32 %v62, 0.2
    %v135 = vmul.f32 %v63, 0.2
    %v136 = vmul.f32 %v64, 0.2
    %v137 = vmul.f32 %v65, 0.2
    %v138 = vmul.f32 %v66, 0.2
    %v139 = vmul.f32 %v67, 0.2
    %v140 = vmul.f32 %v68, 0.2
    %v141 = vmul.f32 %v69, 0.2
    %v142 = vmul.f32 %v70, 0.2
    %v143 = vmul.f32 %v71, 0.2
    %v144 = vmul.f32 %v72, 0.2
    %v145 = vmul.f32 %v73, 0.2
    %v146 = vmul.f32 %v74, 0.2
    %v147 = vmul.f32 %v75, 0.2
    %v148 = vmul.f32 %v76, 0.2
    %v149 = vmul.f32 %v77, 0.2
    %v150 = vmul.f32 %v78, 0.2
    %v151 = vmul.f32 %v79, 0.2
    %v152 = vmul.f32 %v80, 0.2
    %v153 = vmul.f32 %v81, 0.2
    %v154 = vmul.f32 %v82, 0.2
    %v155 = vmul.f32 %v83, 0.2
    %v156 = vmul.f32 %v84, 0.2
    %v157 = vmul.f32 %v85, 0.2
    %v158 = vmul.f32 %v86, 0.2
    %v159 = vmul.f32 %v87, 0.2
    %v160 = vmul.f32 %v88, 0.2
    %v161 = vmul.f32 %v89, 0.2
    %v162 = vmul.f32 %v90, 0.2
    %v163 = vmul.f32 %v91, 0.2
    %v164 = vmul.f32 %v92, 0.2
    %v165 = vmul.f32 %v93, 0.2
    %v166 = vmul.f32 %v94, 0.2
    %v167 = vmul.f32 %v95, 0.2
    %v168 = vsel %vm96, %v60, %v132
    %v169 = vsel %vm97, %v61, %v133
    %v170 = vsel %vm98, %v62, %v134
    %v171 = vsel %vm99, %v63, %v135
    %v172 = vsel %vm100, %v64, %v136
    %v173 = vsel %vm101, %v65, %v137
    %v174 = vsel %vm102, %v66, %v138
    %v175 = vsel %vm103, %v67, %v139
    %v176 = vsel %vm104, %v68, %v140
    %v177 = vsel %vm105, %v69, %v141
    %v178 = vsel %vm106, %v70, %v142
    %v179 = vsel %vm107, %v71, %v143
    %v180 = vsel %vm108, %v72, %v144
    %v181 = vsel %vm109, %v73, %v145
    %v182 = vsel %vm110, %v74, %v146
    %v183 = vsel %vm111, %v75, %v147
    %v184 = vsel %vm112, %v76, %v148
    %v185 = vsel %vm113, %v77, %v149
    %v186 = vsel %vm114, %v78, %v150
    %v187 = vsel %vm115, %v79, %v151
    %v188 = vsel %vm116, %v80, %v152
    %v189 = vsel %vm117, %v81, %v153
    %v190 = vsel %vm118, %v82, %v154
    %v191 = vsel %vm119, %v83, %v155
    %v192 = vsel %vm120, %v84, %v156
    %v193 = vsel %vm121, %v85, %v157
    %v194 = vsel %vm122, %v86, %v158
    %v195 = vsel %vm123, %v87, %v159
    %v196 = vsel %vm124, %v88, %v160
    %v197 = vsel %vm125, %v89, %v161
    %v198 = vsel %vm126, %v90, %v162
    %v199 = vsel %vm127, %v91, %v163
    %v200 = vsel %vm128, %v92, %v164
    %v201 = vsel %vm129, %v93, %v165
    %v202 = vsel %vm130, %v94, %v166
    %v203 = vsel %vm131, %v95, %v167
    %v204 = vpack.c.bf16 %v170, %v168
    %v205 = vpack.c.bf16 %v174, %v172
    %v206 = vpack.c.bf16 %v178, %v176
    %v207 = vpack.c.bf16 %v182, %v180
    %v208 = vpack.c.bf16 %v188, %v186
    %v209 = vpack.c.bf16 %v192, %v190
    %v210 = vpack.c.bf16 %v196, %v194
    %v211 = vpack.c.bf16 %v200, %v198
    %v212 = vld [vmem:[#allocation6] sm:$0xf]
    %v213 = vld [vmem:[#allocation6 + $0x4] sm:$0xf]
    %vm246 = vcmask 1046528
    %v247 = vrot.slane %v168, 1
    %v248 = vrot.slane %v169, 1
    %v249 = vsel %vm246, %v247, %v248
    %v250 = vrot.slane %v170, 1
    %v251 = vrot.slane %v171, 1
    %v252 = vsel %vm246, %v250, %v251
    %v253 = vrot.slane %v172, 1
    %v254 = vrot.slane %v173, 1
    %v255 = vsel %vm246, %v253, %v254
    %v256 = vrot.slane %v174, 1
    %v257 = vrot.slane %v175, 1
    %v258 = vsel %vm246, %v256, %v257
    %v259 = vrot.slane %v176, 1
    %v260 = vrot.slane %v177, 1
    %v261 = vsel %vm246, %v259, %v260
    %v262 = vrot.slane %v178, 1
    %v263 = vrot.slane %v179, 1
    %v264 = vsel %vm246, %v262, %v263
    %v265 = vrot.slane %v180, 1
    %v266 = vrot.slane %v181, 1
    %v267 = vsel %vm246, %v265, %v266
    %v268 = vrot.slane %v182, 1
    %v269 = vrot.slane %v183, 1
    %v270 = vsel %vm246, %v268, %v269
    %v271 = vrot.slane %v186, 1
    %v272 = vrot.slane %v187, 1
    %v273 = vsel %vm246, %v271, %v272
    %v274 = vrot.slane %v188, 1
    %v275 = vrot.slane %v189, 1
    %v276 = vsel %vm246, %v274, %v275
    %v277 = vrot.slane %v190, 1
    %v278 = vrot.slane %v191, 1
    %v279 = vsel %vm246, %v277, %v278
    %v280 = vrot.slane %v192, 1
    %v281 = vrot.slane %v193, 1
    %v282 = vsel %vm246, %v280, %v281
    %v283 = vrot.slane %v194, 1
    %v284 = vrot.slane %v195, 1
    %v285 = vsel %vm246, %v283, %v284
    %v286 = vrot.slane %v196, 1
    %v287 = vrot.slane %v197, 1
    %v288 = vsel %vm246, %v286, %v287
    %v289 = vrot.slane %v198, 1
    %v290 = vrot.slane %v199, 1
    %v291 = vsel %vm246, %v289, %v290
    %v292 = vrot.slane %v200, 1
    %v293 = vrot.slane %v201, 1
    %v294 = vsel %vm246, %v292, %v293
    %v311 = vpack.c.bf16 %v252, %v249
    %v312 = vpack.c.bf16 %v258, %v255
    %v313 = vpack.c.bf16 %v264, %v261
    %v314 = vpack.c.bf16 %v270, %v267
    %v315 = vpack.c.bf16 %v276, %v273
    %v316 = vpack.c.bf16 %v282, %v279
    %v317 = vpack.c.bf16 %v288, %v285
    %v318 = vpack.c.bf16 %v294, %v291
    %s319 = scalar_lea.vmem [#allocation6], 8
    %v320 = vld [vmem:[%s319] sm:$0xf]
    %v321 = vld [vmem:[%s319 + $0x4] sm:$0xf]
    %v324 = vunpack.c.l.b16 %v320
    %v325 = vunpack.c.l.b16 %v321
    %v326 = vpack.c.b16 %v325, %v324
    %vm328 = vcmask 130048
    %v330 = vsel %vm328, %v311, 0
    %v333 = vsel %vm328, %v312, 0
    %v336 = vsel %vm328, %v313, 0
    %v339 = vsel %vm328, %v314, 0
    %v342 = vsel %vm328, %v315, 0
    %v345 = vsel %vm328, %v316, 0
    %v348 = vsel %vm328, %v317, 0
    %v351 = vsel %vm328, %v318, 0
    %353 = vmatprep.subr.bf16.mxu0 0
    %354 = vmatpush1.bf16.msra.mxu0 %v326
    %355 = vmatprep.subr.bf16.mxu0 0
    %356 = vmatpush1.bf16.msra.mxu0 0
    %357 = vmatprep.subr.bf16.mxu0 0
    %358 = vmatpush1.bf16.msra.mxu0 0
    %359 = vmatprep.subr.bf16.mxu0 0
    %360 = vmatpush1.bf16.msra.mxu0 0
    %361 = vmatprep.subr.bf16.mxu0 0
    %362 = vmatpush1.bf16.msra.mxu0 0
    %363 = vmatprep.subr.bf16.mxu0 0
    %364 = vmatpush1.bf16.msra.mxu0 0
    %365 = vmatprep.subr.bf16.mxu0 0
    %366 = vmatpush1.bf16.msra.mxu0 0
    %367 = vmatprep.subr.bf16.mxu0 0
    %368 = vmatpush1.bf16.msra.mxu0 0
    %369 = vmatprep.subr.bf16.mxu0 0
    %370 = vmatpush1.bf16.msra.mxu0 0
    %371 = vmatprep.subr.bf16.mxu0 0
    %372 = vmatpush1.bf16.msra.mxu0 0
    %373 = vmatprep.subr.bf16.mxu0 0
    %374 = vmatpush1.bf16.msra.mxu0 0
    %375 = vmatprep.subr.bf16.mxu0 0
    %376 = vmatpush1.bf16.msra.mxu0 0
    %377 = vmatprep.subr.bf16.mxu0 0
    %378 = vmatpush1.bf16.msra.mxu0 0
    %379 = vmatprep.subr.bf16.mxu0 0
    %380 = vmatpush1.bf16.msra.mxu0 0
    %381 = vmatprep.subr.bf16.mxu0 0
    %382 = vmatpush1.bf16.msra.mxu0 0
    %383 = vmatprep.subr.bf16.mxu0 0
    %384 = vmatpush1.bf16.msra.mxu0 0
    %385 = vmatprep.mubr.bf16.mxu0 0
    %386 = vmatmul.mubr.bf16.gmra.mrb[0].mxu0 %v330
    %v387 = vpop.f32.mrb[0].mxu0
    %v388 = vadd.f32 0.0, %v387
    %v389 = vpop.f32.mrb[0].mxu0
    %v390 = vpop.f32.mrb[0].mxu0
    %v391 = vadd.f32 0.0, %v390
    %v392 = vpop.f32.mrb[0].mxu0
    %393 = vmatprep.mubr.bf16.mxu0 0
    %394 = vmatmul.mubr.bf16.gmra.mrb[0].mxu0 %v333
    %v395 = vpop.f32.mrb[0].mxu0
    %v396 = vadd.f32 0.0, %v395
    %v397 = vpop.f32.mrb[0].mxu0
    %v398 = vpop.f32.mrb[0].mxu0
    %v399 = vadd.f32 0.0, %v398
    %v400 = vpop.f32.mrb[0].mxu0
    %401 = vmatprep.mubr.bf16.mxu0 0
    %402 = vmatmul.mubr.bf16.gmra.mrb[0].mxu0 %v336
    %v403 = vpop.f32.mrb[0].mxu0
    %v404 = vadd.f32 0.0, %v403
    %v405 = vpop.f32.mrb[0].mxu0
    %v406 = vpop.f32.mrb[0].mxu0
    %v407 = vadd.f32 0.0, %v406
    %v408 = vpop.f32.mrb[0].mxu0
    %409 = vmatprep.mubr.bf16.mxu0 0
    %410 = vmatmul.mubr.bf16.gmra.mrb[0].mxu0 %v339
    %v411 = vpop.f32.mrb[0].mxu0
    %v412 = vadd.f32 0.0, %v411
    %v413 = vpop.f32.mrb[0].mxu0
    %v414 = vpop.f32.mrb[0].mxu0
    %v415 = vadd.f32 0.0, %v414
    %v416 = vpop.f32.mrb[0].mxu0
    %417 = vmatprep.mubr.bf16.mxu0 0
    %418 = vmatmul.mubr.bf16.gmra.mrb[0].mxu0 %v342
    %v419 = vpop.f32.mrb[0].mxu0
    %v420 = vadd.f32 0.0, %v419
    %v421 = vpop.f32.mrb[0].mxu0
    %v422 = vpop.f32.mrb[0].mxu0
    %v423 = vadd.f32 0.0, %v422
    %v424 = vpop.f32.mrb[0].mxu0
    %425 = vmatprep.mubr.bf16.mxu0 0
    %426 = vmatmul.mubr.bf16.gmra.mrb[0].mxu0 %v345
    %v427 = vpop.f32.mrb[0].mxu0
    %v428 = vadd.f32 0.0, %v427
    %v429 = vpop.f32.mrb[0].mxu0
    %v430 = vpop.f32.mrb[0].mxu0
    %v431 = vadd.f32 0.0, %v430
    %v432 = vpop.f32.mrb[0].mxu0
    %433 = vmatprep.mubr.bf16.mxu0 0
    %434 = vmatmul.mubr.bf16.gmra.mrb[0].mxu0 %v348
    %v435 = vpop.f32.mrb[0].mxu0
    %v436 = vadd.f32 0.0, %v435
    %v437 = vpop.f32.mrb[0].mxu0
    %v438 = vpop.f32.mrb[0].mxu0
    %v439 = vadd.f32 0.0, %v438
    %v440 = vpop.f32.mrb[0].mxu0
    %441 = vmatprep.mubr.bf16.mxu0 0
    %442 = vmatmul.mubr.bf16.gmra.mrb[0].mxu0 %v351
    %v443 = vpop.f32.mrb[0].mxu0
    %v444 = vadd.f32 0.0, %v443
    %v445 = vpop.f32.mrb[0].mxu0
    %v446 = vpop.f32.mrb[0].mxu0
    %v447 = vadd.f32 0.0, %v446
    %v448 = vpop.f32.mrb[0].mxu0
    %449 = vdwg.mxu0
    %v452 = vunpack.c.l.b16 %v212
    %v453 = vunpack.c.l.b16 %v213
    %v454 = vpack.c.b16 %v453, %v452
    %v457 = vsel %vm328, %v204, 0
    %v460 = vsel %vm328, %v205, 0
    %v463 = vsel %vm328, %v206, 0
    %v466 = vsel %vm328, %v207, 0
    %v469 = vsel %vm328, %v208, 0
    %v472 = vsel %vm328, %v209, 0
    %v475 = vsel %vm328, %v210, 0
    %v478 = vsel %vm328, %v211, 0
    %480 = vmatprep.subr.bf16.mxu0 0
    %481 = vmatpush1.bf16.msra.mxu0 %v454
    %482 = vmatprep.subr.bf16.mxu0 0
    %483 = vmatpush1.bf16.msra.mxu0 0
    %484 = vmatprep.subr.bf16.mxu0 0
    %485 = vmatpush1.bf16.msra.mxu0 0
    %486 = vmatprep.subr.bf16.mxu0 0
    %487 = vmatpush1.bf16.msra.mxu0 0
    %488 = vmatprep.subr.bf16.mxu0 0
    %489 = vmatpush1.bf16.msra.mxu0 0
    %490 = vmatprep.subr.bf16.mxu0 0
    %491 = vmatpush1.bf16.msra.mxu0 0
    %492 = vmatprep.subr.bf16.mxu0 0
    %493 = vmatpush1.bf16.msra.mxu0 0
    %494 = vmatprep.subr.bf16.mxu0 0
    %495 = vmatpush1.bf16.msra.mxu0 0
    %496 = vmatprep.subr.bf16.mxu0 0
    %497 = vmatpush1.bf16.msra.mxu0 0
    %498 = vmatprep.subr.bf16.mxu0 0
    %499 = vmatpush1.bf16.msra.mxu0 0
    %500 = vmatprep.subr.bf16.mxu0 0
    %501 = vmatpush1.bf16.msra.mxu0 0
    %502 = vmatprep.subr.bf16.mxu0 0
    %503 = vmatpush1.bf16.msra.mxu0 0
    %504 = vmatprep.subr.bf16.mxu0 0
    %505 = vmatpush1.bf16.msra.mxu0 0
    %506 = vmatprep.subr.bf16.mxu0 0
    %507 = vmatpush1.bf16.msra.mxu0 0
    %508 = vmatprep.subr.bf16.mxu0 0
    %509 = vmatpush1.bf16.msra.mxu0 0
    %510 = vmatprep.subr.bf16.mxu0 0
    %511 = vmatpush1.bf16.msra.mxu0 0
    %512 = vmatprep.mubr.bf16.mxu0 0
    %513 = vmatmul.mubr.bf16.gmra.mrb[0].mxu0 %v457
    %v514 = vpop.f32.mrb[0].mxu0
    %v515 = vadd.f32 %v388, %v514
    %v516 = vpop.f32.mrb[0].mxu0
    %v517 = vpop.f32.mrb[0].mxu0
    %v518 = vadd.f32 %v391, %v517
    %v519 = vpop.f32.mrb[0].mxu0
    %520 = vmatprep.mubr.bf16.mxu0 0
    %521 = vmatmul.mubr.bf16.gmra.mrb[0].mxu0 %v460
    %v522 = vpop.f32.mrb[0].mxu0
    %v523 = vadd.f32 %v396, %v522
    %v524 = vpop.f32.mrb[0].mxu0
    %v525 = vpop.f32.mrb[0].mxu0
    %v526 = vadd.f32 %v399, %v525
    %v527 = vpop.f32.mrb[0].mxu0
    %528 = vmatprep.mubr.bf16.mxu0 0
    %529 = vmatmul.mubr.bf16.gmra.mrb[0].mxu0 %v463
    %v530 = vpop.f32.mrb[0].mxu0
    %v531 = vadd.f32 %v404, %v530
    %v532 = vpop.f32.mrb[0].mxu0
    %v533 = vpop.f32.mrb[0].mxu0
    %v534 = vadd.f32 %v407, %v533
    %v535 = vpop.f32.mrb[0].mxu0
    %536 = vmatprep.mubr.bf16.mxu0 0
    %537 = vmatmul.mubr.bf16.gmra.mrb[0].mxu0 %v466
    %v538 = vpop.f32.mrb[0].mxu0
    %v539 = vadd.f32 %v412, %v538
    %v540 = vpop.f32.mrb[0].mxu0
    %v541 = vpop.f32.mrb[0].mxu0
    %v542 = vadd.f32 %v415, %v541
    %v543 = vpop.f32.mrb[0].mxu0
    %544 = vmatprep.mubr.bf16.mxu0 0
    %545 = vmatmul.mubr.bf16.gmra.mrb[0].mxu0 %v469
    %v546 = vpop.f32.mrb[0].mxu0
    %v547 = vadd.f32 %v420, %v546
    %v548 = vpop.f32.mrb[0].mxu0
    %v549 = vpop.f32.mrb[0].mxu0
    %v550 = vadd.f32 %v423, %v549
    %v551 = vpop.f32.mrb[0].mxu0
    %552 = vmatprep.mubr.bf16.mxu0 0
    %553 = vmatmul.mubr.bf16.gmra.mrb[0].mxu0 %v472
    %v554 = vpop.f32.mrb[0].mxu0
    %v555 = vadd.f32 %v428, %v554
    %v556 = vpop.f32.mrb[0].mxu0
    %v557 = vpop.f32.mrb[0].mxu0
    %v558 = vadd.f32 %v431, %v557
    %v559 = vpop.f32.mrb[0].mxu0
    %560 = vmatprep.mubr.bf16.mxu0 0
    %561 = vmatmul.mubr.bf16.gmra.mrb[0].mxu0 %v475
    %v562 = vpop.f32.mrb[0].mxu0
    %v563 = vadd.f32 %v436, %v562
    %v564 = vpop.f32.mrb[0].mxu0
    %v565 = vpop.f32.mrb[0].mxu0
    %v566 = vadd.f32 %v439, %v565
    %v567 = vpop.f32.mrb[0].mxu0
    %568 = vmatprep.mubr.bf16.mxu0 0
    %569 = vmatmul.mubr.bf16.gmra.mrb[0].mxu0 %v478
    %v570 = vpop.f32.mrb[0].mxu0
    %v571 = vadd.f32 %v444, %v570
    %v572 = vpop.f32.mrb[0].mxu0
    %v573 = vpop.f32.mrb[0].mxu0
    %v574 = vadd.f32 %v447, %v573
    %v575 = vpop.f32.mrb[0].mxu0
    %576 = vdwg.mxu0
    %v577 = vpack.c.bf16 %v172, %v170
    %v578 = vpack.c.bf16 %v176, %v174
    %v579 = vpack.c.bf16 %v180, %v178
    %v580 = vpack.c.bf16 %v184, %v182
    %v581 = vpack.c.bf16 %v190, %v188
    %v582 = vpack.c.bf16 %v194, %v192
    %v583 = vpack.c.bf16 %v198, %v196
    %v584 = vpack.c.bf16 %v202, %v200
    %s585 = scalar_lea.vmem [#allocation6], 16
    %v586 = vld [vmem:[%s585] sm:$0xf]
    %v587 = vld [vmem:[%s585 + $0x4] sm:$0xf]
    %v590 = vunpack.c.l.b16 %v586
    %v591 = vunpack.c.l.b16 %v587
    %v592 = vpack.c.b16 %v591, %v590
    %v595 = vsel %vm328, %v577, 0
    %v598 = vsel %vm328, %v578, 0
    %v601 = vsel %vm328, %v579, 0
    %v604 = vsel %vm328, %v580, 0
    %v607 = vsel %vm328, %v581, 0
    %v610 = vsel %vm328, %v582, 0
    %v613 = vsel %vm328, %v583, 0
    %v616 = vsel %vm328, %v584, 0
    %618 = vmatprep.subr.bf16.mxu0 0
    %619 = vmatpush1.bf16.msra.mxu0 %v592
    %620 = vmatprep.subr.bf16.mxu0 0
    %621 = vmatpush1.bf16.msra.mxu0 0
    %622 = vmatprep.subr.bf16.mxu0 0
    %623 = vmatpush1.bf16.msra.mxu0 0
    %624 = vmatprep.subr.bf16.mxu0 0
    %625 = vmatpush1.bf16.msra.mxu0 0
    %626 = vmatprep.subr.bf16.mxu0 0
    %627 = vmatpush1.bf16.msra.mxu0 0
    %628 = vmatprep.subr.bf16.mxu0 0
    %629 = vmatpush1.bf16.msra.mxu0 0
    %630 = vmatprep.subr.bf16.mxu0 0
    %631 = vmatpush1.bf16.msra.mxu0 0
    %632 = vmatprep.subr.bf16.mxu0 0
    %633 = vmatpush1.bf16.msra.mxu0 0
    %634 = vmatprep.subr.bf16.mxu0 0
    %635 = vmatpush1.bf16.msra.mxu0 0
    %636 = vmatprep.subr.bf16.mxu0 0
    %637 = vmatpush1.bf16.msra.mxu0 0
    %638 = vmatprep.subr.bf16.mxu0 0
    %639 = vmatpush1.bf16.msra.mxu0 0
    %640 = vmatprep.subr.bf16.mxu0 0
    %641 = vmatpush1.bf16.msra.mxu0 0
    %642 = vmatprep.subr.bf16.mxu0 0
    %643 = vmatpush1.bf16.msra.mxu0 0
    %644 = vmatprep.subr.bf16.mxu0 0
    %645 = vmatpush1.bf16.msra.mxu0 0
    %646 = vmatprep.subr.bf16.mxu0 0
    %647 = vmatpush1.bf16.msra.mxu0 0
    %648 = vmatprep.subr.bf16.mxu0 0
    %649 = vmatpush1.bf16.msra.mxu0 0
    %650 = vmatprep.mubr.bf16.mxu0 0
    %651 = vmatmul.mubr.bf16.gmra.mrb[0].mxu0 %v595
    %v652 = vpop.f32.mrb[0].mxu0
    %v653 = vadd.f32 0.0, %v652
    %v654 = vpop.f32.mrb[0].mxu0
    %v655 = vpop.f32.mrb[0].mxu0
    %v656 = vadd.f32 0.0, %v655
    %v657 = vpop.f32.mrb[0].mxu0
    %658 = vmatprep.mubr.bf16.mxu0 0
    %659 = vmatmul.mubr.bf16.gmra.mrb[0].mxu0 %v598
    %v660 = vpop.f32.mrb[0].mxu0
    %v661 = vadd.f32 0.0, %v660
    %v662 = vpop.f32.mrb[0].mxu0
    %v663 = vpop.f32.mrb[0].mxu0
    %v664 = vadd.f32 0.0, %v663
    %v665 = vpop.f32.mrb[0].mxu0
    %666 = vmatprep.mubr.bf16.mxu0 0
    %667 = vmatmul.mubr.bf16.gmra.mrb[0].mxu0 %v601
    %v668 = vpop.f32.mrb[0].mxu0
    %v669 = vadd.f32 0.0, %v668
    %v670 = vpop.f32.mrb[0].mxu0
    %v671 = vpop.f32.mrb[0].mxu0
    %v672 = vadd.f32 0.0, %v671
    %v673 = vpop.f32.mrb[0].mxu0
    %674 = vmatprep.mubr.bf16.mxu0 0
    %675 = vmatmul.mubr.bf16.gmra.mrb[0].mxu0 %v604
    %v676 = vpop.f32.mrb[0].mxu0
    %v677 = vadd.f32 0.0, %v676
    %v678 = vpop.f32.mrb[0].mxu0
    %v679 = vpop.f32.mrb[0].mxu0
    %v680 = vadd.f32 0.0, %v679
    %v681 = vpop.f32.mrb[0].mxu0
    %682 = vmatprep.mubr.bf16.mxu0 0
    %683 = vmatmul.mubr.bf16.gmra.mrb[0].mxu0 %v607
    %v684 = vpop.f32.mrb[0].mxu0
    %v685 = vadd.f32 0.0, %v684
    %v686 = vpop.f32.mrb[0].mxu0
    %v687 = vpop.f32.mrb[0].mxu0
    %v688 = vadd.f32 0.0, %v687
    %v689 = vpop.f32.mrb[0].mxu0
    %690 = vmatprep.mubr.bf16.mxu0 0
    %691 = vmatmul.mubr.bf16.gmra.mrb[0].mxu0 %v610
    %v692 = vpop.f32.mrb[0].mxu0
    %v693 = vadd.f32 0.0, %v692
    %v694 = vpop.f32.mrb[0].mxu0
    %v695 = vpop.f32.mrb[0].mxu0
    %v696 = vadd.f32 0.0, %v695
    %v697 = vpop.f32.mrb[0].mxu0
    %698 = vmatprep.mubr.bf16.mxu0 0
    %699 = vmatmul.mubr.bf16.gmra.mrb[0].mxu0 %v613
    %v700 = vpop.f32.mrb[0].mxu0
    %v701 = vadd.f32 0.0, %v700
    %v702 = vpop.f32.mrb[0].mxu0
    %v703 = vpop.f32.mrb[0].mxu0
    %v704 = vadd.f32 0.0, %v703
    %v705 = vpop.f32.mrb[0].mxu0
    %706 = vmatprep.mubr.bf16.mxu0 0
    %707 = vmatmul.mubr.bf16.gmra.mrb[0].mxu0 %v616
    %v708 = vpop.f32.mrb[0].mxu0
    %v709 = vadd.f32 0.0, %v708
    %v710 = vpop.f32.mrb[0].mxu0
    %v711 = vpop.f32.mrb[0].mxu0
    %v712 = vadd.f32 0.0, %v711
    %v713 = vpop.f32.mrb[0].mxu0
    %714 = vdwg.mxu0
    %v715 = vadd.f32 %v515, %v653
    %v716 = vadd.f32 %v518, %v656
    %v717 = vadd.f32 %v523, %v661
    %v718 = vadd.f32 %v526, %v664
    %v719 = vadd.f32 %v531, %v669
    %v720 = vadd.f32 %v534, %v672
    %v721 = vadd.f32 %v539, %v677
    %v722 = vadd.f32 %v542, %v680
    %v723 = vadd.f32 %v547, %v685
    %v724 = vadd.f32 %v550, %v688
    %v725 = vadd.f32 %v555, %v693
    %v726 = vadd.f32 %v558, %v696
    %v727 = vadd.f32 %v563, %v701
    %v728 = vadd.f32 %v566, %v704
    %v729 = vadd.f32 %v571, %v709
    %v730 = vadd.f32 %v574, %v712
    %v735 = vrot.slane %v184, 1
    %v736 = vrot.slane %v185, 1
    %v737 = vsel %vm246, %v735, %v736
    %v738 = vrot.slane %v202, 1
    %v739 = vrot.slane %v203, 1
    %v740 = vsel %vm246, %v738, %v739
    %v743 = vpack.c.bf16 %v255, %v252
    %v744 = vpack.c.bf16 %v261, %v258
    %v745 = vpack.c.bf16 %v267, %v264
    %v746 = vpack.c.bf16 %v737, %v270
    %v747 = vpack.c.bf16 %v279, %v276
    %v748 = vpack.c.bf16 %v285, %v282
    %v749 = vpack.c.bf16 %v291, %v288
    %v750 = vpack.c.bf16 %v740, %v294
    %s751 = scalar_lea.vmem [#allocation6], 24
    %v752 = vld [vmem:[%s751] sm:$0xf]
    %v753 = vld [vmem:[%s751 + $0x4] sm:$0xf]
    %v756 = vunpack.c.l.b16 %v752
    %v757 = vunpack.c.l.b16 %v753
    %v758 = vpack.c.b16 %v757, %v756
    %v761 = vsel %vm328, %v743, 0
    %v764 = vsel %vm328, %v744, 0
    %v767 = vsel %vm328, %v745, 0
    %v770 = vsel %vm328, %v746, 0
    %v773 = vsel %vm328, %v747, 0
    %v776 = vsel %vm328, %v748, 0
    %v779 = vsel %vm328, %v749, 0
    %v782 = vsel %vm328, %v750, 0
    %784 = vmatprep.subr.bf16.mxu0 0
    %785 = vmatpush1.bf16.msra.mxu0 %v758
    %786 = vmatprep.subr.bf16.mxu0 0
    %787 = vmatpush1.bf16.msra.mxu0 0
    %788 = vmatprep.subr.bf16.mxu0 0
    %789 = vmatpush1.bf16.msra.mxu0 0
    %790 = vmatprep.subr.bf16.mxu0 0
    %791 = vmatpush1.bf16.msra.mxu0 0
    %792 = vmatprep.subr.bf16.mxu0 0
    %793 = vmatpush1.bf16.msra.mxu0 0
    %794 = vmatprep.subr.bf16.mxu0 0
    %795 = vmatpush1.bf16.msra.mxu0 0
    %796 = vmatprep.subr.bf16.mxu0 0
    %797 = vmatpush1.bf16.msra.mxu0 0
    %798 = vmatprep.subr.bf16.mxu0 0
    %799 = vmatpush1.bf16.msra.mxu0 0
    %800 = vmatprep.subr.bf16.mxu0 0
    %801 = vmatpush1.bf16.msra.mxu0 0
    %802 = vmatprep.subr.bf16.mxu0 0
    %803 = vmatpush1.bf16.msra.mxu0 0
    %804 = vmatprep.subr.bf16.mxu0 0
    %805 = vmatpush1.bf16.msra.mxu0 0
    %806 = vmatprep.subr.bf16.mxu0 0
    %807 = vmatpush1.bf16.msra.mxu0 0
    %808 = vmatprep.subr.bf16.mxu0 0
    %809 = vmatpush1.bf16.msra.mxu0 0
    %810 = vmatprep.subr.bf16.mxu0 0
    %811 = vmatpush1.bf16.msra.mxu0 0
    %812 = vmatprep.subr.bf16.mxu0 0
    %813 = vmatpush1.bf16.msra.mxu0 0
    %814 = vmatprep.subr.bf16.mxu0 0
    %815 = vmatpush1.bf16.msra.mxu0 0
    %816 = vmatprep.mubr.bf16.mxu0 0
    %817 = vmatmul.mubr.bf16.gmra.mrb[0].mxu0 %v761
    %v818 = vpop.f32.mrb[0].mxu0
    %v819 = vadd.f32 0.0, %v818
    %v820 = vpop.f32.mrb[0].mxu0
    %v821 = vpop.f32.mrb[0].mxu0
    %v822 = vadd.f32 0.0, %v821
    %v823 = vpop.f32.mrb[0].mxu0
    %824 = vmatprep.mubr.bf16.mxu0 0
    %825 = vmatmul.mubr.bf16.gmra.mrb[0].mxu0 %v764
    %v826 = vpop.f32.mrb[0].mxu0
    %v827 = vadd.f32 0.0, %v826
    %v828 = vpop.f32.mrb[0].mxu0
    %v829 = vpop.f32.mrb[0].mxu0
    %v830 = vadd.f32 0.0, %v829
    %v831 = vpop.f32.mrb[0].mxu0
    %832 = vmatprep.mubr.bf16.mxu0 0
    %833 = vmatmul.mubr.bf16.gmra.mrb[0].mxu0 %v767
    %v834 = vpop.f32.mrb[0].mxu0
    %v835 = vadd.f32 0.0, %v834
    %v836 = vpop.f32.mrb[0].mxu0
    %v837 = vpop.f32.mrb[0].mxu0
    %v838 = vadd.f32 0.0, %v837
    %v839 = vpop.f32.mrb[0].mxu0
    %840 = vmatprep.mubr.bf16.mxu0 0
    %841 = vmatmul.mubr.bf16.gmra.mrb[0].mxu0 %v770
    %v842 = vpop.f32.mrb[0].mxu0
    %v843 = vadd.f32 0.0, %v842
    %v844 = vpop.f32.mrb[0].mxu0
    %v845 = vpop.f32.mrb[0].mxu0
    %v846 = vadd.f32 0.0, %v845
    %v847 = vpop.f32.mrb[0].mxu0
    %848 = vmatprep.mubr.bf16.mxu0 0
    %849 = vmatmul.mubr.bf16.gmra.mrb[0].mxu0 %v773
    %v850 = vpop.f32.mrb[0].mxu0
    %v851 = vadd.f32 0.0, %v850
    %v852 = vpop.f32.mrb[0].mxu0
    %v853 = vpop.f32.mrb[0].mxu0
    %v854 = vadd.f32 0.0, %v853
    %v855 = vpop.f32.mrb[0].mxu0
    %856 = vmatprep.mubr.bf16.mxu0 0
    %857 = vmatmul.mubr.bf16.gmra.mrb[0].mxu0 %v776
    %v858 = vpop.f32.mrb[0].mxu0
    %v859 = vadd.f32 0.0, %v858
    %v860 = vpop.f32.mrb[0].mxu0
    %v861 = vpop.f32.mrb[0].mxu0
    %v862 = vadd.f32 0.0, %v861
    %v863 = vpop.f32.mrb[0].mxu0
    %864 = vmatprep.mubr.bf16.mxu0 0
    %865 = vmatmul.mubr.bf16.gmra.mrb[0].mxu0 %v779
    %v866 = vpop.f32.mrb[0].mxu0
    %v867 = vadd.f32 0.0, %v866
    %v868 = vpop.f32.mrb[0].mxu0
    %v869 = vpop.f32.mrb[0].mxu0
    %v870 = vadd.f32 0.0, %v869
    %v871 = vpop.f32.mrb[0].mxu0
    %872 = vmatprep.mubr.bf16.mxu0 0
    %873 = vmatmul.mubr.bf16.gmra.mrb[0].mxu0 %v782
    %v874 = vpop.f32.mrb[0].mxu0
    %v875 = vadd.f32 0.0, %v874
    %v876 = vpop.f32.mrb[0].mxu0
    %v877 = vpop.f32.mrb[0].mxu0
    %v878 = vadd.f32 0.0, %v877
    %v879 = vpop.f32.mrb[0].mxu0
    %880 = vdwg.mxu0
    %v881 = vadd.f32 %v715, %v819
    %v882 = vadd.f32 %v716, %v822
    %v883 = vadd.f32 %v717, %v827
    %v884 = vadd.f32 %v718, %v830
    %v885 = vadd.f32 %v719, %v835
    %v886 = vadd.f32 %v720, %v838
    %v887 = vadd.f32 %v721, %v843
    %v888 = vadd.f32 %v722, %v846
    %v889 = vadd.f32 %v723, %v851
    %v890 = vadd.f32 %v724, %v854
    %v891 = vadd.f32 %v725, %v859
    %v892 = vadd.f32 %v726, %v862
    %v893 = vadd.f32 %v727, %v867
    %v894 = vadd.f32 %v728, %v870
    %v895 = vadd.f32 %v729, %v875
    %v896 = vadd.f32 %v730, %v878
    %v897 = vmax.f32 %v881, 0.0
    %v898 = vmax.f32 %v882, 0.0
    %v899 = vmax.f32 %v883, 0.0
    %v900 = vmax.f32 %v884, 0.0
    %v901 = vmax.f32 %v885, 0.0
    %v902 = vmax.f32 %v886, 0.0
    %v903 = vmax.f32 %v887, 0.0
    %v904 = vmax.f32 %v888, 0.0
    %v905 = vmax.f32 %v889, 0.0
    %v906 = vmax.f32 %v890, 0.0
    %v907 = vmax.f32 %v891, 0.0
    %v908 = vmax.f32 %v892, 0.0
    %v909 = vmax.f32 %v893, 0.0
    %v910 = vmax.f32 %v894, 0.0
    %v911 = vmax.f32 %v895, 0.0
    %v912 = vmax.f32 %v896, 0.0
    %vm913 = vcmask 64512
    %914 = vst.msk [vmem:[#allocation2] sm:$0xff] %vm913, 0.0
    %vm915 = vcmask 58368
    %916 = vst.msk [vmem:[#allocation2 + $0x8] sm:$0x3] %vm915, 0.0
    %917 = vst.msk [vmem:[#allocation2 + $0xa0] sm:$0xff] %vm913, 0.0
    %918 = vst.msk [vmem:[#allocation2 + $0xa8] sm:$0x3] %vm915, 0.0
    %s919 = scalar_lea.vmem [#allocation2], 144
    %920 = vst.msk [vmem:[%s919] sm:$0xff] %vm913, 0.0
    %921 = vst.msk [vmem:[%s919 + $0x8] sm:$0x3] %vm915, 0.0
    %922 = vst.msk [vmem:[%s919 + $0xa0] sm:$0xff] %vm913, 0.0
    %923 = vst.msk [vmem:[%s919 + $0xa8] sm:$0x3] %vm915, 0.0
    %vm924 = vcmask 57344
    %925 = vst.msk [vmem:[#allocation2] sm:$0x1] %vm924, 0.0
    %926 = vst.msk [vmem:[#allocation2 + $0x10] sm:$0x1] %vm924, 0.0
    %927 = vst.msk [vmem:[#allocation2 + $0x20] sm:$0x1] %vm924, 0.0
    %928 = vst.msk [vmem:[#allocation2 + $0x30] sm:$0x1] %vm924, 0.0
    %929 = vst.msk [vmem:[#allocation2 + $0x40] sm:$0x1] %vm924, 0.0
    %930 = vst.msk [vmem:[#allocation2 + $0x50] sm:$0x1] %vm924, 0.0
    %931 = vst.msk [vmem:[#allocation2 + $0x60] sm:$0x1] %vm924, 0.0
    %932 = vst.msk [vmem:[#allocation2 + $0x70] sm:$0x1] %vm924, 0.0
    %933 = vst.msk [vmem:[#allocation2 + $0x80] sm:$0x1] %vm924, 0.0
    %934 = vst.msk [vmem:[#allocation2 + $0x90] sm:$0x1] %vm924, 0.0
    %935 = vst.msk [vmem:[#allocation2 + $0xa0] sm:$0x1] %vm924, 0.0
    %936 = vst.msk [vmem:[#allocation2 + $0xb0] sm:$0x1] %vm924, 0.0
    %937 = vst.msk [vmem:[#allocation2 + $0xc0] sm:$0x1] %vm924, 0.0
    %938 = vst.msk [vmem:[#allocation2 + $0xd0] sm:$0x1] %vm924, 0.0
    %939 = vst.msk [vmem:[#allocation2 + $0xe0] sm:$0x1] %vm924, 0.0
    %940 = vst.msk [vmem:[#allocation2 + $0xf0] sm:$0x1] %vm924, 0.0
    %941 = vst.msk [vmem:[#allocation2 + $0x100] sm:$0x1] %vm924, 0.0
    %942 = vst.msk [vmem:[#allocation2 + $0x110] sm:$0x1] %vm924, 0.0
    %943 = vst.msk [vmem:[#allocation2 + $0x120] sm:$0x1] %vm924, 0.0
    %944 = vst.msk [vmem:[#allocation2 + $0x130] sm:$0x1] %vm924, 0.0
    %945 = vst.msk [vmem:[#allocation2 + $0x9] sm:$0x1] %vm924, 0.0
    %946 = vst.msk [vmem:[#allocation2 + $0x19] sm:$0x1] %vm924, 0.0
    %947 = vst.msk [vmem:[#allocation2 + $0x29] sm:$0x1] %vm924, 0.0
    %948 = vst.msk [vmem:[#allocation2 + $0x39] sm:$0x1] %vm924, 0.0
    %949 = vst.msk [vmem:[#allocation2 + $0x49] sm:$0x1] %vm924, 0.0
    %950 = vst.msk [vmem:[#allocation2 + $0x59] sm:$0x1] %vm924, 0.0
    %951 = vst.msk [vmem:[#allocation2 + $0x69] sm:$0x1] %vm924, 0.0
    %952 = vst.msk [vmem:[#allocation2 + $0x79] sm:$0x1] %vm924, 0.0
    %953 = vst.msk [vmem:[#allocation2 + $0x89] sm:$0x1] %vm924, 0.0
    %954 = vst.msk [vmem:[#allocation2 + $0x99] sm:$0x1] %vm924, 0.0
    %955 = vst.msk [vmem:[#allocation2 + $0xa9] sm:$0x1] %vm924, 0.0
    %956 = vst.msk [vmem:[#allocation2 + $0xb9] sm:$0x1] %vm924, 0.0
    %957 = vst.msk [vmem:[#allocation2 + $0xc9] sm:$0x1] %vm924, 0.0
    %958 = vst.msk [vmem:[#allocation2 + $0xd9] sm:$0x1] %vm924, 0.0
    %959 = vst.msk [vmem:[#allocation2 + $0xe9] sm:$0x1] %vm924, 0.0
    %960 = vst.msk [vmem:[#allocation2 + $0xf9] sm:$0x1] %vm924, 0.0
    %961 = vst.msk [vmem:[#allocation2 + $0x109] sm:$0x1] %vm924, 0.0
    %962 = vst.msk [vmem:[#allocation2 + $0x119] sm:$0x1] %vm924, 0.0
    %963 = vst.msk [vmem:[#allocation2 + $0x129] sm:$0x1] %vm924, 0.0
    %964 = vst.msk [vmem:[#allocation2 + $0x139] sm:$0x1] %vm924, 0.0
    %s965 = scalar_lea.vmem [#allocation2], 16
    %966 = vst.msk [vmem:[%s965 + $0x1] sm:$0xff] %vm913, %v897
    %967 = vst.msk [vmem:[%s965 + $0x11] sm:$0xff] %vm913, %v898
    %968 = vst.msk [vmem:[%s965 + $0x21] sm:$0xff] %vm913, %v899
    %969 = vst.msk [vmem:[%s965 + $0x31] sm:$0xff] %vm913, %v900
    %970 = vst.msk [vmem:[%s965 + $0x41] sm:$0xff] %vm913, %v901
    %971 = vst.msk [vmem:[%s965 + $0x51] sm:$0xff] %vm913, %v902
    %972 = vst.msk [vmem:[%s965 + $0x61] sm:$0xff] %vm913, %v903
    %973 = vst.msk [vmem:[%s965 + $0x71] sm:$0xff] %vm913, %v904
    %974 = vst.msk [vmem:[%s965 + $0xa1] sm:$0xff] %vm913, %v905
    %975 = vst.msk [vmem:[%s965 + $0xb1] sm:$0xff] %vm913, %v906
    %976 = vst.msk [vmem:[%s965 + $0xc1] sm:$0xff] %vm913, %v907
    %977 = vst.msk [vmem:[%s965 + $0xd1] sm:$0xff] %vm913, %v908
    %978 = vst.msk [vmem:[%s965 + $0xe1] sm:$0xff] %vm913, %v909
    %979 = vst.msk [vmem:[%s965 + $0xf1] sm:$0xff] %vm913, %v910
    %980 = vst.msk [vmem:[%s965 + $0x101] sm:$0xff] %vm913, %v911
    %981 = vst.msk [vmem:[%s965 + $0x111] sm:$0xff] %vm913, %v912
    %v982 = vld [vmem:[#allocation2] sm:$0xff]
    %v983 = vld [vmem:[#allocation2 + $0x10] sm:$0xff]
    %v984 = vld [vmem:[#allocation2 + $0x20] sm:$0xff]
    %v985 = vld [vmem:[#allocation2 + $0x30] sm:$0xff]
    %v986 = vld [vmem:[#allocation2 + $0x40] sm:$0xff]
    %v987 = vld [vmem:[#allocation2 + $0x50] sm:$0xff]
    %v988 = vld [vmem:[#allocation2 + $0x60] sm:$0xff]
    %v989 = vld [vmem:[#allocation2 + $0x70] sm:$0xff]
    %v990 = vld [vmem:[#allocation2 + $0xa0] sm:$0xff]
    %v991 = vld [vmem:[#allocation2 + $0xb0] sm:$0xff]
    %v992 = vld [vmem:[#allocation2 + $0xc0] sm:$0xff]
    %v993 = vld [vmem:[#allocation2 + $0xd0] sm:$0xff]
    %v994 = vld [vmem:[#allocation2 + $0xe0] sm:$0xff]
    %v995 = vld [vmem:[#allocation2 + $0xf0] sm:$0xff]
    %v996 = vld [vmem:[#allocation2 + $0x100] sm:$0xff]
    %v997 = vld [vmem:[#allocation2 + $0x110] sm:$0xff]
    %v998 = vpack.c.bf16 %v983, %v982
    %v999 = vpack.c.bf16 %v985, %v984
    %v1000 = vpack.c.bf16 %v987, %v986
    %v1001 = vpack.c.bf16 %v989, %v988
    %v1002 = vpack.c.bf16 %v991, %v990
    %v1003 = vpack.c.bf16 %v993, %v992
    %v1004 = vpack.c.bf16 %v995, %v994
    %v1005 = vpack.c.bf16 %v997, %v996
    %v1006 = vld [vmem:[#allocation8] sm:$0xf]
    %v1007 = vld [vmem:[#allocation2 + $0x1] sm:$0xff]
    %v1008 = vld [vmem:[#allocation2 + $0x11] sm:$0xff]
    %v1009 = vld [vmem:[#allocation2 + $0x21] sm:$0xff]
    %v1010 = vld [vmem:[#allocation2 + $0x31] sm:$0xff]
    %v1011 = vld [vmem:[#allocation2 + $0x41] sm:$0xff]
    %v1012 = vld [vmem:[#allocation2 + $0x51] sm:$0xff]
    %v1013 = vld [vmem:[#allocation2 + $0x61] sm:$0xff]
    %v1014 = vld [vmem:[#allocation2 + $0x71] sm:$0xff]
    %v1015 = vld [vmem:[#allocation2 + $0xa1] sm:$0xff]
    %v1016 = vld [vmem:[#allocation2 + $0xb1] sm:$0xff]
    %v1017 = vld [vmem:[#allocation2 + $0xc1] sm:$0xff]
    %v1018 = vld [vmem:[#allocation2 + $0xd1] sm:$0xff]
    %v1019 = vld [vmem:[#allocation2 + $0xe1] sm:$0xff]
    %v1020 = vld [vmem:[#allocation2 + $0xf1] sm:$0xff]
    %v1021 = vld [vmem:[#allocation2 + $0x101] sm:$0xff]
    %v1022 = vld [vmem:[#allocation2 + $0x111] sm:$0xff]
    %v1023 = vpack.c.bf16 %v1008, %v1007
    %v1024 = vpack.c.bf16 %v1010, %v1009
    %v1025 = vpack.c.bf16 %v1012, %v1011
    %v1026 = vpack.c.bf16 %v1014, %v1013
    %v1027 = vpack.c.bf16 %v1016, %v1015
    %v1028 = vpack.c.bf16 %v1018, %v1017
    %v1029 = vpack.c.bf16 %v1020, %v1019
    %v1030 = vpack.c.bf16 %v1022, %v1021
    %s1031 = scalar_lea.vmem [#allocation8], 4
    %v1032 = vld [vmem:[%s1031] sm:$0xf]
    %v1034 = vsel %vm913, %v1023, 0
    %v1037 = vsel %vm913, %v1024, 0
    %v1040 = vsel %vm913, %v1025, 0
    %v1043 = vsel %vm913, %v1026, 0
    %v1046 = vsel %vm913, %v1027, 0
    %v1049 = vsel %vm913, %v1028, 0
    %v1052 = vsel %vm913, %v1029, 0
    %v1055 = vsel %vm913, %v1030, 0
    %vm1057 = vcmask 1043456
    %v1059 = vsel %vm1057, %v1032, 0
    %1061 = vmatprep.subr.bf16.mxu0 0
    %1062 = vmatpush1.bf16.msra.mxu0 %v1059
    %1063 = vmatprep.subr.bf16.mxu0 0
    %1064 = vmatpush1.bf16.msra.mxu0 0
    %1065 = vmatprep.subr.bf16.mxu0 0
    %1066 = vmatpush1.bf16.msra.mxu0 0
    %1067 = vmatprep.subr.bf16.mxu0 0
    %1068 = vmatpush1.bf16.msra.mxu0 0
    %1069 = vmatprep.subr.bf16.mxu0 0
    %1070 = vmatpush1.bf16.msra.mxu0 0
    %1071 = vmatprep.subr.bf16.mxu0 0
    %1072 = vmatpush1.bf16.msra.mxu0 0
    %1073 = vmatprep.subr.bf16.mxu0 0
    %1074 = vmatpush1.bf16.msra.mxu0 0
    %1075 = vmatprep.subr.bf16.mxu0 0
    %1076 = vmatpush1.bf16.msra.mxu0 0
    %1077 = vmatprep.subr.bf16.mxu0 0
    %1078 = vmatpush1.bf16.msra.mxu0 0
    %1079 = vmatprep.subr.bf16.mxu0 0
    %1080 = vmatpush1.bf16.msra.mxu0 0
    %1081 = vmatprep.subr.bf16.mxu0 0
    %1082 = vmatpush1.bf16.msra.mxu0 0
    %1083 = vmatprep.subr.bf16.mxu0 0
    %1084 = vmatpush1.bf16.msra.mxu0 0
    %1085 = vmatprep.subr.bf16.mxu0 0
    %1086 = vmatpush1.bf16.msra.mxu0 0
    %1087 = vmatprep.subr.bf16.mxu0 0
    %1088 = vmatpush1.bf16.msra.mxu0 0
    %1089 = vmatprep.subr.bf16.mxu0 0
    %1090 = vmatpush1.bf16.msra.mxu0 0
    %1091 = vmatprep.subr.bf16.mxu0 0
    %1092 = vmatpush1.bf16.msra.mxu0 0
    %1093 = vmatprep.mubr.bf16.mxu0 0
    %1094 = vmatmul.mubr.bf16.gmra.mrb[0].mxu0 %v1034
    %v1095 = vpop.f32.mrb[0].mxu0
    %v1096 = vadd.f32 0.0, %v1095
    %v1097 = vpop.f32.mrb[0].mxu0
    %v1098 = vpop.f32.mrb[0].mxu0
    %v1099 = vadd.f32 0.0, %v1098
    %v1100 = vpop.f32.mrb[0].mxu0
    %1101 = vmatprep.mubr.bf16.mxu0 0
    %1102 = vmatmul.mubr.bf16.gmra.mrb[0].mxu0 %v1037
    %v1103 = vpop.f32.mrb[0].mxu0
    %v1104 = vadd.f32 0.0, %v1103
    %v1105 = vpop.f32.mrb[0].mxu0
    %v1106 = vpop.f32.mrb[0].mxu0
    %v1107 = vadd.f32 0.0, %v1106
    %v1108 = vpop.f32.mrb[0].mxu0
    %1109 = vmatprep.mubr.bf16.mxu0 0
    %1110 = vmatmul.mubr.bf16.gmra.mrb[0].mxu0 %v1040
    %v1111 = vpop.f32.mrb[0].mxu0
    %v1112 = vadd.f32 0.0, %v1111
    %v1113 = vpop.f32.mrb[0].mxu0
    %v1114 = vpop.f32.mrb[0].mxu0
    %v1115 = vadd.f32 0.0, %v1114
    %v1116 = vpop.f32.mrb[0].mxu0
    %1117 = vmatprep.mubr.bf16.mxu0 0
    %1118 = vmatmul.mubr.bf16.gmra.mrb[0].mxu0 %v1043
    %v1119 = vpop.f32.mrb[0].mxu0
    %v1120 = vadd.f32 0.0, %v1119
    %v1121 = vpop.f32.mrb[0].mxu0
    %v1122 = vpop.f32.mrb[0].mxu0
    %v1123 = vadd.f32 0.0, %v1122
    %v1124 = vpop.f32.mrb[0].mxu0
    %1125 = vmatprep.mubr.bf16.mxu0 0
    %1126 = vmatmul.mubr.bf16.gmra.mrb[0].mxu0 %v1046
    %v1127 = vpop.f32.mrb[0].mxu0
    %v1128 = vadd.f32 0.0, %v1127
    %v1129 = vpop.f32.mrb[0].mxu0
    %v1130 = vpop.f32.mrb[0].mxu0
    %v1131 = vadd.f32 0.0, %v1130
    %v1132 = vpop.f32.mrb[0].mxu0
    %1133 = vmatprep.mubr.bf16.mxu0 0
    %1134 = vmatmul.mubr.bf16.gmra.mrb[0].mxu0 %v1049
    %v1135 = vpop.f32.mrb[0].mxu0
    %v1136 = vadd.f32 0.0, %v1135
    %v1137 = vpop.f32.mrb[0].mxu0
    %v1138 = vpop.f32.mrb[0].mxu0
    %v1139 = vadd.f32 0.0, %v1138
    %v1140 = vpop.f32.mrb[0].mxu0
    %1141 = vmatprep.mubr.bf16.mxu0 0
    %1142 = vmatmul.mubr.bf16.gmra.mrb[0].mxu0 %v1052
    %v1143 = vpop.f32.mrb[0].mxu0
    %v1144 = vadd.f32 0.0, %v1143
    %v1145 = vpop.f32.mrb[0].mxu0
    %v1146 = vpop.f32.mrb[0].mxu0
    %v1147 = vadd.f32 0.0, %v1146
    %v1148 = vpop.f32.mrb[0].mxu0
    %1149 = vmatprep.mubr.bf16.mxu0 0
    %1150 = vmatmul.mubr.bf16.gmra.mrb[0].mxu0 %v1055
    %v1151 = vpop.f32.mrb[0].mxu0
    %v1152 = vadd.f32 0.0, %v1151
    %v1153 = vpop.f32.mrb[0].mxu0
    %v1154 = vpop.f32.mrb[0].mxu0
    %v1155 = vadd.f32 0.0, %v1154
    %v1156 = vpop.f32.mrb[0].mxu0
    %1157 = vdwg.mxu0
    %v1159 = vsel %vm913, %v998, 0
    %v1162 = vsel %vm913, %v999, 0
    %v1165 = vsel %vm913, %v1000, 0
    %v1168 = vsel %vm913, %v1001, 0
    %v1171 = vsel %vm913, %v1002, 0
    %v1174 = vsel %vm913, %v1003, 0
    %v1177 = vsel %vm913, %v1004, 0
    %v1180 = vsel %vm913, %v1005, 0
    %v1183 = vsel %vm1057, %v1006, 0
    %1185 = vmatprep.subr.bf16.mxu0 0
    %1186 = vmatpush1.bf16.msra.mxu0 %v1183
    %1187 = vmatprep.subr.bf16.mxu0 0
    %1188 = vmatpush1.bf16.msra.mxu0 0
    %1189 = vmatprep.subr.bf16.mxu0 0
    %1190 = vmatpush1.bf16.msra.mxu0 0
    %1191 = vmatprep.subr.bf16.mxu0 0
    %1192 = vmatpush1.bf16.msra.mxu0 0
    %1193 = vmatprep.subr.bf16.mxu0 0
    %1194 = vmatpush1.bf16.msra.mxu0 0
    %1195 = vmatprep.subr.bf16.mxu0 0
    %1196 = vmatpush1.bf16.msra.mxu0 0
    %1197 = vmatprep.subr.bf16.mxu0 0
    %1198 = vmatpush1.bf16.msra.mxu0 0
    %1199 = vmatprep.subr.bf16.mxu0 0
    %1200 = vmatpush1.bf16.msra.mxu0 0
    %1201 = vmatprep.subr.bf16.mxu0 0
    %1202 = vmatpush1.bf16.msra.mxu0 0
    %1203 = vmatprep.subr.bf16.mxu0 0
    %1204 = vmatpush1.bf16.msra.mxu0 0
    %1205 = vmatprep.subr.bf16.mxu0 0
    %1206 = vmatpush1.bf16.msra.mxu0 0
    %1207 = vmatprep.subr.bf16.mxu0 0
    %1208 = vmatpush1.bf16.msra.mxu0 0
    %1209 = vmatprep.subr.bf16.mxu0 0
    %1210 = vmatpush1.bf16.msra.mxu0 0
    %1211 = vmatprep.subr.bf16.mxu0 0
    %1212 = vmatpush1.bf16.msra.mxu0 0
    %1213 = vmatprep.subr.bf16.mxu0 0
    %1214 = vmatpush1.bf16.msra.mxu0 0
    %1215 = vmatprep.subr.bf16.mxu0 0
    %1216 = vmatpush1.bf16.msra.mxu0 0
    %1217 = vmatprep.mubr.bf16.mxu0 0
    %1218 = vmatmul.mubr.bf16.gmra.mrb[0].mxu0 %v1159
    %v1219 = vpop.f32.mrb[0].mxu0
    %v1220 = vadd.f32 %v1096, %v1219
    %v1221 = vpop.f32.mrb[0].mxu0
    %v1222 = vpop.f32.mrb[0].mxu0
    %v1223 = vadd.f32 %v1099, %v1222
    %v1224 = vpop.f32.mrb[0].mxu0
    %1225 = vmatprep.mubr.bf16.mxu0 0
    %1226 = vmatmul.mubr.bf16.gmra.mrb[0].mxu0 %v1162
    %v1227 = vpop.f32.mrb[0].mxu0
    %v1228 = vadd.f32 %v1104, %v1227
    %v1229 = vpop.f32.mrb[0].mxu0
    %v1230 = vpop.f32.mrb[0].mxu0
    %v1231 = vadd.f32 %v1107, %v1230
    %v1232 = vpop.f32.mrb[0].mxu0
    %1233 = vmatprep.mubr.bf16.mxu0 0
    %1234 = vmatmul.mubr.bf16.gmra.mrb[0].mxu0 %v1165
    %v1235 = vpop.f32.mrb[0].mxu0
    %v1236 = vadd.f32 %v1112, %v1235
    %v1237 = vpop.f32.mrb[0].mxu0
    %v1238 = vpop.f32.mrb[0].mxu0
    %v1239 = vadd.f32 %v1115, %v1238
    %v1240 = vpop.f32.mrb[0].mxu0
    %1241 = vmatprep.mubr.bf16.mxu0 0
    %1242 = vmatmul.mubr.bf16.gmra.mrb[0].mxu0 %v1168
    %v1243 = vpop.f32.mrb[0].mxu0
    %v1244 = vadd.f32 %v1120, %v1243
    %v1245 = vpop.f32.mrb[0].mxu0
    %v1246 = vpop.f32.mrb[0].mxu0
    %v1247 = vadd.f32 %v1123, %v1246
    %v1248 = vpop.f32.mrb[0].mxu0
    %1249 = vmatprep.mubr.bf16.mxu0 0
    %1250 = vmatmul.mubr.bf16.gmra.mrb[0].mxu0 %v1171
    %v1251 = vpop.f32.mrb[0].mxu0
    %v1252 = vadd.f32 %v1128, %v1251
    %v1253 = vpop.f32.mrb[0].mxu0
    %v1254 = vpop.f32.mrb[0].mxu0
    %v1255 = vadd.f32 %v1131, %v1254
    %v1256 = vpop.f32.mrb[0].mxu0
    %1257 = vmatprep.mubr.bf16.mxu0 0
    %1258 = vmatmul.mubr.bf16.gmra.mrb[0].mxu0 %v1174
    %v1259 = vpop.f32.mrb[0].mxu0
    %v1260 = vadd.f32 %v1136, %v1259
    %v1261 = vpop.f32.mrb[0].mxu0
    %v1262 = vpop.f32.mrb[0].mxu0
    %v1263 = vadd.f32 %v1139, %v1262
    %v1264 = vpop.f32.mrb[0].mxu0
    %1265 = vmatprep.mubr.bf16.mxu0 0
    %1266 = vmatmul.mubr.bf16.gmra.mrb[0].mxu0 %v1177
    %v1267 = vpop.f32.mrb[0].mxu0
    %v1268 = vadd.f32 %v1144, %v1267
    %v1269 = vpop.f32.mrb[0].mxu0
    %v1270 = vpop.f32.mrb[0].mxu0
    %v1271 = vadd.f32 %v1147, %v1270
    %v1272 = vpop.f32.mrb[0].mxu0
    %1273 = vmatprep.mubr.bf16.mxu0 0
    %1274 = vmatmul.mubr.bf16.gmra.mrb[0].mxu0 %v1180
    %v1275 = vpop.f32.mrb[0].mxu0
    %v1276 = vadd.f32 %v1152, %v1275
    %v1277 = vpop.f32.mrb[0].mxu0
    %v1278 = vpop.f32.mrb[0].mxu0
    %v1279 = vadd.f32 %v1155, %v1278
    %v1280 = vpop.f32.mrb[0].mxu0
    %1281 = vdwg.mxu0
    %v1282 = vld [vmem:[%s965] sm:$0xff]
    %v1283 = vld [vmem:[%s965 + $0x10] sm:$0xff]
    %v1284 = vld [vmem:[%s965 + $0x20] sm:$0xff]
    %v1285 = vld [vmem:[%s965 + $0x30] sm:$0xff]
    %v1286 = vld [vmem:[%s965 + $0x40] sm:$0xff]
    %v1287 = vld [vmem:[%s965 + $0x50] sm:$0xff]
    %v1288 = vld [vmem:[%s965 + $0x60] sm:$0xff]
    %v1289 = vld [vmem:[%s965 + $0x70] sm:$0xff]
    %v1290 = vld [vmem:[%s965 + $0xa0] sm:$0xff]
    %v1291 = vld [vmem:[%s965 + $0xb0] sm:$0xff]
    %v1292 = vld [vmem:[%s965 + $0xc0] sm:$0xff]
    %v1293 = vld [vmem:[%s965 + $0xd0] sm:$0xff]
    %v1294 = vld [vmem:[%s965 + $0xe0] sm:$0xff]
    %v1295 = vld [vmem:[%s965 + $0xf0] sm:$0xff]
    %v1296 = vld [vmem:[%s965 + $0x100] sm:$0xff]
    %v1297 = vld [vmem:[%s965 + $0x110] sm:$0xff]
    %v1298 = vpack.c.bf16 %v1283, %v1282
    %v1299 = vpack.c.bf16 %v1285, %v1284
    %v1300 = vpack.c.bf16 %v1287, %v1286
    %v1301 = vpack.c.bf16 %v1289, %v1288
    %v1302 = vpack.c.bf16 %v1291, %v1290
    %v1303 = vpack.c.bf16 %v1293, %v1292
    %v1304 = vpack.c.bf16 %v1295, %v1294
    %v1305 = vpack.c.bf16 %v1297, %v1296
    %s1306 = scalar_lea.vmem [#allocation8], 8
    %v1307 = vld [vmem:[%s1306] sm:$0xf]
    %v1309 = vsel %vm913, %v1298, 0
    %v1312 = vsel %vm913, %v1299, 0
    %v1315 = vsel %vm913, %v1300, 0
    %v1318 = vsel %vm913, %v1301, 0
    %v1321 = vsel %vm913, %v1302, 0
    %v1324 = vsel %vm913, %v1303, 0
    %v1327 = vsel %vm913, %v1304, 0
    %v1330 = vsel %vm913, %v1305, 0
    %v1333 = vsel %vm1057, %v1307, 0
    %1335 = vmatprep.subr.bf16.mxu0 0
    %1336 = vmatpush1.bf16.msra.mxu0 %v1333
    %1337 = vmatprep.subr.bf16.mxu0 0
    %1338 = vmatpush1.bf16.msra.mxu0 0
    %1339 = vmatprep.subr.bf16.mxu0 0
    %1340 = vmatpush1.bf16.msra.mxu0 0
    %1341 = vmatprep.subr.bf16.mxu0 0
    %1342 = vmatpush1.bf16.msra.mxu0 0
    %1343 = vmatprep.subr.bf16.mxu0 0
    %1344 = vmatpush1.bf16.msra.mxu0 0
    %1345 = vmatprep.subr.bf16.mxu0 0
    %1346 = vmatpush1.bf16.msra.mxu0 0
    %1347 = vmatprep.subr.bf16.mxu0 0
    %1348 = vmatpush1.bf16.msra.mxu0 0
    %1349 = vmatprep.subr.bf16.mxu0 0
    %1350 = vmatpush1.bf16.msra.mxu0 0
    %1351 = vmatprep.subr.bf16.mxu0 0
    %1352 = vmatpush1.bf16.msra.mxu0 0
    %1353 = vmatprep.subr.bf16.mxu0 0
    %1354 = vmatpush1.bf16.msra.mxu0 0
    %1355 = vmatprep.subr.bf16.mxu0 0
    %1356 = vmatpush1.bf16.msra.mxu0 0
    %1357 = vmatprep.subr.bf16.mxu0 0
    %1358 = vmatpush1.bf16.msra.mxu0 0
    %1359 = vmatprep.subr.bf16.mxu0 0
    %1360 = vmatpush1.bf16.msra.mxu0 0
    %1361 = vmatprep.subr.bf16.mxu0 0
    %1362 = vmatpush1.bf16.msra.mxu0 0
    %1363 = vmatprep.subr.bf16.mxu0 0
    %1364 = vmatpush1.bf16.msra.mxu0 0
    %1365 = vmatprep.subr.bf16.mxu0 0
    %1366 = vmatpush1.bf16.msra.mxu0 0
    %1367 = vmatprep.mubr.bf16.mxu0 0
    %1368 = vmatmul.mubr.bf16.gmra.mrb[0].mxu0 %v1309
    %v1369 = vpop.f32.mrb[0].mxu0
    %v1370 = vadd.f32 0.0, %v1369
    %v1371 = vpop.f32.mrb[0].mxu0
    %v1372 = vpop.f32.mrb[0].mxu0
    %v1373 = vadd.f32 0.0, %v1372
    %v1374 = vpop.f32.mrb[0].mxu0
    %1375 = vmatprep.mubr.bf16.mxu0 0
    %1376 = vmatmul.mubr.bf16.gmra.mrb[0].mxu0 %v1312
    %v1377 = vpop.f32.mrb[0].mxu0
    %v1378 = vadd.f32 0.0, %v1377
    %v1379 = vpop.f32.mrb[0].mxu0
    %v1380 = vpop.f32.mrb[0].mxu0
    %v1381 = vadd.f32 0.0, %v1380
    %v1382 = vpop.f32.mrb[0].mxu0
    %1383 = vmatprep.mubr.bf16.mxu0 0
    %1384 = vmatmul.mubr.bf16.gmra.mrb[0].mxu0 %v1315
    %v1385 = vpop.f32.mrb[0].mxu0
    %v1386 = vadd.f32 0.0, %v1385
    %v1387 = vpop.f32.mrb[0].mxu0
    %v1388 = vpop.f32.mrb[0].mxu0
    %v1389 = vadd.f32 0.0, %v1388
    %v1390 = vpop.f32.mrb[0].mxu0
    %1391 = vmatprep.mubr.bf16.mxu0 0
    %1392 = vmatmul.mubr.bf16.gmra.mrb[0].mxu0 %v1318
    %v1393 = vpop.f32.mrb[0].mxu0
    %v1394 = vadd.f32 0.0, %v1393
    %v1395 = vpop.f32.mrb[0].mxu0
    %v1396 = vpop.f32.mrb[0].mxu0
    %v1397 = vadd.f32 0.0, %v1396
    %v1398 = vpop.f32.mrb[0].mxu0
    %1399 = vmatprep.mubr.bf16.mxu0 0
    %1400 = vmatmul.mubr.bf16.gmra.mrb[0].mxu0 %v1321
    %v1401 = vpop.f32.mrb[0].mxu0
    %v1402 = vadd.f32 0.0, %v1401
    %v1403 = vpop.f32.mrb[0].mxu0
    %v1404 = vpop.f32.mrb[0].mxu0
    %v1405 = vadd.f32 0.0, %v1404
    %v1406 = vpop.f32.mrb[0].mxu0
    %1407 = vmatprep.mubr.bf16.mxu0 0
    %1408 = vmatmul.mubr.bf16.gmra.mrb[0].mxu0 %v1324
    %v1409 = vpop.f32.mrb[0].mxu0
    %v1410 = vadd.f32 0.0, %v1409
    %v1411 = vpop.f32.mrb[0].mxu0
    %v1412 = vpop.f32.mrb[0].mxu0
    %v1413 = vadd.f32 0.0, %v1412
    %v1414 = vpop.f32.mrb[0].mxu0
    %1415 = vmatprep.mubr.bf16.mxu0 0
    %1416 = vmatmul.mubr.bf16.gmra.mrb[0].mxu0 %v1327
    %v1417 = vpop.f32.mrb[0].mxu0
    %v1418 = vadd.f32 0.0, %v1417
    %v1419 = vpop.f32.mrb[0].mxu0
    %v1420 = vpop.f32.mrb[0].mxu0
    %v1421 = vadd.f32 0.0, %v1420
    %v1422 = vpop.f32.mrb[0].mxu0
    %1423 = vmatprep.mubr.bf16.mxu0 0
    %1424 = vmatmul.mubr.bf16.gmra.mrb[0].mxu0 %v1330
    %v1425 = vpop.f32.mrb[0].mxu0
    %v1426 = vadd.f32 0.0, %v1425
    %v1427 = vpop.f32.mrb[0].mxu0
    %v1428 = vpop.f32.mrb[0].mxu0
    %v1429 = vadd.f32 0.0, %v1428
    %v1430 = vpop.f32.mrb[0].mxu0
    %1431 = vdwg.mxu0
    %v1432 = vadd.f32 %v1220, %v1370
    %v1433 = vadd.f32 %v1223, %v1373
    %v1434 = vadd.f32 %v1228, %v1378
    %v1435 = vadd.f32 %v1231, %v1381
    %v1436 = vadd.f32 %v1236, %v1386
    %v1437 = vadd.f32 %v1239, %v1389
    %v1438 = vadd.f32 %v1244, %v1394
    %v1439 = vadd.f32 %v1247, %v1397
    %v1440 = vadd.f32 %v1252, %v1402
    %v1441 = vadd.f32 %v1255, %v1405
    %v1442 = vadd.f32 %v1260, %v1410
    %v1443 = vadd.f32 %v1263, %v1413
    %v1444 = vadd.f32 %v1268, %v1418
    %v1445 = vadd.f32 %v1271, %v1421
    %v1446 = vadd.f32 %v1276, %v1426
    %v1447 = vadd.f32 %v1279, %v1429
    %v1448 = vld [vmem:[%s965 + $0x1] sm:$0xff]
    %v1449 = vld [vmem:[%s965 + $0x11] sm:$0xff]
    %v1450 = vld [vmem:[%s965 + $0x21] sm:$0xff]
    %v1451 = vld [vmem:[%s965 + $0x31] sm:$0xff]
    %v1452 = vld [vmem:[%s965 + $0x41] sm:$0xff]
    %v1453 = vld [vmem:[%s965 + $0x51] sm:$0xff]
    %v1454 = vld [vmem:[%s965 + $0x61] sm:$0xff]
    %v1455 = vld [vmem:[%s965 + $0x71] sm:$0xff]
    %v1456 = vld [vmem:[%s965 + $0xa1] sm:$0xff]
    %v1457 = vld [vmem:[%s965 + $0xb1] sm:$0xff]
    %v1458 = vld [vmem:[%s965 + $0xc1] sm:$0xff]
    %v1459 = vld [vmem:[%s965 + $0xd1] sm:$0xff]
    %v1460 = vld [vmem:[%s965 + $0xe1] sm:$0xff]
    %v1461 = vld [vmem:[%s965 + $0xf1] sm:$0xff]
    %v1462 = vld [vmem:[%s965 + $0x101] sm:$0xff]
    %v1463 = vld [vmem:[%s965 + $0x111] sm:$0xff]
    %v1464 = vpack.c.bf16 %v1449, %v1448
    %v1465 = vpack.c.bf16 %v1451, %v1450
    %v1466 = vpack.c.bf16 %v1453, %v1452
    %v1467 = vpack.c.bf16 %v1455, %v1454
    %v1468 = vpack.c.bf16 %v1457, %v1456
    %v1469 = vpack.c.bf16 %v1459, %v1458
    %v1470 = vpack.c.bf16 %v1461, %v1460
    %v1471 = vpack.c.bf16 %v1463, %v1462
    %s1472 = scalar_lea.vmem [#allocation8], 12
    %v1473 = vld [vmem:[%s1472] sm:$0xf]
    %v1475 = vsel %vm913, %v1464, 0
    %v1478 = vsel %vm913, %v1465, 0
    %v1481 = vsel %vm913, %v1466, 0
    %v1484 = vsel %vm913, %v1467, 0
    %v1487 = vsel %vm913, %v1468, 0
    %v1490 = vsel %vm913, %v1469, 0
    %v1493 = vsel %vm913, %v1470, 0
    %v1496 = vsel %vm913, %v1471, 0
    %v1499 = vsel %vm1057, %v1473, 0
    %1501 = vmatprep.subr.bf16.mxu0 0
    %1502 = vmatpush1.bf16.msra.mxu0 %v1499
    %1503 = vmatprep.subr.bf16.mxu0 0
    %1504 = vmatpush1.bf16.msra.mxu0 0
    %1505 = vmatprep.subr.bf16.mxu0 0
    %1506 = vmatpush1.bf16.msra.mxu0 0
    %1507 = vmatprep.subr.bf16.mxu0 0
    %1508 = vmatpush1.bf16.msra.mxu0 0
    %1509 = vmatprep.subr.bf16.mxu0 0
    %1510 = vmatpush1.bf16.msra.mxu0 0
    %1511 = vmatprep.subr.bf16.mxu0 0
    %1512 = vmatpush1.bf16.msra.mxu0 0
    %1513 = vmatprep.subr.bf16.mxu0 0
    %1514 = vmatpush1.bf16.msra.mxu0 0
    %1515 = vmatprep.subr.bf16.mxu0 0
    %1516 = vmatpush1.bf16.msra.mxu0 0
    %1517 = vmatprep.subr.bf16.mxu0 0
    %1518 = vmatpush1.bf16.msra.mxu0 0
    %1519 = vmatprep.subr.bf16.mxu0 0
    %1520 = vmatpush1.bf16.msra.mxu0 0
    %1521 = vmatprep.subr.bf16.mxu0 0
    %1522 = vmatpush1.bf16.msra.mxu0 0
    %1523 = vmatprep.subr.bf16.mxu0 0
    %1524 = vmatpush1.bf16.msra.mxu0 0
    %1525 = vmatprep.subr.bf16.mxu0 0
    %1526 = vmatpush1.bf16.msra.mxu0 0
    %1527 = vmatprep.subr.bf16.mxu0 0
    %1528 = vmatpush1.bf16.msra.mxu0 0
    %1529 = vmatprep.subr.bf16.mxu0 0
    %1530 = vmatpush1.bf16.msra.mxu0 0
    %1531 = vmatprep.subr.bf16.mxu0 0
    %1532 = vmatpush1.bf16.msra.mxu0 0
    %1533 = vmatprep.mubr.bf16.mxu0 0
    %1534 = vmatmul.mubr.bf16.gmra.mrb[0].mxu0 %v1475
    %v1535 = vpop.f32.mrb[0].mxu0
    %v1536 = vadd.f32 0.0, %v1535
    %v1537 = vpop.f32.mrb[0].mxu0
    %v1538 = vpop.f32.mrb[0].mxu0
    %v1539 = vadd.f32 0.0, %v1538
    %v1540 = vpop.f32.mrb[0].mxu0
    %1541 = vmatprep.mubr.bf16.mxu0 0
    %1542 = vmatmul.mubr.bf16.gmra.mrb[0].mxu0 %v1478
    %v1543 = vpop.f32.mrb[0].mxu0
    %v1544 = vadd.f32 0.0, %v1543
    %v1545 = vpop.f32.mrb[0].mxu0
    %v1546 = vpop.f32.mrb[0].mxu0
    %v1547 = vadd.f32 0.0, %v1546
    %v1548 = vpop.f32.mrb[0].mxu0
    %1549 = vmatprep.mubr.bf16.mxu0 0
    %1550 = vmatmul.mubr.bf16.gmra.mrb[0].mxu0 %v1481
    %v1551 = vpop.f32.mrb[0].mxu0
    %v1552 = vadd.f32 0.0, %v1551
    %v1553 = vpop.f32.mrb[0].mxu0
    %v1554 = vpop.f32.mrb[0].mxu0
    %v1555 = vadd.f32 0.0, %v1554
    %v1556 = vpop.f32.mrb[0].mxu0
    %1557 = vmatprep.mubr.bf16.mxu0 0
    %1558 = vmatmul.mubr.bf16.gmra.mrb[0].mxu0 %v1484
    %v1559 = vpop.f32.mrb[0].mxu0
    %v1560 = vadd.f32 0.0, %v1559
    %v1561 = vpop.f32.mrb[0].mxu0
    %v1562 = vpop.f32.mrb[0].mxu0
    %v1563 = vadd.f32 0.0, %v1562
    %v1564 = vpop.f32.mrb[0].mxu0
    %1565 = vmatprep.mubr.bf16.mxu0 0
    %1566 = vmatmul.mubr.bf16.gmra.mrb[0].mxu0 %v1487
    %v1567 = vpop.f32.mrb[0].mxu0
    %v1568 = vadd.f32 0.0, %v1567
    %v1569 = vpop.f32.mrb[0].mxu0
    %v1570 = vpop.f32.mrb[0].mxu0
    %v1571 = vadd.f32 0.0, %v1570
    %v1572 = vpop.f32.mrb[0].mxu0
    %1573 = vmatprep.mubr.bf16.mxu0 0
    %1574 = vmatmul.mubr.bf16.gmra.mrb[0].mxu0 %v1490
    %v1575 = vpop.f32.mrb[0].mxu0
    %v1576 = vadd.f32 0.0, %v1575
    %v1577 = vpop.f32.mrb[0].mxu0
    %v1578 = vpop.f32.mrb[0].mxu0
    %v1579 = vadd.f32 0.0, %v1578
    %v1580 = vpop.f32.mrb[0].mxu0
    %1581 = vmatprep.mubr.bf16.mxu0 0
    %1582 = vmatmul.mubr.bf16.gmra.mrb[0].mxu0 %v1493
    %v1583 = vpop.f32.mrb[0].mxu0
    %v1584 = vadd.f32 0.0, %v1583
    %v1585 = vpop.f32.mrb[0].mxu0
    %v1586 = vpop.f32.mrb[0].mxu0
    %v1587 = vadd.f32 0.0, %v1586
    %v1588 = vpop.f32.mrb[0].mxu0
    %1589 = vmatprep.mubr.bf16.mxu0 0
    %1590 = vmatmul.mubr.bf16.gmra.mrb[0].mxu0 %v1496
    %v1591 = vpop.f32.mrb[0].mxu0
    %v1592 = vadd.f32 0.0, %v1591
    %v1593 = vpop.f32.mrb[0].mxu0
    %v1594 = vpop.f32.mrb[0].mxu0
    %v1595 = vadd.f32 0.0, %v1594
    %v1596 = vpop.f32.mrb[0].mxu0
    %1597 = vdwg.mxu0
    %v1598 = vadd.f32 %v1432, %v1536
    %v1599 = vadd.f32 %v1433, %v1539
    %v1600 = vadd.f32 %v1434, %v1544
    %v1601 = vadd.f32 %v1435, %v1547
    %v1602 = vadd.f32 %v1436, %v1552
    %v1603 = vadd.f32 %v1437, %v1555
    %v1604 = vadd.f32 %v1438, %v1560
    %v1605 = vadd.f32 %v1439, %v1563
    %v1606 = vadd.f32 %v1440, %v1568
    %v1607 = vadd.f32 %v1441, %v1571
    %v1608 = vadd.f32 %v1442, %v1576
    %v1609 = vadd.f32 %v1443, %v1579
    %v1610 = vadd.f32 %v1444, %v1584
    %v1611 = vadd.f32 %v1445, %v1587
    %v1612 = vadd.f32 %v1446, %v1592
    %v1613 = vadd.f32 %v1447, %v1595
    %v1614 = vpack.c.bf16 %v1599, %v1598
    %v1615 = vpack.c.bf16 %v1601, %v1600
    %v1616 = vpack.c.bf16 %v1603, %v1602
    %v1617 = vpack.c.bf16 %v1605, %v1604
    %v1618 = vpack.c.bf16 %v1607, %v1606
    %v1619 = vpack.c.bf16 %v1609, %v1608
    %v1620 = vpack.c.bf16 %v1611, %v1610
    %v1621 = vpack.c.bf16 %v1613, %v1612
    %v1630 = vunpack.c.l.b16 %v1614
    %v1631 = vunpack.c.h.b16 %v1614
    %v1632 = vunpack.c.l.b16 %v1615
    %v1633 = vunpack.c.h.b16 %v1615
    %v1634 = vunpack.c.l.b16 %v1616
    %v1635 = vunpack.c.h.b16 %v1616
    %v1636 = vunpack.c.l.b16 %v1617
    %v1637 = vunpack.c.h.b16 %v1617
    %v1638 = vunpack.c.l.b16 %v1618
    %v1639 = vunpack.c.h.b16 %v1618
    %v1640 = vunpack.c.l.b16 %v1619
    %v1641 = vunpack.c.h.b16 %v1619
    %v1642 = vunpack.c.l.b16 %v1620
    %v1643 = vunpack.c.h.b16 %v1620
    %v1644 = vunpack.c.l.b16 %v1621
    %v1645 = vunpack.c.h.b16 %v1621
    %v1646 = vpack.c.b16 %v1630, %v1630
    %v1647 = vpack.c.b16 %v1631, %v1631
    %v1648 = vpack.c.b16 %v1632, %v1632
    %v1649 = vpack.c.b16 %v1633, %v1633
    %v1650 = vpack.c.b16 %v1634, %v1634
    %v1651 = vpack.c.b16 %v1635, %v1635
    %v1652 = vpack.c.b16 %v1636, %v1636
    %v1653 = vpack.c.b16 %v1637, %v1637
    %v1654 = vpack.c.b16 %v1638, %v1638
    %v1655 = vpack.c.b16 %v1639, %v1639
    %v1656 = vpack.c.b16 %v1640, %v1640
    %v1657 = vpack.c.b16 %v1641, %v1641
    %v1658 = vpack.c.b16 %v1642, %v1642
    %v1659 = vpack.c.b16 %v1643, %v1643
    %v1660 = vpack.c.b16 %v1644, %v1644
    %v1661 = vpack.c.b16 %v1645, %v1645
    %vm1678 = vcmask 27648
    %1679 = vst.msk [vmem:[#allocation9] sm:$0xf] %vm1678, %v1646
    %1680 = vst.msk [vmem:[#allocation9 + $0x4] sm:$0xf] %vm1678, %v1647
    %1681 = vst.msk [vmem:[#allocation9 + $0x8] sm:$0xf] %vm1678, %v1648
    %1682 = vst.msk [vmem:[#allocation9 + $0xc] sm:$0xf] %vm1678, %v1649
    %1683 = vst.msk [vmem:[#allocation9 + $0x10] sm:$0xf] %vm1678, %v1650
    %1684 = vst.msk [vmem:[#allocation9 + $0x14] sm:$0xf] %vm1678, %v1651
    %1685 = vst.msk [vmem:[#allocation9 + $0x18] sm:$0xf] %vm1678, %v1652
    %1686 = vst.msk [vmem:[#allocation9 + $0x1c] sm:$0xf] %vm1678, %v1653
    %1687 = vst.msk [vmem:[#allocation9 + $0x20] sm:$0xf] %vm1678, %v1654
    %1688 = vst.msk [vmem:[#allocation9 + $0x24] sm:$0xf] %vm1678, %v1655
    %1689 = vst.msk [vmem:[#allocation9 + $0x28] sm:$0xf] %vm1678, %v1656
    %1690 = vst.msk [vmem:[#allocation9 + $0x2c] sm:$0xf] %vm1678, %v1657
    %1691 = vst.msk [vmem:[#allocation9 + $0x30] sm:$0xf] %vm1678, %v1658
    %1692 = vst.msk [vmem:[#allocation9 + $0x34] sm:$0xf] %vm1678, %v1659
    %1693 = vst.msk [vmem:[#allocation9 + $0x38] sm:$0xf] %vm1678, %v1660
    %1694 = vst.msk [vmem:[#allocation9 + $0x3c] sm:$0xf] %vm1678, %v1661
    %vm1695 = vcmask 31744
    %v1696 = vsel %vm1695, %v1598, 0.0
    %v1697 = vsel %vm1695, %v1599, 0.0
    %v1698 = vadd.f32 %v1696, %v1697
    %v1699 = vsel %vm1695, %v1600, 0.0
    %v1700 = vadd.f32 %v1698, %v1699
    %v1701 = vsel %vm1695, %v1601, 0.0
    %v1702 = vadd.f32 %v1700, %v1701
    %v1703 = vsel %vm1695, %v1602, 0.0
    %v1704 = vadd.f32 %v1702, %v1703
    %v1705 = vsel %vm1695, %v1603, 0.0
    %v1706 = vadd.f32 %v1704, %v1705
    %v1707 = vsel %vm1695, %v1604, 0.0
    %v1708 = vadd.f32 %v1706, %v1707
    %v1709 = vsel %vm1695, %v1605, 0.0
    %v1710 = vadd.f32 %v1708, %v1709
    %v1711 = vsel %vm1695, %v1606, 0.0
    %v1712 = vadd.f32 %v1710, %v1711
    %v1713 = vsel %vm1695, %v1607, 0.0
    %v1714 = vadd.f32 %v1712, %v1713
    %v1715 = vsel %vm1695, %v1608, 0.0
    %v1716 = vadd.f32 %v1714, %v1715
    %v1717 = vsel %vm1695, %v1609, 0.0
    %v1718 = vadd.f32 %v1716, %v1717
    %v1719 = vsel %vm1695, %v1610, 0.0
    %v1720 = vadd.f32 %v1718, %v1719
    %v1721 = vsel %vm1695, %v1611, 0.0
    %v1722 = vadd.f32 %v1720, %v1721
    %v1723 = vsel %vm1695, %v1612, 0.0
    %v1724 = vadd.f32 %v1722, %v1723
    %v1725 = vsel %vm1695, %v1613, 0.0
    %v1726 = vadd.f32 %v1724, %v1725
    %v1727 = vrot.slane %v1726, 4
    %v1728 = vadd.f32 %v1726, %v1727
    %v1729 = vrot.slane %v1728, 2
    %v1730 = vadd.f32 %v1728, %v1729
    %v1731 = vrot.slane %v1730, 1
    %v1732 = vadd.f32 %v1730, %v1731
    %v1733 = vmul.f32 %v1598, %v1598
    %v1734 = vmul.f32 %v1599, %v1599
    %v1735 = vmul.f32 %v1600, %v1600
    %v1736 = vmul.f32 %v1601, %v1601
    %v1737 = vmul.f32 %v1602, %v1602
    %v1738 = vmul.f32 %v1603, %v1603
    %v1739 = vmul.f32 %v1604, %v1604
    %v1740 = vmul.f32 %v1605, %v1605
    %v1741 = vmul.f32 %v1606, %v1606
    %v1742 = vmul.f32 %v1607, %v1607
    %v1743 = vmul.f32 %v1608, %v1608
    %v1744 = vmul.f32 %v1609, %v1609
    %v1745 = vmul.f32 %v1610, %v1610
    %v1746 = vmul.f32 %v1611, %v1611
    %v1747 = vmul.f32 %v1612, %v1612
    %v1748 = vmul.f32 %v1613, %v1613
    %v1749 = vsel %vm1695, %v1733, 0.0
    %v1750 = vsel %vm1695, %v1734, 0.0
    %v1751 = vadd.f32 %v1749, %v1750
    %v1752 = vsel %vm1695, %v1735, 0.0
    %v1753 = vadd.f32 %v1751, %v1752
    %v1754 = vsel %vm1695, %v1736, 0.0
    %v1755 = vadd.f32 %v1753, %v1754
    %v1756 = vsel %vm1695, %v1737, 0.0
    %v1757 = vadd.f32 %v1755, %v1756
    %v1758 = vsel %vm1695, %v1738, 0.0
    %v1759 = vadd.f32 %v1757, %v1758
    %v1760 = vsel %vm1695, %v1739, 0.0
    %v1761 = vadd.f32 %v1759, %v1760
    %v1762 = vsel %vm1695, %v1740, 0.0
    %v1763 = vadd.f32 %v1761, %v1762
    %v1764 = vsel %vm1695, %v1741, 0.0
    %v1765 = vadd.f32 %v1763, %v1764
    %v1766 = vsel %vm1695, %v1742, 0.0
    %v1767 = vadd.f32 %v1765, %v1766
    %v1768 = vsel %vm1695, %v1743, 0.0
    %v1769 = vadd.f32 %v1767, %v1768
    %v1770 = vsel %vm1695, %v1744, 0.0
    %v1771 = vadd.f32 %v1769, %v1770
    %v1772 = vsel %vm1695, %v1745, 0.0
    %v1773 = vadd.f32 %v1771, %v1772
    %v1774 = vsel %vm1695, %v1746, 0.0
    %v1775 = vadd.f32 %v1773, %v1774
    %v1776 = vsel %vm1695, %v1747, 0.0
    %v1777 = vadd.f32 %v1775, %v1776
    %v1778 = vsel %vm1695, %v1748, 0.0
    %v1779 = vadd.f32 %v1777, %v1778
    %v1780 = vrot.slane %v1779, 4
    %v1781 = vadd.f32 %v1779, %v1780
    %v1782 = vrot.slane %v1781, 2
    %v1783 = vadd.f32 %v1781, %v1782
    %v1784 = vrot.slane %v1783, 1
    %v1785 = vadd.f32 %v1783, %v1784
    %v1786 = vld [vmem:[#allocation2 + $0x1] sm:$0xff]
    %v1787 = vld [vmem:[#allocation2 + $0x11] sm:$0xff]
    %v1788 = vld [vmem:[#allocation2 + $0x21] sm:$0xff]
    %v1789 = vld [vmem:[#allocation2 + $0x31] sm:$0xff]
    %v1790 = vld [vmem:[#allocation2 + $0x41] sm:$0xff]
    %v1791 = vld [vmem:[#allocation2 + $0x51] sm:$0xff]
    %v1792 = vld [vmem:[#allocation2 + $0x61] sm:$0xff]
    %v1793 = vld [vmem:[#allocation2 + $0x71] sm:$0xff]
    %v1794 = vld [vmem:[#allocation2 + $0xa1] sm:$0xff]
    %v1795 = vld [vmem:[#allocation2 + $0xb1] sm:$0xff]
    %v1796 = vld [vmem:[#allocation2 + $0xc1] sm:$0xff]
    %v1797 = vld [vmem:[#allocation2 + $0xd1] sm:$0xff]
    %v1798 = vld [vmem:[#allocation2 + $0xe1] sm:$0xff]
    %v1799 = vld [vmem:[#allocation2 + $0xf1] sm:$0xff]
    %v1800 = vld [vmem:[#allocation2 + $0x101] sm:$0xff]
    %v1801 = vld [vmem:[#allocation2 + $0x111] sm:$0xff]
    %v1802 = vpack.c.bf16 %v1787, %v1786
    %v1803 = vpack.c.bf16 %v1789, %v1788
    %v1804 = vpack.c.bf16 %v1791, %v1790
    %v1805 = vpack.c.bf16 %v1793, %v1792
    %v1806 = vpack.c.bf16 %v1795, %v1794
    %v1807 = vpack.c.bf16 %v1797, %v1796
    %v1808 = vpack.c.bf16 %v1799, %v1798
    %v1809 = vpack.c.bf16 %v1801, %v1800
    %s1810 = scalar_lea.vmem [#allocation8], 16
    %v1811 = vld [vmem:[%s1810] sm:$0xf]
    %v1812 = vld [vmem:[#allocation2 + $0x2] sm:$0xff]
    %v1813 = vld [vmem:[#allocation2 + $0x12] sm:$0xff]
    %v1814 = vld [vmem:[#allocation2 + $0x22] sm:$0xff]
    %v1815 = vld [vmem:[#allocation2 + $0x32] sm:$0xff]
    %v1816 = vld [vmem:[#allocation2 + $0x42] sm:$0xff]
    %v1817 = vld [vmem:[#allocation2 + $0x52] sm:$0xff]
    %v1818 = vld [vmem:[#allocation2 + $0x62] sm:$0xff]
    %v1819 = vld [vmem:[#allocation2 + $0x72] sm:$0xff]
    %v1820 = vld [vmem:[#allocation2 + $0xa2] sm:$0xff]
    %v1821 = vld [vmem:[#allocation2 + $0xb2] sm:$0xff]
    %v1822 = vld [vmem:[#allocation2 + $0xc2] sm:$0xff]
    %v1823 = vld [vmem:[#allocation2 + $0xd2] sm:$0xff]
    %v1824 = vld [vmem:[#allocation2 + $0xe2] sm:$0xff]
    %v1825 = vld [vmem:[#allocation2 + $0xf2] sm:$0xff]
    %v1826 = vld [vmem:[#allocation2 + $0x102] sm:$0xff]
    %v1827 = vld [vmem:[#allocation2 + $0x112] sm:$0xff]
    %v1828 = vpack.c.bf16 %v1813, %v1812
    %v1829 = vpack.c.bf16 %v1815, %v1814
    %v1830 = vpack.c.bf16 %v1817, %v1816
    %v1831 = vpack.c.bf16 %v1819, %v1818
    %v1832 = vpack.c.bf16 %v1821, %v1820
    %v1833 = vpack.c.bf16 %v1823, %v1822
    %v1834 = vpack.c.bf16 %v1825, %v1824
    %v1835 = vpack.c.bf16 %v1827, %v1826
    %s1836 = scalar_lea.vmem [#allocation8], 20
    %v1837 = vld [vmem:[%s1836] sm:$0xf]
    %v1839 = vsel %vm913, %v1828, 0
    %v1842 = vsel %vm913, %v1829, 0
    %v1845 = vsel %vm913, %v1830, 0
    %v1848 = vsel %vm913, %v1831, 0
    %v1851 = vsel %vm913, %v1832, 0
    %v1854 = vsel %vm913, %v1833, 0
    %v1857 = vsel %vm913, %v1834, 0
    %v1860 = vsel %vm913, %v1835, 0
    %v1863 = vsel %vm1057, %v1837, 0
    %1865 = vmatprep.subr.bf16.mxu0 0
    %1866 = vmatpush1.bf16.msra.mxu0 %v1863
    %1867 = vmatprep.subr.bf16.mxu0 0
    %1868 = vmatpush1.bf16.msra.mxu0 0
    %1869 = vmatprep.subr.bf16.mxu0 0
    %1870 = vmatpush1.bf16.msra.mxu0 0
    %1871 = vmatprep.subr.bf16.mxu0 0
    %1872 = vmatpush1.bf16.msra.mxu0 0
    %1873 = vmatprep.subr.bf16.mxu0 0
    %1874 = vmatpush1.bf16.msra.mxu0 0
    %1875 = vmatprep.subr.bf16.mxu0 0
    %1876 = vmatpush1.bf16.msra.mxu0 0
    %1877 = vmatprep.subr.bf16.mxu0 0
    %1878 = vmatpush1.bf16.msra.mxu0 0
    %1879 = vmatprep.subr.bf16.mxu0 0
    %1880 = vmatpush1.bf16.msra.mxu0 0
    %1881 = vmatprep.subr.bf16.mxu0 0
    %1882 = vmatpush1.bf16.msra.mxu0 0
    %1883 = vmatprep.subr.bf16.mxu0 0
    %1884 = vmatpush1.bf16.msra.mxu0 0
    %1885 = vmatprep.subr.bf16.mxu0 0
    %1886 = vmatpush1.bf16.msra.mxu0 0
    %1887 = vmatprep.subr.bf16.mxu0 0
    %1888 = vmatpush1.bf16.msra.mxu0 0
    %1889 = vmatprep.subr.bf16.mxu0 0
    %1890 = vmatpush1.bf16.msra.mxu0 0
    %1891 = vmatprep.subr.bf16.mxu0 0
    %1892 = vmatpush1.bf16.msra.mxu0 0
    %1893 = vmatprep.subr.bf16.mxu0 0
    %1894 = vmatpush1.bf16.msra.mxu0 0
    %1895 = vmatprep.subr.bf16.mxu0 0
    %1896 = vmatpush1.bf16.msra.mxu0 0
    %1897 = vmatprep.mubr.bf16.mxu0 0
    %1898 = vmatmul.mubr.bf16.gmra.mrb[0].mxu0 %v1839
    %v1899 = vpop.f32.mrb[0].mxu0
    %v1900 = vadd.f32 0.0, %v1899
    %v1901 = vpop.f32.mrb[0].mxu0
    %v1902 = vpop.f32.mrb[0].mxu0
    %v1903 = vadd.f32 0.0, %v1902
    %v1904 = vpop.f32.mrb[0].mxu0
    %1905 = vmatprep.mubr.bf16.mxu0 0
    %1906 = vmatmul.mubr.bf16.gmra.mrb[0].mxu0 %v1842
    %v1907 = vpop.f32.mrb[0].mxu0
    %v1908 = vadd.f32 0.0, %v1907
    %v1909 = vpop.f32.mrb[0].mxu0
    %v1910 = vpop.f32.mrb[0].mxu0
    %v1911 = vadd.f32 0.0, %v1910
    %v1912 = vpop.f32.mrb[0].mxu0
    %1913 = vmatprep.mubr.bf16.mxu0 0
    %1914 = vmatmul.mubr.bf16.gmra.mrb[0].mxu0 %v1845
    %v1915 = vpop.f32.mrb[0].mxu0
    %v1916 = vadd.f32 0.0, %v1915
    %v1917 = vpop.f32.mrb[0].mxu0
    %v1918 = vpop.f32.mrb[0].mxu0
    %v1919 = vadd.f32 0.0, %v1918
    %v1920 = vpop.f32.mrb[0].mxu0
    %1921 = vmatprep.mubr.bf16.mxu0 0
    %1922 = vmatmul.mubr.bf16.gmra.mrb[0].mxu0 %v1848
    %v1923 = vpop.f32.mrb[0].mxu0
    %v1924 = vadd.f32 0.0, %v1923
    %v1925 = vpop.f32.mrb[0].mxu0
    %v1926 = vpop.f32.mrb[0].mxu0
    %v1927 = vadd.f32 0.0, %v1926
    %v1928 = vpop.f32.mrb[0].mxu0
    %1929 = vmatprep.mubr.bf16.mxu0 0
    %1930 = vmatmul.mubr.bf16.gmra.mrb[0].mxu0 %v1851
    %v1931 = vpop.f32.mrb[0].mxu0
    %v1932 = vadd.f32 0.0, %v1931
    %v1933 = vpop.f32.mrb[0].mxu0
    %v1934 = vpop.f32.mrb[0].mxu0
    %v1935 = vadd.f32 0.0, %v1934
    %v1936 = vpop.f32.mrb[0].mxu0
    %1937 = vmatprep.mubr.bf16.mxu0 0
    %1938 = vmatmul.mubr.bf16.gmra.mrb[0].mxu0 %v1854
    %v1939 = vpop.f32.mrb[0].mxu0
    %v1940 = vadd.f32 0.0, %v1939
    %v1941 = vpop.f32.mrb[0].mxu0
    %v1942 = vpop.f32.mrb[0].mxu0
    %v1943 = vadd.f32 0.0, %v1942
    %v1944 = vpop.f32.mrb[0].mxu0
    %1945 = vmatprep.mubr.bf16.mxu0 0
    %1946 = vmatmul.mubr.bf16.gmra.mrb[0].mxu0 %v1857
    %v1947 = vpop.f32.mrb[0].mxu0
    %v1948 = vadd.f32 0.0, %v1947
    %v1949 = vpop.f32.mrb[0].mxu0
    %v1950 = vpop.f32.mrb[0].mxu0
    %v1951 = vadd.f32 0.0, %v1950
    %v1952 = vpop.f32.mrb[0].mxu0
    %1953 = vmatprep.mubr.bf16.mxu0 0
    %1954 = vmatmul.mubr.bf16.gmra.mrb[0].mxu0 %v1860
    %v1955 = vpop.f32.mrb[0].mxu0
    %v1956 = vadd.f32 0.0, %v1955
    %v1957 = vpop.f32.mrb[0].mxu0
    %v1958 = vpop.f32.mrb[0].mxu0
    %v1959 = vadd.f32 0.0, %v1958
    %v1960 = vpop.f32.mrb[0].mxu0
    %1961 = vdwg.mxu0
    %v1963 = vsel %vm913, %v1802, 0
    %v1966 = vsel %vm913, %v1803, 0
    %v1969 = vsel %vm913, %v1804, 0
    %v1972 = vsel %vm913, %v1805, 0
    %v1975 = vsel %vm913, %v1806, 0
    %v1978 = vsel %vm913, %v1807, 0
    %v1981 = vsel %vm913, %v1808, 0
    %v1984 = vsel %vm913, %v1809, 0
    %v1987 = vsel %vm1057, %v1811, 0
    %1989 = vmatprep.subr.bf16.mxu0 0
    %1990 = vmatpush1.bf16.msra.mxu0 %v1987
    %1991 = vmatprep.subr.bf16.mxu0 0
    %1992 = vmatpush1.bf16.msra.mxu0 0
    %1993 = vmatprep.subr.bf16.mxu0 0
    %1994 = vmatpush1.bf16.msra.mxu0 0
    %1995 = vmatprep.subr.bf16.mxu0 0
    %1996 = vmatpush1.bf16.msra.mxu0 0
    %1997 = vmatprep.subr.bf16.mxu0 0
    %1998 = vmatpush1.bf16.msra.mxu0 0
    %1999 = vmatprep.subr.bf16.mxu0 0
    %2000 = vmatpush1.bf16.msra.mxu0 0
    %2001 = vmatprep.subr.bf16.mxu0 0
    %2002 = vmatpush1.bf16.msra.mxu0 0
    %2003 = vmatprep.subr.bf16.mxu0 0
    %2004 = vmatpush1.bf16.msra.mxu0 0
    %2005 = vmatprep.subr.bf16.mxu0 0
    %2006 = vmatpush1.bf16.msra.mxu0 0
    %2007 = vmatprep.subr.bf16.mxu0 0
    %2008 = vmatpush1.bf16.msra.mxu0 0
    %2009 = vmatprep.subr.bf16.mxu0 0
    %2010 = vmatpush1.bf16.msra.mxu0 0
    %2011 = vmatprep.subr.bf16.mxu0 0
    %2012 = vmatpush1.bf16.msra.mxu0 0
    %2013 = vmatprep.subr.bf16.mxu0 0
    %2014 = vmatpush1.bf16.msra.mxu0 0
    %2015 = vmatprep.subr.bf16.mxu0 0
    %2016 = vmatpush1.bf16.msra.mxu0 0
    %2017 = vmatprep.subr.bf16.mxu0 0
    %2018 = vmatpush1.bf16.msra.mxu0 0
    %2019 = vmatprep.subr.bf16.mxu0 0
    %2020 = vmatpush1.bf16.msra.mxu0 0
    %2021 = vmatprep.mubr.bf16.mxu0 0
    %2022 = vmatmul.mubr.bf16.gmra.mrb[0].mxu0 %v1963
    %v2023 = vpop.f32.mrb[0].mxu0
    %v2024 = vadd.f32 %v1900, %v2023
    %v2025 = vpop.f32.mrb[0].mxu0
    %v2026 = vpop.f32.mrb[0].mxu0
    %v2027 = vadd.f32 %v1903, %v2026
    %v2028 = vpop.f32.mrb[0].mxu0
    %2029 = vmatprep.mubr.bf16.mxu0 0
    %2030 = vmatmul.mubr.bf16.gmra.mrb[0].mxu0 %v1966
    %v2031 = vpop.f32.mrb[0].mxu0
    %v2032 = vadd.f32 %v1908, %v2031
    %v2033 = vpop.f32.mrb[0].mxu0
    %v2034 = vpop.f32.mrb[0].mxu0
    %v2035 = vadd.f32 %v1911, %v2034
    %v2036 = vpop.f32.mrb[0].mxu0
    %2037 = vmatprep.mubr.bf16.mxu0 0
    %2038 = vmatmul.mubr.bf16.gmra.mrb[0].mxu0 %v1969
    %v2039 = vpop.f32.mrb[0].mxu0
    %v2040 = vadd.f32 %v1916, %v2039
    %v2041 = vpop.f32.mrb[0].mxu0
    %v2042 = vpop.f32.mrb[0].mxu0
    %v2043 = vadd.f32 %v1919, %v2042
    %v2044 = vpop.f32.mrb[0].mxu0
    %2045 = vmatprep.mubr.bf16.mxu0 0
    %2046 = vmatmul.mubr.bf16.gmra.mrb[0].mxu0 %v1972
    %v2047 = vpop.f32.mrb[0].mxu0
    %v2048 = vadd.f32 %v1924, %v2047
    %v2049 = vpop.f32.mrb[0].mxu0
    %v2050 = vpop.f32.mrb[0].mxu0
    %v2051 = vadd.f32 %v1927, %v2050
    %v2052 = vpop.f32.mrb[0].mxu0
    %2053 = vmatprep.mubr.bf16.mxu0 0
    %2054 = vmatmul.mubr.bf16.gmra.mrb[0].mxu0 %v1975
    %v2055 = vpop.f32.mrb[0].mxu0
    %v2056 = vadd.f32 %v1932, %v2055
    %v2057 = vpop.f32.mrb[0].mxu0
    %v2058 = vpop.f32.mrb[0].mxu0
    %v2059 = vadd.f32 %v1935, %v2058
    %v2060 = vpop.f32.mrb[0].mxu0
    %2061 = vmatprep.mubr.bf16.mxu0 0
    %2062 = vmatmul.mubr.bf16.gmra.mrb[0].mxu0 %v1978
    %v2063 = vpop.f32.mrb[0].mxu0
    %v2064 = vadd.f32 %v1940, %v2063
    %v2065 = vpop.f32.mrb[0].mxu0
    %v2066 = vpop.f32.mrb[0].mxu0
    %v2067 = vadd.f32 %v1943, %v2066
    %v2068 = vpop.f32.mrb[0].mxu0
    %2069 = vmatprep.mubr.bf16.mxu0 0
    %2070 = vmatmul.mubr.bf16.gmra.mrb[0].mxu0 %v1981
    %v2071 = vpop.f32.mrb[0].mxu0
    %v2072 = vadd.f32 %v1948, %v2071
    %v2073 = vpop.f32.mrb[0].mxu0
    %v2074 = vpop.f32.mrb[0].mxu0
    %v2075 = vadd.f32 %v1951, %v2074
    %v2076 = vpop.f32.mrb[0].mxu0
    %2077 = vmatprep.mubr.bf16.mxu0 0
    %2078 = vmatmul.mubr.bf16.gmra.mrb[0].mxu0 %v1984
    %v2079 = vpop.f32.mrb[0].mxu0
    %v2080 = vadd.f32 %v1956, %v2079
    %v2081 = vpop.f32.mrb[0].mxu0
    %v2082 = vpop.f32.mrb[0].mxu0
    %v2083 = vadd.f32 %v1959, %v2082
    %v2084 = vpop.f32.mrb[0].mxu0
    %2085 = vdwg.mxu0
    %v2086 = vld [vmem:[%s965 + $0x1] sm:$0xff]
    %v2087 = vld [vmem:[%s965 + $0x11] sm:$0xff]
    %v2088 = vld [vmem:[%s965 + $0x21] sm:$0xff]
    %v2089 = vld [vmem:[%s965 + $0x31] sm:$0xff]
    %v2090 = vld [vmem:[%s965 + $0x41] sm:$0xff]
    %v2091 = vld [vmem:[%s965 + $0x51] sm:$0xff]
    %v2092 = vld [vmem:[%s965 + $0x61] sm:$0xff]
    %v2093 = vld [vmem:[%s965 + $0x71] sm:$0xff]
    %v2094 = vld [vmem:[%s965 + $0xa1] sm:$0xff]
    %v2095 = vld [vmem:[%s965 + $0xb1] sm:$0xff]
    %v2096 = vld [vmem:[%s965 + $0xc1] sm:$0xff]
    %v2097 = vld [vmem:[%s965 + $0xd1] sm:$0xff]
    %v2098 = vld [vmem:[%s965 + $0xe1] sm:$0xff]
    %v2099 = vld [vmem:[%s965 + $0xf1] sm:$0xff]
    %v2100 = vld [vmem:[%s965 + $0x101] sm:$0xff]
    %v2101 = vld [vmem:[%s965 + $0x111] sm:$0xff]
    %v2102 = vpack.c.bf16 %v2087, %v2086
    %v2103 = vpack.c.bf16 %v2089, %v2088
    %v2104 = vpack.c.bf16 %v2091, %v2090
    %v2105 = vpack.c.bf16 %v2093, %v2092
    %v2106 = vpack.c.bf16 %v2095, %v2094
    %v2107 = vpack.c.bf16 %v2097, %v2096
    %v2108 = vpack.c.bf16 %v2099, %v2098
    %v2109 = vpack.c.bf16 %v2101, %v2100
    %s2110 = scalar_lea.vmem [#allocation8], 24
    %v2111 = vld [vmem:[%s2110] sm:$0xf]
    %v2113 = vsel %vm913, %v2102, 0
    %v2116 = vsel %vm913, %v2103, 0
    %v2119 = vsel %vm913, %v2104, 0
    %v2122 = vsel %vm913, %v2105, 0
    %v2125 = vsel %vm913, %v2106, 0
    %v2128 = vsel %vm913, %v2107, 0
    %v2131 = vsel %vm913, %v2108, 0
    %v2134 = vsel %vm913, %v2109, 0
    %v2137 = vsel %vm1057, %v2111, 0
    %2139 = vmatprep.subr.bf16.mxu0 0
    %2140 = vmatpush1.bf16.msra.mxu0 %v2137
    %2141 = vmatprep.subr.bf16.mxu0 0
    %2142 = vmatpush1.bf16.msra.mxu0 0
    %2143 = vmatprep.subr.bf16.mxu0 0
    %2144 = vmatpush1.bf16.msra.mxu0 0
    %2145 = vmatprep.subr.bf16.mxu0 0
    %2146 = vmatpush1.bf16.msra.mxu0 0
    %2147 = vmatprep.subr.bf16.mxu0 0
    %2148 = vmatpush1.bf16.msra.mxu0 0
    %2149 = vmatprep.subr.bf16.mxu0 0
    %2150 = vmatpush1.bf16.msra.mxu0 0
    %2151 = vmatprep.subr.bf16.mxu0 0
    %2152 = vmatpush1.bf16.msra.mxu0 0
    %2153 = vmatprep.subr.bf16.mxu0 0
    %2154 = vmatpush1.bf16.msra.mxu0 0
    %2155 = vmatprep.subr.bf16.mxu0 0
    %2156 = vmatpush1.bf16.msra.mxu0 0
    %2157 = vmatprep.subr.bf16.mxu0 0
    %2158 = vmatpush1.bf16.msra.mxu0 0
    %2159 = vmatprep.subr.bf16.mxu0 0
    %2160 = vmatpush1.bf16.msra.mxu0 0
    %2161 = vmatprep.subr.bf16.mxu0 0
    %2162 = vmatpush1.bf16.msra.mxu0 0
    %2163 = vmatprep.subr.bf16.mxu0 0
    %2164 = vmatpush1.bf16.msra.mxu0 0
    %2165 = vmatprep.subr.bf16.mxu0 0
    %2166 = vmatpush1.bf16.msra.mxu0 0
    %2167 = vmatprep.subr.bf16.mxu0 0
    %2168 = vmatpush1.bf16.msra.mxu0 0
    %2169 = vmatprep.subr.bf16.mxu0 0
    %2170 = vmatpush1.bf16.msra.mxu0 0
    %2171 = vmatprep.mubr.bf16.mxu0 0
    %2172 = vmatmul.mubr.bf16.gmra.mrb[0].mxu0 %v2113
    %v2173 = vpop.f32.mrb[0].mxu0
    %v2174 = vadd.f32 0.0, %v2173
    %v2175 = vpop.f32.mrb[0].mxu0
    %v2176 = vpop.f32.mrb[0].mxu0
    %v2177 = vadd.f32 0.0, %v2176
    %v2178 = vpop.f32.mrb[0].mxu0
    %2179 = vmatprep.mubr.bf16.mxu0 0
    %2180 = vmatmul.mubr.bf16.gmra.mrb[0].mxu0 %v2116
    %v2181 = vpop.f32.mrb[0].mxu0
    %v2182 = vadd.f32 0.0, %v2181
    %v2183 = vpop.f32.mrb[0].mxu0
    %v2184 = vpop.f32.mrb[0].mxu0
    %v2185 = vadd.f32 0.0, %v2184
    %v2186 = vpop.f32.mrb[0].mxu0
    %2187 = vmatprep.mubr.bf16.mxu0 0
    %2188 = vmatmul.mubr.bf16.gmra.mrb[0].mxu0 %v2119
    %v2189 = vpop.f32.mrb[0].mxu0
    %v2190 = vadd.f32 0.0, %v2189
    %v2191 = vpop.f32.mrb[0].mxu0
    %v2192 = vpop.f32.mrb[0].mxu0
    %v2193 = vadd.f32 0.0, %v2192
    %v2194 = vpop.f32.mrb[0].mxu0
    %2195 = vmatprep.mubr.bf16.mxu0 0
    %2196 = vmatmul.mubr.bf16.gmra.mrb[0].mxu0 %v2122
    %v2197 = vpop.f32.mrb[0].mxu0
    %v2198 = vadd.f32 0.0, %v2197
    %v2199 = vpop.f32.mrb[0].mxu0
    %v2200 = vpop.f32.mrb[0].mxu0
    %v2201 = vadd.f32 0.0, %v2200
    %v2202 = vpop.f32.mrb[0].mxu0
    %2203 = vmatprep.mubr.bf16.mxu0 0
    %2204 = vmatmul.mubr.bf16.gmra.mrb[0].mxu0 %v2125
    %v2205 = vpop.f32.mrb[0].mxu0
    %v2206 = vadd.f32 0.0, %v2205
    %v2207 = vpop.f32.mrb[0].mxu0
    %v2208 = vpop.f32.mrb[0].mxu0
    %v2209 = vadd.f32 0.0, %v2208
    %v2210 = vpop.f32.mrb[0].mxu0
    %2211 = vmatprep.mubr.bf16.mxu0 0
    %2212 = vmatmul.mubr.bf16.gmra.mrb[0].mxu0 %v2128
    %v2213 = vpop.f32.mrb[0].mxu0
    %v2214 = vadd.f32 0.0, %v2213
    %v2215 = vpop.f32.mrb[0].mxu0
    %v2216 = vpop.f32.mrb[0].mxu0
    %v2217 = vadd.f32 0.0, %v2216
    %v2218 = vpop.f32.mrb[0].mxu0
    %2219 = vmatprep.mubr.bf16.mxu0 0
    %2220 = vmatmul.mubr.bf16.gmra.mrb[0].mxu0 %v2131
    %v2221 = vpop.f32.mrb[0].mxu0
    %v2222 = vadd.f32 0.0, %v2221
    %v2223 = vpop.f32.mrb[0].mxu0
    %v2224 = vpop.f32.mrb[0].mxu0
    %v2225 = vadd.f32 0.0, %v2224
    %v2226 = vpop.f32.mrb[0].mxu0
    %2227 = vmatprep.mubr.bf16.mxu0 0
    %2228 = vmatmul.mubr.bf16.gmra.mrb[0].mxu0 %v2134
    %v2229 = vpop.f32.mrb[0].mxu0
    %v2230 = vadd.f32 0.0, %v2229
    %v2231 = vpop.f32.mrb[0].mxu0
    %v2232 = vpop.f32.mrb[0].mxu0
    %v2233 = vadd.f32 0.0, %v2232
    %v2234 = vpop.f32.mrb[0].mxu0
    %2235 = vdwg.mxu0
    %v2236 = vadd.f32 %v2024, %v2174
    %v2237 = vadd.f32 %v2027, %v2177
    %v2238 = vadd.f32 %v2032, %v2182
    %v2239 = vadd.f32 %v2035, %v2185
    %v2240 = vadd.f32 %v2040, %v2190
    %v2241 = vadd.f32 %v2043, %v2193
    %v2242 = vadd.f32 %v2048, %v2198
    %v2243 = vadd.f32 %v2051, %v2201
    %v2244 = vadd.f32 %v2056, %v2206
    %v2245 = vadd.f32 %v2059, %v2209
    %v2246 = vadd.f32 %v2064, %v2214
    %v2247 = vadd.f32 %v2067, %v2217
    %v2248 = vadd.f32 %v2072, %v2222
    %v2249 = vadd.f32 %v2075, %v2225
    %v2250 = vadd.f32 %v2080, %v2230
    %v2251 = vadd.f32 %v2083, %v2233
    %v2252 = vld [vmem:[%s965 + $0x2] sm:$0xff]
    %v2253 = vld [vmem:[%s965 + $0x12] sm:$0xff]
    %v2254 = vld [vmem:[%s965 + $0x22] sm:$0xff]
    %v2255 = vld [vmem:[%s965 + $0x32] sm:$0xff]
    %v2256 = vld [vmem:[%s965 + $0x42] sm:$0xff]
    %v2257 = vld [vmem:[%s965 + $0x52] sm:$0xff]
    %v2258 = vld [vmem:[%s965 + $0x62] sm:$0xff]
    %v2259 = vld [vmem:[%s965 + $0x72] sm:$0xff]
    %v2260 = vld [vmem:[%s965 + $0xa2] sm:$0xff]
    %v2261 = vld [vmem:[%s965 + $0xb2] sm:$0xff]
    %v2262 = vld [vmem:[%s965 + $0xc2] sm:$0xff]
    %v2263 = vld [vmem:[%s965 + $0xd2] sm:$0xff]
    %v2264 = vld [vmem:[%s965 + $0xe2] sm:$0xff]
    %v2265 = vld [vmem:[%s965 + $0xf2] sm:$0xff]
    %v2266 = vld [vmem:[%s965 + $0x102] sm:$0xff]
    %v2267 = vld [vmem:[%s965 + $0x112] sm:$0xff]
    %v2268 = vpack.c.bf16 %v2253, %v2252
    %v2269 = vpack.c.bf16 %v2255, %v2254
    %v2270 = vpack.c.bf16 %v2257, %v2256
    %v2271 = vpack.c.bf16 %v2259, %v2258
    %v2272 = vpack.c.bf16 %v2261, %v2260
    %v2273 = vpack.c.bf16 %v2263, %v2262
    %v2274 = vpack.c.bf16 %v2265, %v2264
    %v2275 = vpack.c.bf16 %v2267, %v2266
    %s2276 = scalar_lea.vmem [#allocation8], 28
    %v2277 = vld [vmem:[%s2276] sm:$0xf]
    %v2279 = vsel %vm913, %v2268, 0
    %v2282 = vsel %vm913, %v2269, 0
    %v2285 = vsel %vm913, %v2270, 0
    %v2288 = vsel %vm913, %v2271, 0
    %v2291 = vsel %vm913, %v2272, 0
    %v2294 = vsel %vm913, %v2273, 0
    %v2297 = vsel %vm913, %v2274, 0
    %v2300 = vsel %vm913, %v2275, 0
    %v2303 = vsel %vm1057, %v2277, 0
    %2305 = vmatprep.subr.bf16.mxu0 0
    %2306 = vmatpush1.bf16.msra.mxu0 %v2303
    %2307 = vmatprep.subr.bf16.mxu0 0
    %2308 = vmatpush1.bf16.msra.mxu0 0
    %2309 = vmatprep.subr.bf16.mxu0 0
    %2310 = vmatpush1.bf16.msra.mxu0 0
    %2311 = vmatprep.subr.bf16.mxu0 0
    %2312 = vmatpush1.bf16.msra.mxu0 0
    %2313 = vmatprep.subr.bf16.mxu0 0
    %2314 = vmatpush1.bf16.msra.mxu0 0
    %2315 = vmatprep.subr.bf16.mxu0 0
    %2316 = vmatpush1.bf16.msra.mxu0 0
    %2317 = vmatprep.subr.bf16.mxu0 0
    %2318 = vmatpush1.bf16.msra.mxu0 0
    %2319 = vmatprep.subr.bf16.mxu0 0
    %2320 = vmatpush1.bf16.msra.mxu0 0
    %2321 = vmatprep.subr.bf16.mxu0 0
    %2322 = vmatpush1.bf16.msra.mxu0 0
    %2323 = vmatprep.subr.bf16.mxu0 0
    %2324 = vmatpush1.bf16.msra.mxu0 0
    %2325 = vmatprep.subr.bf16.mxu0 0
    %2326 = vmatpush1.bf16.msra.mxu0 0
    %2327 = vmatprep.subr.bf16.mxu0 0
    %2328 = vmatpush1.bf16.msra.mxu0 0
    %2329 = vmatprep.subr.bf16.mxu0 0
    %2330 = vmatpush1.bf16.msra.mxu0 0
    %2331 = vmatprep.subr.bf16.mxu0 0
    %2332 = vmatpush1.bf16.msra.mxu0 0
    %2333 = vmatprep.subr.bf16.mxu0 0
    %2334 = vmatpush1.bf16.msra.mxu0 0
    %2335 = vmatprep.subr.bf16.mxu0 0
    %2336 = vmatpush1.bf16.msra.mxu0 0
    %2337 = vmatprep.mubr.bf16.mxu0 0
    %2338 = vmatmul.mubr.bf16.gmra.mrb[0].mxu0 %v2279
    %v2339 = vpop.f32.mrb[0].mxu0
    %v2340 = vadd.f32 0.0, %v2339
    %v2341 = vpop.f32.mrb[0].mxu0
    %v2342 = vpop.f32.mrb[0].mxu0
    %v2343 = vadd.f32 0.0, %v2342
    %v2344 = vpop.f32.mrb[0].mxu0
    %2345 = vmatprep.mubr.bf16.mxu0 0
    %2346 = vmatmul.mubr.bf16.gmra.mrb[0].mxu0 %v2282
    %v2347 = vpop.f32.mrb[0].mxu0
    %v2348 = vadd.f32 0.0, %v2347
    %v2349 = vpop.f32.mrb[0].mxu0
    %v2350 = vpop.f32.mrb[0].mxu0
    %v2351 = vadd.f32 0.0, %v2350
    %v2352 = vpop.f32.mrb[0].mxu0
    %2353 = vmatprep.mubr.bf16.mxu0 0
    %2354 = vmatmul.mubr.bf16.gmra.mrb[0].mxu0 %v2285
    %v2355 = vpop.f32.mrb[0].mxu0
    %v2356 = vadd.f32 0.0, %v2355
    %v2357 = vpop.f32.mrb[0].mxu0
    %v2358 = vpop.f32.mrb[0].mxu0
    %v2359 = vadd.f32 0.0, %v2358
    %v2360 = vpop.f32.mrb[0].mxu0
    %2361 = vmatprep.mubr.bf16.mxu0 0
    %2362 = vmatmul.mubr.bf16.gmra.mrb[0].mxu0 %v2288
    %v2363 = vpop.f32.mrb[0].mxu0
    %v2364 = vadd.f32 0.0, %v2363
    %v2365 = vpop.f32.mrb[0].mxu0
    %v2366 = vpop.f32.mrb[0].mxu0
    %v2367 = vadd.f32 0.0, %v2366
    %v2368 = vpop.f32.mrb[0].mxu0
    %2369 = vmatprep.mubr.bf16.mxu0 0
    %2370 = vmatmul.mubr.bf16.gmra.mrb[0].mxu0 %v2291
    %v2371 = vpop.f32.mrb[0].mxu0
    %v2372 = vadd.f32 0.0, %v2371
    %v2373 = vpop.f32.mrb[0].mxu0
    %v2374 = vpop.f32.mrb[0].mxu0
    %v2375 = vadd.f32 0.0, %v2374
    %v2376 = vpop.f32.mrb[0].mxu0
    %2377 = vmatprep.mubr.bf16.mxu0 0
    %2378 = vmatmul.mubr.bf16.gmra.mrb[0].mxu0 %v2294
    %v2379 = vpop.f32.mrb[0].mxu0
    %v2380 = vadd.f32 0.0, %v2379
    %v2381 = vpop.f32.mrb[0].mxu0
    %v2382 = vpop.f32.mrb[0].mxu0
    %v2383 = vadd.f32 0.0, %v2382
    %v2384 = vpop.f32.mrb[0].mxu0
    %2385 = vmatprep.mubr.bf16.mxu0 0
    %2386 = vmatmul.mubr.bf16.gmra.mrb[0].mxu0 %v2297
    %v2387 = vpop.f32.mrb[0].mxu0
    %v2388 = vadd.f32 0.0, %v2387
    %v2389 = vpop.f32.mrb[0].mxu0
    %v2390 = vpop.f32.mrb[0].mxu0
    %v2391 = vadd.f32 0.0, %v2390
    %v2392 = vpop.f32.mrb[0].mxu0
    %2393 = vmatprep.mubr.bf16.mxu0 0
    %2394 = vmatmul.mubr.bf16.gmra.mrb[0].mxu0 %v2300
    %v2395 = vpop.f32.mrb[0].mxu0
    %v2396 = vadd.f32 0.0, %v2395
    %v2397 = vpop.f32.mrb[0].mxu0
    %v2398 = vpop.f32.mrb[0].mxu0
    %v2399 = vadd.f32 0.0, %v2398
    %v2400 = vpop.f32.mrb[0].mxu0
    %2401 = vdwg.mxu0
    %v2402 = vadd.f32 %v2236, %v2340
    %v2403 = vadd.f32 %v2237, %v2343
    %v2404 = vadd.f32 %v2238, %v2348
    %v2405 = vadd.f32 %v2239, %v2351
    %v2406 = vadd.f32 %v2240, %v2356
    %v2407 = vadd.f32 %v2241, %v2359
    %v2408 = vadd.f32 %v2242, %v2364
    %v2409 = vadd.f32 %v2243, %v2367
    %v2410 = vadd.f32 %v2244, %v2372
    %v2411 = vadd.f32 %v2245, %v2375
    %v2412 = vadd.f32 %v2246, %v2380
    %v2413 = vadd.f32 %v2247, %v2383
    %v2414 = vadd.f32 %v2248, %v2388
    %v2415 = vadd.f32 %v2249, %v2391
    %v2416 = vadd.f32 %v2250, %v2396
    %v2417 = vadd.f32 %v2251, %v2399
    %v2418 = vpack.c.bf16 %v2403, %v2402
    %v2419 = vpack.c.bf16 %v2405, %v2404
    %v2420 = vpack.c.bf16 %v2407, %v2406
    %v2421 = vpack.c.bf16 %v2409, %v2408
    %v2422 = vpack.c.bf16 %v2411, %v2410
    %v2423 = vpack.c.bf16 %v2413, %v2412
    %v2424 = vpack.c.bf16 %v2415, %v2414
    %v2425 = vpack.c.bf16 %v2417, %v2416
    %v2434 = vunpack.c.l.b16 %v2418
    %v2435 = vunpack.c.h.b16 %v2418
    %v2436 = vunpack.c.l.b16 %v2419
    %v2437 = vunpack.c.h.b16 %v2419
    %v2438 = vunpack.c.l.b16 %v2420
    %v2439 = vunpack.c.h.b16 %v2420
    %v2440 = vunpack.c.l.b16 %v2421
    %v2441 = vunpack.c.h.b16 %v2421
    %v2442 = vunpack.c.l.b16 %v2422
    %v2443 = vunpack.c.h.b16 %v2422
    %v2444 = vunpack.c.l.b16 %v2423
    %v2445 = vunpack.c.h.b16 %v2423
    %v2446 = vunpack.c.l.b16 %v2424
    %v2447 = vunpack.c.h.b16 %v2424
    %v2448 = vunpack.c.l.b16 %v2425
    %v2449 = vunpack.c.h.b16 %v2425
    %v2450 = vpack.c.b16 %v2434, %v2434
    %v2451 = vpack.c.b16 %v2435, %v2435
    %v2452 = vpack.c.b16 %v2436, %v2436
    %v2453 = vpack.c.b16 %v2437, %v2437
    %v2454 = vpack.c.b16 %v2438, %v2438
    %v2455 = vpack.c.b16 %v2439, %v2439
    %v2456 = vpack.c.b16 %v2440, %v2440
    %v2457 = vpack.c.b16 %v2441, %v2441
    %v2458 = vpack.c.b16 %v2442, %v2442
    %v2459 = vpack.c.b16 %v2443, %v2443
    %v2460 = vpack.c.b16 %v2444, %v2444
    %v2461 = vpack.c.b16 %v2445, %v2445
    %v2462 = vpack.c.b16 %v2446, %v2446
    %v2463 = vpack.c.b16 %v2447, %v2447
    %v2464 = vpack.c.b16 %v2448, %v2448
    %v2465 = vpack.c.b16 %v2449, %v2449
    %2466 = vrot.lane.b32.xlu0 %v2450, 4
    %v2467 = vpop.permute.xlu0 %2466
    %2468 = vrot.lane.b32.xlu0 %v2451, 4
    %v2469 = vpop.permute.xlu0 %2468
    %2470 = vrot.lane.b32.xlu0 %v2452, 4
    %v2471 = vpop.permute.xlu0 %2470
    %2472 = vrot.lane.b32.xlu0 %v2453, 4
    %v2473 = vpop.permute.xlu0 %2472
    %2474 = vrot.lane.b32.xlu0 %v2454, 4
    %v2475 = vpop.permute.xlu0 %2474
    %2476 = vrot.lane.b32.xlu0 %v2455, 4
    %v2477 = vpop.permute.xlu0 %2476
    %2478 = vrot.lane.b32.xlu0 %v2456, 4
    %v2479 = vpop.permute.xlu0 %2478
    %2480 = vrot.lane.b32.xlu0 %v2457, 4
    %v2481 = vpop.permute.xlu0 %2480
    %2482 = vrot.lane.b32.xlu0 %v2458, 4
    %v2483 = vpop.permute.xlu0 %2482
    %2484 = vrot.lane.b32.xlu0 %v2459, 4
    %v2485 = vpop.permute.xlu0 %2484
    %2486 = vrot.lane.b32.xlu0 %v2460, 4
    %v2487 = vpop.permute.xlu0 %2486
    %2488 = vrot.lane.b32.xlu0 %v2461, 4
    %v2489 = vpop.permute.xlu0 %2488
    %2490 = vrot.lane.b32.xlu0 %v2462, 4
    %v2491 = vpop.permute.xlu0 %2490
    %2492 = vrot.lane.b32.xlu0 %v2463, 4
    %v2493 = vpop.permute.xlu0 %2492
    %2494 = vrot.lane.b32.xlu0 %v2464, 4
    %v2495 = vpop.permute.xlu0 %2494
    %2496 = vrot.lane.b32.xlu0 %v2465, 4
    %v2497 = vpop.permute.xlu0 %2496
    %vm2514 = vcmask 60448
    %2515 = vst.msk [vmem:[#allocation9] sm:$0xf] %vm2514, %v2467
    %2516 = vst.msk [vmem:[#allocation9 + $0x4] sm:$0xf] %vm2514, %v2469
    %2517 = vst.msk [vmem:[#allocation9 + $0x8] sm:$0xf] %vm2514, %v2471
    %2518 = vst.msk [vmem:[#allocation9 + $0xc] sm:$0xf] %vm2514, %v2473
    %2519 = vst.msk [vmem:[#allocation9 + $0x10] sm:$0xf] %vm2514, %v2475
    %2520 = vst.msk [vmem:[#allocation9 + $0x14] sm:$0xf] %vm2514, %v2477
    %2521 = vst.msk [vmem:[#allocation9 + $0x18] sm:$0xf] %vm2514, %v2479
    %2522 = vst.msk [vmem:[#allocation9 + $0x1c] sm:$0xf] %vm2514, %v2481
    %2523 = vst.msk [vmem:[#allocation9 + $0x20] sm:$0xf] %vm2514, %v2483
    %2524 = vst.msk [vmem:[#allocation9 + $0x24] sm:$0xf] %vm2514, %v2485
    %2525 = vst.msk [vmem:[#allocation9 + $0x28] sm:$0xf] %vm2514, %v2487
    %2526 = vst.msk [vmem:[#allocation9 + $0x2c] sm:$0xf] %vm2514, %v2489
    %2527 = vst.msk [vmem:[#allocation9 + $0x30] sm:$0xf] %vm2514, %v2491
    %2528 = vst.msk [vmem:[#allocation9 + $0x34] sm:$0xf] %vm2514, %v2493
    %2529 = vst.msk [vmem:[#allocation9 + $0x38] sm:$0xf] %vm2514, %v2495
    %2530 = vst.msk [vmem:[#allocation9 + $0x3c] sm:$0xf] %vm2514, %v2497
    %v2531 = vsel %vm1695, %v2402, 0.0
    %v2532 = vsel %vm1695, %v2403, 0.0
    %v2533 = vadd.f32 %v2531, %v2532
    %v2534 = vsel %vm1695, %v2404, 0.0
    %v2535 = vadd.f32 %v2533, %v2534
    %v2536 = vsel %vm1695, %v2405, 0.0
    %v2537 = vadd.f32 %v2535, %v2536
    %v2538 = vsel %vm1695, %v2406, 0.0
    %v2539 = vadd.f32 %v2537, %v2538
    %v2540 = vsel %vm1695, %v2407, 0.0
    %v2541 = vadd.f32 %v2539, %v2540
    %v2542 = vsel %vm1695, %v2408, 0.0
    %v2543 = vadd.f32 %v2541, %v2542
    %v2544 = vsel %vm1695, %v2409, 0.0
    %v2545 = vadd.f32 %v2543, %v2544
    %v2546 = vsel %vm1695, %v2410, 0.0
    %v2547 = vadd.f32 %v2545, %v2546
    %v2548 = vsel %vm1695, %v2411, 0.0
    %v2549 = vadd.f32 %v2547, %v2548
    %v2550 = vsel %vm1695, %v2412, 0.0
    %v2551 = vadd.f32 %v2549, %v2550
    %v2552 = vsel %vm1695, %v2413, 0.0
    %v2553 = vadd.f32 %v2551, %v2552
    %v2554 = vsel %vm1695, %v2414, 0.0
    %v2555 = vadd.f32 %v2553, %v2554
    %v2556 = vsel %vm1695, %v2415, 0.0
    %v2557 = vadd.f32 %v2555, %v2556
    %v2558 = vsel %vm1695, %v2416, 0.0
    %v2559 = vadd.f32 %v2557, %v2558
    %v2560 = vsel %vm1695, %v2417, 0.0
    %v2561 = vadd.f32 %v2559, %v2560
    %v2562 = vrot.slane %v2561, 4
    %v2563 = vadd.f32 %v2561, %v2562
    %v2564 = vrot.slane %v2563, 2
    %v2565 = vadd.f32 %v2563, %v2564
    %v2566 = vrot.slane %v2565, 1
    %v2567 = vadd.f32 %v2565, %v2566
    %v2568 = vmul.f32 %v2402, %v2402
    %v2569 = vmul.f32 %v2403, %v2403
    %v2570 = vmul.f32 %v2404, %v2404
    %v2571 = vmul.f32 %v2405, %v2405
    %v2572 = vmul.f32 %v2406, %v2406
    %v2573 = vmul.f32 %v2407, %v2407
    %v2574 = vmul.f32 %v2408, %v2408
    %v2575 = vmul.f32 %v2409, %v2409
    %v2576 = vmul.f32 %v2410, %v2410
    %v2577 = vmul.f32 %v2411, %v2411
    %v2578 = vmul.f32 %v2412, %v2412
    %v2579 = vmul.f32 %v2413, %v2413
    %v2580 = vmul.f32 %v2414, %v2414
    %v2581 = vmul.f32 %v2415, %v2415
    %v2582 = vmul.f32 %v2416, %v2416
    %v2583 = vmul.f32 %v2417, %v2417
    %v2584 = vsel %vm1695, %v2568, 0.0
    %v2585 = vsel %vm1695, %v2569, 0.0
    %v2586 = vadd.f32 %v2584, %v2585
    %v2587 = vsel %vm1695, %v2570, 0.0
    %v2588 = vadd.f32 %v2586, %v2587
    %v2589 = vsel %vm1695, %v2571, 0.0
    %v2590 = vadd.f32 %v2588, %v2589
    %v2591 = vsel %vm1695, %v2572, 0.0
    %v2592 = vadd.f32 %v2590, %v2591
    %v2593 = vsel %vm1695, %v2573, 0.0
    %v2594 = vadd.f32 %v2592, %v2593
    %v2595 = vsel %vm1695, %v2574, 0.0
    %v2596 = vadd.f32 %v2594, %v2595
    %v2597 = vsel %vm1695, %v2575, 0.0
    %v2598 = vadd.f32 %v2596, %v2597
    %v2599 = vsel %vm1695, %v2576, 0.0
    %v2600 = vadd.f32 %v2598, %v2599
    %v2601 = vsel %vm1695, %v2577, 0.0
    %v2602 = vadd.f32 %v2600, %v2601
    %v2603 = vsel %vm1695, %v2578, 0.0
    %v2604 = vadd.f32 %v2602, %v2603
    %v2605 = vsel %vm1695, %v2579, 0.0
    %v2606 = vadd.f32 %v2604, %v2605
    %v2607 = vsel %vm1695, %v2580, 0.0
    %v2608 = vadd.f32 %v2606, %v2607
    %v2609 = vsel %vm1695, %v2581, 0.0
    %v2610 = vadd.f32 %v2608, %v2609
    %v2611 = vsel %vm1695, %v2582, 0.0
    %v2612 = vadd.f32 %v2610, %v2611
    %v2613 = vsel %vm1695, %v2583, 0.0
    %v2614 = vadd.f32 %v2612, %v2613
    %v2615 = vrot.slane %v2614, 4
    %v2616 = vadd.f32 %v2614, %v2615
    %v2617 = vrot.slane %v2616, 2
    %v2618 = vadd.f32 %v2616, %v2617
    %v2619 = vrot.slane %v2618, 1
    %v2620 = vadd.f32 %v2618, %v2619
    %v2621 = vadd.f32 %v1732, %v2567
    %v2622 = vadd.f32 %v1785, %v2620
    %v2623 = vld [vmem:[%s965] sm:$0xff]
    %v2624 = vld [vmem:[%s965 + $0x10] sm:$0xff]
    %v2625 = vld [vmem:[%s965 + $0x20] sm:$0xff]
    %v2626 = vld [vmem:[%s965 + $0x30] sm:$0xff]
    %v2627 = vld [vmem:[%s965 + $0x40] sm:$0xff]
    %v2628 = vld [vmem:[%s965 + $0x50] sm:$0xff]
    %v2629 = vld [vmem:[%s965 + $0x60] sm:$0xff]
    %v2630 = vld [vmem:[%s965 + $0x70] sm:$0xff]
    %v2631 = vld [vmem:[%s965 + $0xa0] sm:$0xff]
    %v2632 = vld [vmem:[%s965 + $0xb0] sm:$0xff]
    %v2633 = vld [vmem:[%s965 + $0xc0] sm:$0xff]
    %v2634 = vld [vmem:[%s965 + $0xd0] sm:$0xff]
    %v2635 = vld [vmem:[%s965 + $0xe0] sm:$0xff]
    %v2636 = vld [vmem:[%s965 + $0xf0] sm:$0xff]
    %v2637 = vld [vmem:[%s965 + $0x100] sm:$0xff]
    %v2638 = vld [vmem:[%s965 + $0x110] sm:$0xff]
    %v2639 = vpack.c.bf16 %v2624, %v2623
    %v2640 = vpack.c.bf16 %v2626, %v2625
    %v2641 = vpack.c.bf16 %v2628, %v2627
    %v2642 = vpack.c.bf16 %v2630, %v2629
    %v2643 = vpack.c.bf16 %v2632, %v2631
    %v2644 = vpack.c.bf16 %v2634, %v2633
    %v2645 = vpack.c.bf16 %v2636, %v2635
    %v2646 = vpack.c.bf16 %v2638, %v2637
    %s2647 = scalar_lea.vmem [#allocation8], 32
    %v2648 = vld [vmem:[%s2647] sm:$0xf]
    %v2649 = vld [vmem:[%s965 + $0x1] sm:$0xff]
    %v2650 = vld [vmem:[%s965 + $0x11] sm:$0xff]
    %v2651 = vld [vmem:[%s965 + $0x21] sm:$0xff]
    %v2652 = vld [vmem:[%s965 + $0x31] sm:$0xff]
    %v2653 = vld [vmem:[%s965 + $0x41] sm:$0xff]
    %v2654 = vld [vmem:[%s965 + $0x51] sm:$0xff]
    %v2655 = vld [vmem:[%s965 + $0x61] sm:$0xff]
    %v2656 = vld [vmem:[%s965 + $0x71] sm:$0xff]
    %v2657 = vld [vmem:[%s965 + $0xa1] sm:$0xff]
    %v2658 = vld [vmem:[%s965 + $0xb1] sm:$0xff]
    %v2659 = vld [vmem:[%s965 + $0xc1] sm:$0xff]
    %v2660 = vld [vmem:[%s965 + $0xd1] sm:$0xff]
    %v2661 = vld [vmem:[%s965 + $0xe1] sm:$0xff]
    %v2662 = vld [vmem:[%s965 + $0xf1] sm:$0xff]
    %v2663 = vld [vmem:[%s965 + $0x101] sm:$0xff]
    %v2664 = vld [vmem:[%s965 + $0x111] sm:$0xff]
    %v2665 = vpack.c.bf16 %v2650, %v2649
    %v2666 = vpack.c.bf16 %v2652, %v2651
    %v2667 = vpack.c.bf16 %v2654, %v2653
    %v2668 = vpack.c.bf16 %v2656, %v2655
    %v2669 = vpack.c.bf16 %v2658, %v2657
    %v2670 = vpack.c.bf16 %v2660, %v2659
    %v2671 = vpack.c.bf16 %v2662, %v2661
    %v2672 = vpack.c.bf16 %v2664, %v2663
    %s2673 = scalar_lea.vmem [#allocation8], 36
    %v2674 = vld [vmem:[%s2673] sm:$0xf]
    %v2676 = vsel %vm913, %v2665, 0
    %v2679 = vsel %vm913, %v2666, 0
    %v2682 = vsel %vm913, %v2667, 0
    %v2685 = vsel %vm913, %v2668, 0
    %v2688 = vsel %vm913, %v2669, 0
    %v2691 = vsel %vm913, %v2670, 0
    %v2694 = vsel %vm913, %v2671, 0
    %v2697 = vsel %vm913, %v2672, 0
    %v2700 = vsel %vm1057, %v2674, 0
    %2702 = vmatprep.subr.bf16.mxu0 0
    %2703 = vmatpush1.bf16.msra.mxu0 %v2700
    %2704 = vmatprep.subr.bf16.mxu0 0
    %2705 = vmatpush1.bf16.msra.mxu0 0
    %2706 = vmatprep.subr.bf16.mxu0 0
    %2707 = vmatpush1.bf16.msra.mxu0 0
    %2708 = vmatprep.subr.bf16.mxu0 0
    %2709 = vmatpush1.bf16.msra.mxu0 0
    %2710 = vmatprep.subr.bf16.mxu0 0
    %2711 = vmatpush1.bf16.msra.mxu0 0
    %2712 = vmatprep.subr.bf16.mxu0 0
    %2713 = vmatpush1.bf16.msra.mxu0 0
    %2714 = vmatprep.subr.bf16.mxu0 0
    %2715 = vmatpush1.bf16.msra.mxu0 0
    %2716 = vmatprep.subr.bf16.mxu0 0
    %2717 = vmatpush1.bf16.msra.mxu0 0
    %2718 = vmatprep.subr.bf16.mxu0 0
    %2719 = vmatpush1.bf16.msra.mxu0 0
    %2720 = vmatprep.subr.bf16.mxu0 0
    %2721 = vmatpush1.bf16.msra.mxu0 0
    %2722 = vmatprep.subr.bf16.mxu0 0
    %2723 = vmatpush1.bf16.msra.mxu0 0
    %2724 = vmatprep.subr.bf16.mxu0 0
    %2725 = vmatpush1.bf16.msra.mxu0 0
    %2726 = vmatprep.subr.bf16.mxu0 0
    %2727 = vmatpush1.bf16.msra.mxu0 0
    %2728 = vmatprep.subr.bf16.mxu0 0
    %2729 = vmatpush1.bf16.msra.mxu0 0
    %2730 = vmatprep.subr.bf16.mxu0 0
    %2731 = vmatpush1.bf16.msra.mxu0 0
    %2732 = vmatprep.subr.bf16.mxu0 0
    %2733 = vmatpush1.bf16.msra.mxu0 0
    %2734 = vmatprep.mubr.bf16.mxu0 0
    %2735 = vmatmul.mubr.bf16.gmra.mrb[0].mxu0 %v2676
    %v2736 = vpop.f32.mrb[0].mxu0
    %v2737 = vadd.f32 0.0, %v2736
    %v2738 = vpop.f32.mrb[0].mxu0
    %v2739 = vpop.f32.mrb[0].mxu0
    %v2740 = vadd.f32 0.0, %v2739
    %v2741 = vpop.f32.mrb[0].mxu0
    %2742 = vmatprep.mubr.bf16.mxu0 0
    %2743 = vmatmul.mubr.bf16.gmra.mrb[0].mxu0 %v2679
    %v2744 = vpop.f32.mrb[0].mxu0
    %v2745 = vadd.f32 0.0, %v2744
    %v2746 = vpop.f32.mrb[0].mxu0
    %v2747 = vpop.f32.mrb[0].mxu0
    %v2748 = vadd.f32 0.0, %v2747
    %v2749 = vpop.f32.mrb[0].mxu0
    %2750 = vmatprep.mubr.bf16.mxu0 0
    %2751 = vmatmul.mubr.bf16.gmra.mrb[0].mxu0 %v2682
    %v2752 = vpop.f32.mrb[0].mxu0
    %v2753 = vadd.f32 0.0, %v2752
    %v2754 = vpop.f32.mrb[0].mxu0
    %v2755 = vpop.f32.mrb[0].mxu0
    %v2756 = vadd.f32 0.0, %v2755
    %v2757 = vpop.f32.mrb[0].mxu0
    %2758 = vmatprep.mubr.bf16.mxu0 0
    %2759 = vmatmul.mubr.bf16.gmra.mrb[0].mxu0 %v2685
    %v2760 = vpop.f32.mrb[0].mxu0
    %v2761 = vadd.f32 0.0, %v2760
    %v2762 = vpop.f32.mrb[0].mxu0
    %v2763 = vpop.f32.mrb[0].mxu0
    %v2764 = vadd.f32 0.0, %v2763
    %v2765 = vpop.f32.mrb[0].mxu0
    %2766 = vmatprep.mubr.bf16.mxu0 0
    %2767 = vmatmul.mubr.bf16.gmra.mrb[0].mxu0 %v2688
    %v2768 = vpop.f32.mrb[0].mxu0
    %v2769 = vadd.f32 0.0, %v2768
    %v2770 = vpop.f32.mrb[0].mxu0
    %v2771 = vpop.f32.mrb[0].mxu0
    %v2772 = vadd.f32 0.0, %v2771
    %v2773 = vpop.f32.mrb[0].mxu0
    %2774 = vmatprep.mubr.bf16.mxu0 0
    %2775 = vmatmul.mubr.bf16.gmra.mrb[0].mxu0 %v2691
    %v2776 = vpop.f32.mrb[0].mxu0
    %v2777 = vadd.f32 0.0, %v2776
    %v2778 = vpop.f32.mrb[0].mxu0
    %v2779 = vpop.f32.mrb[0].mxu0
    %v2780 = vadd.f32 0.0, %v2779
    %v2781 = vpop.f32.mrb[0].mxu0
    %2782 = vmatprep.mubr.bf16.mxu0 0
    %2783 = vmatmul.mubr.bf16.gmra.mrb[0].mxu0 %v2694
    %v2784 = vpop.f32.mrb[0].mxu0
    %v2785 = vadd.f32 0.0, %v2784
    %v2786 = vpop.f32.mrb[0].mxu0
    %v2787 = vpop.f32.mrb[0].mxu0
    %v2788 = vadd.f32 0.0, %v2787
    %v2789 = vpop.f32.mrb[0].mxu0
    %2790 = vmatprep.mubr.bf16.mxu0 0
    %2791 = vmatmul.mubr.bf16.gmra.mrb[0].mxu0 %v2697
    %v2792 = vpop.f32.mrb[0].mxu0
    %v2793 = vadd.f32 0.0, %v2792
    %v2794 = vpop.f32.mrb[0].mxu0
    %v2795 = vpop.f32.mrb[0].mxu0
    %v2796 = vadd.f32 0.0, %v2795
    %v2797 = vpop.f32.mrb[0].mxu0
    %2798 = vdwg.mxu0
    %v2800 = vsel %vm913, %v2639, 0
    %v2803 = vsel %vm913, %v2640, 0
    %v2806 = vsel %vm913, %v2641, 0
    %v2809 = vsel %vm913, %v2642, 0
    %v2812 = vsel %vm913, %v2643, 0
    %v2815 = vsel %vm913, %v2644, 0
    %v2818 = vsel %vm913, %v2645, 0
    %v2821 = vsel %vm913, %v2646, 0
    %v2824 = vsel %vm1057, %v2648, 0
    %2826 = vmatprep.subr.bf16.mxu0 0
    %2827 = vmatpush1.bf16.msra.mxu0 %v2824
    %2828 = vmatprep.subr.bf16.mxu0 0
    %2829 = vmatpush1.bf16.msra.mxu0 0
    %2830 = vmatprep.subr.bf16.mxu0 0
    %2831 = vmatpush1.bf16.msra.mxu0 0
    %2832 = vmatprep.subr.bf16.mxu0 0
    %2833 = vmatpush1.bf16.msra.mxu0 0
    %2834 = vmatprep.subr.bf16.mxu0 0
    %2835 = vmatpush1.bf16.msra.mxu0 0
    %2836 = vmatprep.subr.bf16.mxu0 0
    %2837 = vmatpush1.bf16.msra.mxu0 0
    %2838 = vmatprep.subr.bf16.mxu0 0
    %2839 = vmatpush1.bf16.msra.mxu0 0
    %2840 = vmatprep.subr.bf16.mxu0 0
    %2841 = vmatpush1.bf16.msra.mxu0 0
    %2842 = vmatprep.subr.bf16.mxu0 0
    %2843 = vmatpush1.bf16.msra.mxu0 0
    %2844 = vmatprep.subr.bf16.mxu0 0
    %2845 = vmatpush1.bf16.msra.mxu0 0
    %2846 = vmatprep.subr.bf16.mxu0 0
    %2847 = vmatpush1.bf16.msra.mxu0 0
    %2848 = vmatprep.subr.bf16.mxu0 0
    %2849 = vmatpush1.bf16.msra.mxu0 0
    %2850 = vmatprep.subr.bf16.mxu0 0
    %2851 = vmatpush1.bf16.msra.mxu0 0
    %2852 = vmatprep.subr.bf16.mxu0 0
    %2853 = vmatpush1.bf16.msra.mxu0 0
    %2854 = vmatprep.subr.bf16.mxu0 0
    %2855 = vmatpush1.bf16.msra.mxu0 0
    %2856 = vmatprep.subr.bf16.mxu0 0
    %2857 = vmatpush1.bf16.msra.mxu0 0
    %2858 = vmatprep.mubr.bf16.mxu0 0
    %2859 = vmatmul.mubr.bf16.gmra.mrb[0].mxu0 %v2800
    %v2860 = vpop.f32.mrb[0].mxu0
    %v2861 = vadd.f32 %v2737, %v2860
    %v2862 = vpop.f32.mrb[0].mxu0
    %v2863 = vpop.f32.mrb[0].mxu0
    %v2864 = vadd.f32 %v2740, %v2863
    %v2865 = vpop.f32.mrb[0].mxu0
    %2866 = vmatprep.mubr.bf16.mxu0 0
    %2867 = vmatmul.mubr.bf16.gmra.mrb[0].mxu0 %v2803
    %v2868 = vpop.f32.mrb[0].mxu0
    %v2869 = vadd.f32 %v2745, %v2868
    %v2870 = vpop.f32.mrb[0].mxu0
    %v2871 = vpop.f32.mrb[0].mxu0
    %v2872 = vadd.f32 %v2748, %v2871
    %v2873 = vpop.f32.mrb[0].mxu0
    %2874 = vmatprep.mubr.bf16.mxu0 0
    %2875 = vmatmul.mubr.bf16.gmra.mrb[0].mxu0 %v2806
    %v2876 = vpop.f32.mrb[0].mxu0
    %v2877 = vadd.f32 %v2753, %v2876
    %v2878 = vpop.f32.mrb[0].mxu0
    %v2879 = vpop.f32.mrb[0].mxu0
    %v2880 = vadd.f32 %v2756, %v2879
    %v2881 = vpop.f32.mrb[0].mxu0
    %2882 = vmatprep.mubr.bf16.mxu0 0
    %2883 = vmatmul.mubr.bf16.gmra.mrb[0].mxu0 %v2809
    %v2884 = vpop.f32.mrb[0].mxu0
    %v2885 = vadd.f32 %v2761, %v2884
    %v2886 = vpop.f32.mrb[0].mxu0
    %v2887 = vpop.f32.mrb[0].mxu0
    %v2888 = vadd.f32 %v2764, %v2887
    %v2889 = vpop.f32.mrb[0].mxu0
    %2890 = vmatprep.mubr.bf16.mxu0 0
    %2891 = vmatmul.mubr.bf16.gmra.mrb[0].mxu0 %v2812
    %v2892 = vpop.f32.mrb[0].mxu0
    %v2893 = vadd.f32 %v2769, %v2892
    %v2894 = vpop.f32.mrb[0].mxu0
    %v2895 = vpop.f32.mrb[0].mxu0
    %v2896 = vadd.f32 %v2772, %v2895
    %v2897 = vpop.f32.mrb[0].mxu0
    %2898 = vmatprep.mubr.bf16.mxu0 0
    %2899 = vmatmul.mubr.bf16.gmra.mrb[0].mxu0 %v2815
    %v2900 = vpop.f32.mrb[0].mxu0
    %v2901 = vadd.f32 %v2777, %v2900
    %v2902 = vpop.f32.mrb[0].mxu0
    %v2903 = vpop.f32.mrb[0].mxu0
    %v2904 = vadd.f32 %v2780, %v2903
    %v2905 = vpop.f32.mrb[0].mxu0
    %2906 = vmatprep.mubr.bf16.mxu0 0
    %2907 = vmatmul.mubr.bf16.gmra.mrb[0].mxu0 %v2818
    %v2908 = vpop.f32.mrb[0].mxu0
    %v2909 = vadd.f32 %v2785, %v2908
    %v2910 = vpop.f32.mrb[0].mxu0
    %v2911 = vpop.f32.mrb[0].mxu0
    %v2912 = vadd.f32 %v2788, %v2911
    %v2913 = vpop.f32.mrb[0].mxu0
    %2914 = vmatprep.mubr.bf16.mxu0 0
    %2915 = vmatmul.mubr.bf16.gmra.mrb[0].mxu0 %v2821
    %v2916 = vpop.f32.mrb[0].mxu0
    %v2917 = vadd.f32 %v2793, %v2916
    %v2918 = vpop.f32.mrb[0].mxu0
    %v2919 = vpop.f32.mrb[0].mxu0
    %v2920 = vadd.f32 %v2796, %v2919
    %v2921 = vpop.f32.mrb[0].mxu0
    %2922 = vdwg.mxu0
    %s2923 = scalar_lea.vmem [#allocation2], 32
    %v2924 = vld [vmem:[%s2923] sm:$0xff]
    %v2925 = vld [vmem:[%s2923 + $0x10] sm:$0xff]
    %v2926 = vld [vmem:[%s2923 + $0x20] sm:$0xff]
    %v2927 = vld [vmem:[%s2923 + $0x30] sm:$0xff]
    %v2928 = vld [vmem:[%s2923 + $0x40] sm:$0xff]
    %v2929 = vld [vmem:[%s2923 + $0x50] sm:$0xff]
    %v2930 = vld [vmem:[%s2923 + $0x60] sm:$0xff]
    %v2931 = vld [vmem:[%s2923 + $0x70] sm:$0xff]
    %v2932 = vld [vmem:[%s2923 + $0xa0] sm:$0xff]
    %v2933 = vld [vmem:[%s2923 + $0xb0] sm:$0xff]
    %v2934 = vld [vmem:[%s2923 + $0xc0] sm:$0xff]
    %v2935 = vld [vmem:[%s2923 + $0xd0] sm:$0xff]
    %v2936 = vld [vmem:[%s2923 + $0xe0] sm:$0xff]
    %v2937 = vld [vmem:[%s2923 + $0xf0] sm:$0xff]
    %v2938 = vld [vmem:[%s2923 + $0x100] sm:$0xff]
    %v2939 = vld [vmem:[%s2923 + $0x110] sm:$0xff]
    %v2940 = vpack.c.bf16 %v2925, %v2924
    %v2941 = vpack.c.bf16 %v2927, %v2926
    %v2942 = vpack.c.bf16 %v2929, %v2928
    %v2943 = vpack.c.bf16 %v2931, %v2930
    %v2944 = vpack.c.bf16 %v2933, %v2932
    %v2945 = vpack.c.bf16 %v2935, %v2934
    %v2946 = vpack.c.bf16 %v2937, %v2936
    %v2947 = vpack.c.bf16 %v2939, %v2938
    %s2948 = scalar_lea.vmem [#allocation8], 40
    %v2949 = vld [vmem:[%s2948] sm:$0xf]
    %v2951 = vsel %vm913, %v2940, 0
    %v2954 = vsel %vm913, %v2941, 0
    %v2957 = vsel %vm913, %v2942, 0
    %v2960 = vsel %vm913, %v2943, 0
    %v2963 = vsel %vm913, %v2944, 0
    %v2966 = vsel %vm913, %v2945, 0
    %v2969 = vsel %vm913, %v2946, 0
    %v2972 = vsel %vm913, %v2947, 0
    %v2975 = vsel %vm1057, %v2949, 0
    %2977 = vmatprep.subr.bf16.mxu0 0
    %2978 = vmatpush1.bf16.msra.mxu0 %v2975
    %2979 = vmatprep.subr.bf16.mxu0 0
    %2980 = vmatpush1.bf16.msra.mxu0 0
    %2981 = vmatprep.subr.bf16.mxu0 0
    %2982 = vmatpush1.bf16.msra.mxu0 0
    %2983 = vmatprep.subr.bf16.mxu0 0
    %2984 = vmatpush1.bf16.msra.mxu0 0
    %2985 = vmatprep.subr.bf16.mxu0 0
    %2986 = vmatpush1.bf16.msra.mxu0 0
    %2987 = vmatprep.subr.bf16.mxu0 0
    %2988 = vmatpush1.bf16.msra.mxu0 0
    %2989 = vmatprep.subr.bf16.mxu0 0
    %2990 = vmatpush1.bf16.msra.mxu0 0
    %2991 = vmatprep.subr.bf16.mxu0 0
    %2992 = vmatpush1.bf16.msra.mxu0 0
    %2993 = vmatprep.subr.bf16.mxu0 0
    %2994 = vmatpush1.bf16.msra.mxu0 0
    %2995 = vmatprep.subr.bf16.mxu0 0
    %2996 = vmatpush1.bf16.msra.mxu0 0
    %2997 = vmatprep.subr.bf16.mxu0 0
    %2998 = vmatpush1.bf16.msra.mxu0 0
    %2999 = vmatprep.subr.bf16.mxu0 0
    %3000 = vmatpush1.bf16.msra.mxu0 0
    %3001 = vmatprep.subr.bf16.mxu0 0
    %3002 = vmatpush1.bf16.msra.mxu0 0
    %3003 = vmatprep.subr.bf16.mxu0 0
    %3004 = vmatpush1.bf16.msra.mxu0 0
    %3005 = vmatprep.subr.bf16.mxu0 0
    %3006 = vmatpush1.bf16.msra.mxu0 0
    %3007 = vmatprep.subr.bf16.mxu0 0
    %3008 = vmatpush1.bf16.msra.mxu0 0
    %3009 = vmatprep.mubr.bf16.mxu0 0
    %3010 = vmatmul.mubr.bf16.gmra.mrb[0].mxu0 %v2951
    %v3011 = vpop.f32.mrb[0].mxu0
    %v3012 = vadd.f32 0.0, %v3011
    %v3013 = vpop.f32.mrb[0].mxu0
    %v3014 = vpop.f32.mrb[0].mxu0
    %v3015 = vadd.f32 0.0, %v3014
    %v3016 = vpop.f32.mrb[0].mxu0
    %3017 = vmatprep.mubr.bf16.mxu0 0
    %3018 = vmatmul.mubr.bf16.gmra.mrb[0].mxu0 %v2954
    %v3019 = vpop.f32.mrb[0].mxu0
    %v3020 = vadd.f32 0.0, %v3019
    %v3021 = vpop.f32.mrb[0].mxu0
    %v3022 = vpop.f32.mrb[0].mxu0
    %v3023 = vadd.f32 0.0, %v3022
    %v3024 = vpop.f32.mrb[0].mxu0
    %3025 = vmatprep.mubr.bf16.mxu0 0
    %3026 = vmatmul.mubr.bf16.gmra.mrb[0].mxu0 %v2957
    %v3027 = vpop.f32.mrb[0].mxu0
    %v3028 = vadd.f32 0.0, %v3027
    %v3029 = vpop.f32.mrb[0].mxu0
    %v3030 = vpop.f32.mrb[0].mxu0
    %v3031 = vadd.f32 0.0, %v3030
    %v3032 = vpop.f32.mrb[0].mxu0
    %3033 = vmatprep.mubr.bf16.mxu0 0
    %3034 = vmatmul.mubr.bf16.gmra.mrb[0].mxu0 %v2960
    %v3035 = vpop.f32.mrb[0].mxu0
    %v3036 = vadd.f32 0.0, %v3035
    %v3037 = vpop.f32.mrb[0].mxu0
    %v3038 = vpop.f32.mrb[0].mxu0
    %v3039 = vadd.f32 0.0, %v3038
    %v3040 = vpop.f32.mrb[0].mxu0
    %3041 = vmatprep.mubr.bf16.mxu0 0
    %3042 = vmatmul.mubr.bf16.gmra.mrb[0].mxu0 %v2963
    %v3043 = vpop.f32.mrb[0].mxu0
    %v3044 = vadd.f32 0.0, %v3043
    %v3045 = vpop.f32.mrb[0].mxu0
    %v3046 = vpop.f32.mrb[0].mxu0
    %v3047 = vadd.f32 0.0, %v3046
    %v3048 = vpop.f32.mrb[0].mxu0
    %3049 = vmatprep.mubr.bf16.mxu0 0
    %3050 = vmatmul.mubr.bf16.gmra.mrb[0].mxu0 %v2966
    %v3051 = vpop.f32.mrb[0].mxu0
    %v3052 = vadd.f32 0.0, %v3051
    %v3053 = vpop.f32.mrb[0].mxu0
    %v3054 = vpop.f32.mrb[0].mxu0
    %v3055 = vadd.f32 0.0, %v3054
    %v3056 = vpop.f32.mrb[0].mxu0
    %3057 = vmatprep.mubr.bf16.mxu0 0
    %3058 = vmatmul.mubr.bf16.gmra.mrb[0].mxu0 %v2969
    %v3059 = vpop.f32.mrb[0].mxu0
    %v3060 = vadd.f32 0.0, %v3059
    %v3061 = vpop.f32.mrb[0].mxu0
    %v3062 = vpop.f32.mrb[0].mxu0
    %v3063 = vadd.f32 0.0, %v3062
    %v3064 = vpop.f32.mrb[0].mxu0
    %3065 = vmatprep.mubr.bf16.mxu0 0
    %3066 = vmatmul.mubr.bf16.gmra.mrb[0].mxu0 %v2972
    %v3067 = vpop.f32.mrb[0].mxu0
    %v3068 = vadd.f32 0.0, %v3067
    %v3069 = vpop.f32.mrb[0].mxu0
    %v3070 = vpop.f32.mrb[0].mxu0
    %v3071 = vadd.f32 0.0, %v3070
    %v3072 = vpop.f32.mrb[0].mxu0
    %3073 = vdwg.mxu0
    %v3074 = vadd.f32 %v2861, %v3012
    %v3075 = vadd.f32 %v2864, %v3015
    %v3076 = vadd.f32 %v2869, %v3020
    %v3077 = vadd.f32 %v2872, %v3023
    %v3078 = vadd.f32 %v2877, %v3028
    %v3079 = vadd.f32 %v2880, %v3031
    %v3080 = vadd.f32 %v2885, %v3036
    %v3081 = vadd.f32 %v2888, %v3039
    %v3082 = vadd.f32 %v2893, %v3044
    %v3083 = vadd.f32 %v2896, %v3047
    %v3084 = vadd.f32 %v2901, %v3052
    %v3085 = vadd.f32 %v2904, %v3055
    %v3086 = vadd.f32 %v2909, %v3060
    %v3087 = vadd.f32 %v2912, %v3063
    %v3088 = vadd.f32 %v2917, %v3068
    %v3089 = vadd.f32 %v2920, %v3071
    %v3090 = vld [vmem:[%s2923 + $0x1] sm:$0xff]
    %v3091 = vld [vmem:[%s2923 + $0x11] sm:$0xff]
    %v3092 = vld [vmem:[%s2923 + $0x21] sm:$0xff]
    %v3093 = vld [vmem:[%s2923 + $0x31] sm:$0xff]
    %v3094 = vld [vmem:[%s2923 + $0x41] sm:$0xff]
    %v3095 = vld [vmem:[%s2923 + $0x51] sm:$0xff]
    %v3096 = vld [vmem:[%s2923 + $0x61] sm:$0xff]
    %v3097 = vld [vmem:[%s2923 + $0x71] sm:$0xff]
    %v3098 = vld [vmem:[%s2923 + $0xa1] sm:$0xff]
    %v3099 = vld [vmem:[%s2923 + $0xb1] sm:$0xff]
    %v3100 = vld [vmem:[%s2923 + $0xc1] sm:$0xff]
    %v3101 = vld [vmem:[%s2923 + $0xd1] sm:$0xff]
    %v3102 = vld [vmem:[%s2923 + $0xe1] sm:$0xff]
    %v3103 = vld [vmem:[%s2923 + $0xf1] sm:$0xff]
    %v3104 = vld [vmem:[%s2923 + $0x101] sm:$0xff]
    %v3105 = vld [vmem:[%s2923 + $0x111] sm:$0xff]
    %v3106 = vpack.c.bf16 %v3091, %v3090
    %v3107 = vpack.c.bf16 %v3093, %v3092
    %v3108 = vpack.c.bf16 %v3095, %v3094
    %v3109 = vpack.c.bf16 %v3097, %v3096
    %v3110 = vpack.c.bf16 %v3099, %v3098
    %v3111 = vpack.c.bf16 %v3101, %v3100
    %v3112 = vpack.c.bf16 %v3103, %v3102
    %v3113 = vpack.c.bf16 %v3105, %v3104
    %s3114 = scalar_lea.vmem [#allocation8], 44
    %v3115 = vld [vmem:[%s3114] sm:$0xf]
    %v3117 = vsel %vm913, %v3106, 0
    %v3120 = vsel %vm913, %v3107, 0
    %v3123 = vsel %vm913, %v3108, 0
    %v3126 = vsel %vm913, %v3109, 0
    %v3129 = vsel %vm913, %v3110, 0
    %v3132 = vsel %vm913, %v3111, 0
    %v3135 = vsel %vm913, %v3112, 0
    %v3138 = vsel %vm913, %v3113, 0
    %v3141 = vsel %vm1057, %v3115, 0
    %3143 = vmatprep.subr.bf16.mxu0 0
    %3144 = vmatpush1.bf16.msra.mxu0 %v3141
    %3145 = vmatprep.subr.bf16.mxu0 0
    %3146 = vmatpush1.bf16.msra.mxu0 0
    %3147 = vmatprep.subr.bf16.mxu0 0
    %3148 = vmatpush1.bf16.msra.mxu0 0
    %3149 = vmatprep.subr.bf16.mxu0 0
    %3150 = vmatpush1.bf16.msra.mxu0 0
    %3151 = vmatprep.subr.bf16.mxu0 0
    %3152 = vmatpush1.bf16.msra.mxu0 0
    %3153 = vmatprep.subr.bf16.mxu0 0
    %3154 = vmatpush1.bf16.msra.mxu0 0
    %3155 = vmatprep.subr.bf16.mxu0 0
    %3156 = vmatpush1.bf16.msra.mxu0 0
    %3157 = vmatprep.subr.bf16.mxu0 0
    %3158 = vmatpush1.bf16.msra.mxu0 0
    %3159 = vmatprep.subr.bf16.mxu0 0
    %3160 = vmatpush1.bf16.msra.mxu0 0
    %3161 = vmatprep.subr.bf16.mxu0 0
    %3162 = vmatpush1.bf16.msra.mxu0 0
    %3163 = vmatprep.subr.bf16.mxu0 0
    %3164 = vmatpush1.bf16.msra.mxu0 0
    %3165 = vmatprep.subr.bf16.mxu0 0
    %3166 = vmatpush1.bf16.msra.mxu0 0
    %3167 = vmatprep.subr.bf16.mxu0 0
    %3168 = vmatpush1.bf16.msra.mxu0 0
    %3169 = vmatprep.subr.bf16.mxu0 0
    %3170 = vmatpush1.bf16.msra.mxu0 0
    %3171 = vmatprep.subr.bf16.mxu0 0
    %3172 = vmatpush1.bf16.msra.mxu0 0
    %3173 = vmatprep.subr.bf16.mxu0 0
    %3174 = vmatpush1.bf16.msra.mxu0 0
    %3175 = vmatprep.mubr.bf16.mxu0 0
    %3176 = vmatmul.mubr.bf16.gmra.mrb[0].mxu0 %v3117
    %v3177 = vpop.f32.mrb[0].mxu0
    %v3178 = vadd.f32 0.0, %v3177
    %v3179 = vpop.f32.mrb[0].mxu0
    %v3180 = vpop.f32.mrb[0].mxu0
    %v3181 = vadd.f32 0.0, %v3180
    %v3182 = vpop.f32.mrb[0].mxu0
    %3183 = vmatprep.mubr.bf16.mxu0 0
    %3184 = vmatmul.mubr.bf16.gmra.mrb[0].mxu0 %v3120
    %v3185 = vpop.f32.mrb[0].mxu0
    %v3186 = vadd.f32 0.0, %v3185
    %v3187 = vpop.f32.mrb[0].mxu0
    %v3188 = vpop.f32.mrb[0].mxu0
    %v3189 = vadd.f32 0.0, %v3188
    %v3190 = vpop.f32.mrb[0].mxu0
    %3191 = vmatprep.mubr.bf16.mxu0 0
    %3192 = vmatmul.mubr.bf16.gmra.mrb[0].mxu0 %v3123
    %v3193 = vpop.f32.mrb[0].mxu0
    %v3194 = vadd.f32 0.0, %v3193
    %v3195 = vpop.f32.mrb[0].mxu0
    %v3196 = vpop.f32.mrb[0].mxu0
    %v3197 = vadd.f32 0.0, %v3196
    %v3198 = vpop.f32.mrb[0].mxu0
    %3199 = vmatprep.mubr.bf16.mxu0 0
    %3200 = vmatmul.mubr.bf16.gmra.mrb[0].mxu0 %v3126
    %v3201 = vpop.f32.mrb[0].mxu0
    %v3202 = vadd.f32 0.0, %v3201
    %v3203 = vpop.f32.mrb[0].mxu0
    %v3204 = vpop.f32.mrb[0].mxu0
    %v3205 = vadd.f32 0.0, %v3204
    %v3206 = vpop.f32.mrb[0].mxu0
    %3207 = vmatprep.mubr.bf16.mxu0 0
    %3208 = vmatmul.mubr.bf16.gmra.mrb[0].mxu0 %v3129
    %v3209 = vpop.f32.mrb[0].mxu0
    %v3210 = vadd.f32 0.0, %v3209
    %v3211 = vpop.f32.mrb[0].mxu0
    %v3212 = vpop.f32.mrb[0].mxu0
    %v3213 = vadd.f32 0.0, %v3212
    %v3214 = vpop.f32.mrb[0].mxu0
    %3215 = vmatprep.mubr.bf16.mxu0 0
    %3216 = vmatmul.mubr.bf16.gmra.mrb[0].mxu0 %v3132
    %v3217 = vpop.f32.mrb[0].mxu0
    %v3218 = vadd.f32 0.0, %v3217
    %v3219 = vpop.f32.mrb[0].mxu0
    %v3220 = vpop.f32.mrb[0].mxu0
    %v3221 = vadd.f32 0.0, %v3220
    %v3222 = vpop.f32.mrb[0].mxu0
    %3223 = vmatprep.mubr.bf16.mxu0 0
    %3224 = vmatmul.mubr.bf16.gmra.mrb[0].mxu0 %v3135
    %v3225 = vpop.f32.mrb[0].mxu0
    %v3226 = vadd.f32 0.0, %v3225
    %v3227 = vpop.f32.mrb[0].mxu0
    %v3228 = vpop.f32.mrb[0].mxu0
    %v3229 = vadd.f32 0.0, %v3228
    %v3230 = vpop.f32.mrb[0].mxu0
    %3231 = vmatprep.mubr.bf16.mxu0 0
    %3232 = vmatmul.mubr.bf16.gmra.mrb[0].mxu0 %v3138
    %v3233 = vpop.f32.mrb[0].mxu0
    %v3234 = vadd.f32 0.0, %v3233
    %v3235 = vpop.f32.mrb[0].mxu0
    %v3236 = vpop.f32.mrb[0].mxu0
    %v3237 = vadd.f32 0.0, %v3236
    %v3238 = vpop.f32.mrb[0].mxu0
    %3239 = vdwg.mxu0
    %v3240 = vadd.f32 %v3074, %v3178
    %v3241 = vadd.f32 %v3075, %v3181
    %v3242 = vadd.f32 %v3076, %v3186
    %v3243 = vadd.f32 %v3077, %v3189
    %v3244 = vadd.f32 %v3078, %v3194
    %v3245 = vadd.f32 %v3079, %v3197
    %v3246 = vadd.f32 %v3080, %v3202
    %v3247 = vadd.f32 %v3081, %v3205
    %v3248 = vadd.f32 %v3082, %v3210
    %v3249 = vadd.f32 %v3083, %v3213
    %v3250 = vadd.f32 %v3084, %v3218
    %v3251 = vadd.f32 %v3085, %v3221
    %v3252 = vadd.f32 %v3086, %v3226
    %v3253 = vadd.f32 %v3087, %v3229
    %v3254 = vadd.f32 %v3088, %v3234
    %v3255 = vadd.f32 %v3089, %v3237
    %v3256 = vpack.c.bf16 %v3241, %v3240
    %v3257 = vpack.c.bf16 %v3243, %v3242
    %v3258 = vpack.c.bf16 %v3245, %v3244
    %v3259 = vpack.c.bf16 %v3247, %v3246
    %v3260 = vpack.c.bf16 %v3249, %v3248
    %v3261 = vpack.c.bf16 %v3251, %v3250
    %v3262 = vpack.c.bf16 %v3253, %v3252
    %v3263 = vpack.c.bf16 %v3255, %v3254
    %v3272 = vunpack.c.l.b16 %v3256
    %v3273 = vunpack.c.h.b16 %v3256
    %v3274 = vunpack.c.l.b16 %v3257
    %v3275 = vunpack.c.h.b16 %v3257
    %v3276 = vunpack.c.l.b16 %v3258
    %v3277 = vunpack.c.h.b16 %v3258
    %v3278 = vunpack.c.l.b16 %v3259
    %v3279 = vunpack.c.h.b16 %v3259
    %v3280 = vunpack.c.l.b16 %v3260
    %v3281 = vunpack.c.h.b16 %v3260
    %v3282 = vunpack.c.l.b16 %v3261
    %v3283 = vunpack.c.h.b16 %v3261
    %v3284 = vunpack.c.l.b16 %v3262
    %v3285 = vunpack.c.h.b16 %v3262
    %v3286 = vunpack.c.l.b16 %v3263
    %v3287 = vunpack.c.h.b16 %v3263
    %v3288 = vpack.c.b16 %v3272, %v3272
    %v3289 = vpack.c.b16 %v3273, %v3273
    %v3290 = vpack.c.b16 %v3274, %v3274
    %v3291 = vpack.c.b16 %v3275, %v3275
    %v3292 = vpack.c.b16 %v3276, %v3276
    %v3293 = vpack.c.b16 %v3277, %v3277
    %v3294 = vpack.c.b16 %v3278, %v3278
    %v3295 = vpack.c.b16 %v3279, %v3279
    %v3296 = vpack.c.b16 %v3280, %v3280
    %v3297 = vpack.c.b16 %v3281, %v3281
    %v3298 = vpack.c.b16 %v3282, %v3282
    %v3299 = vpack.c.b16 %v3283, %v3283
    %v3300 = vpack.c.b16 %v3284, %v3284
    %v3301 = vpack.c.b16 %v3285, %v3285
    %v3302 = vpack.c.b16 %v3286, %v3286
    %v3303 = vpack.c.b16 %v3287, %v3287
    %3304 = vrot.lane.b32.xlu0 %v3288, 8
    %v3305 = vpop.permute.xlu0 %3304
    %3306 = vrot.lane.b32.xlu0 %v3289, 8
    %v3307 = vpop.permute.xlu0 %3306
    %3308 = vrot.lane.b32.xlu0 %v3290, 8
    %v3309 = vpop.permute.xlu0 %3308
    %3310 = vrot.lane.b32.xlu0 %v3291, 8
    %v3311 = vpop.permute.xlu0 %3310
    %3312 = vrot.lane.b32.xlu0 %v3292, 8
    %v3313 = vpop.permute.xlu0 %3312
    %3314 = vrot.lane.b32.xlu0 %v3293, 8
    %v3315 = vpop.permute.xlu0 %3314
    %3316 = vrot.lane.b32.xlu0 %v3294, 8
    %v3317 = vpop.permute.xlu0 %3316
    %3318 = vrot.lane.b32.xlu0 %v3295, 8
    %v3319 = vpop.permute.xlu0 %3318
    %3320 = vrot.lane.b32.xlu0 %v3296, 8
    %v3321 = vpop.permute.xlu0 %3320
    %3322 = vrot.lane.b32.xlu0 %v3297, 8
    %v3323 = vpop.permute.xlu0 %3322
    %3324 = vrot.lane.b32.xlu0 %v3298, 8
    %v3325 = vpop.permute.xlu0 %3324
    %3326 = vrot.lane.b32.xlu0 %v3299, 8
    %v3327 = vpop.permute.xlu0 %3326
    %3328 = vrot.lane.b32.xlu0 %v3300, 8
    %v3329 = vpop.permute.xlu0 %3328
    %3330 = vrot.lane.b32.xlu0 %v3301, 8
    %v3331 = vpop.permute.xlu0 %3330
    %3332 = vrot.lane.b32.xlu0 %v3302, 8
    %v3333 = vpop.permute.xlu0 %3332
    %3334 = vrot.lane.b32.xlu0 %v3303, 8
    %v3335 = vpop.permute.xlu0 %3334
    %vm3352 = vcmask 93248
    %3353 = vst.msk [vmem:[#allocation9] sm:$0xf] %vm3352, %v3305
    %3354 = vst.msk [vmem:[#allocation9 + $0x4] sm:$0xf] %vm3352, %v3307
    %3355 = vst.msk [vmem:[#allocation9 + $0x8] sm:$0xf] %vm3352, %v3309
    %3356 = vst.msk [vmem:[#allocation9 + $0xc] sm:$0xf] %vm3352, %v3311
    %3357 = vst.msk [vmem:[#allocation9 + $0x10] sm:$0xf] %vm3352, %v3313
    %3358 = vst.msk [vmem:[#allocation9 + $0x14] sm:$0xf] %vm3352, %v3315
    %3359 = vst.msk [vmem:[#allocation9 + $0x18] sm:$0xf] %vm3352, %v3317
    %3360 = vst.msk [vmem:[#allocation9 + $0x1c] sm:$0xf] %vm3352, %v3319
    %3361 = vst.msk [vmem:[#allocation9 + $0x20] sm:$0xf] %vm3352, %v3321
    %3362 = vst.msk [vmem:[#allocation9 + $0x24] sm:$0xf] %vm3352, %v3323
    %3363 = vst.msk [vmem:[#allocation9 + $0x28] sm:$0xf] %vm3352, %v3325
    %3364 = vst.msk [vmem:[#allocation9 + $0x2c] sm:$0xf] %vm3352, %v3327
    %3365 = vst.msk [vmem:[#allocation9 + $0x30] sm:$0xf] %vm3352, %v3329
    %3366 = vst.msk [vmem:[#allocation9 + $0x34] sm:$0xf] %vm3352, %v3331
    %3367 = vst.msk [vmem:[#allocation9 + $0x38] sm:$0xf] %vm3352, %v3333
    %3368 = vst.msk [vmem:[#allocation9 + $0x3c] sm:$0xf] %vm3352, %v3335
    %v3369 = vsel %vm1695, %v3240, 0.0
    %v3370 = vsel %vm1695, %v3241, 0.0
    %v3371 = vadd.f32 %v3369, %v3370
    %v3372 = vsel %vm1695, %v3242, 0.0
    %v3373 = vadd.f32 %v3371, %v3372
    %v3374 = vsel %vm1695, %v3243, 0.0
    %v3375 = vadd.f32 %v3373, %v3374
    %v3376 = vsel %vm1695, %v3244, 0.0
    %v3377 = vadd.f32 %v3375, %v3376
    %v3378 = vsel %vm1695, %v3245, 0.0
    %v3379 = vadd.f32 %v3377, %v3378
    %v3380 = vsel %vm1695, %v3246, 0.0
    %v3381 = vadd.f32 %v3379, %v3380
    %v3382 = vsel %vm1695, %v3247, 0.0
    %v3383 = vadd.f32 %v3381, %v3382
    %v3384 = vsel %vm1695, %v3248, 0.0
    %v3385 = vadd.f32 %v3383, %v3384
    %v3386 = vsel %vm1695, %v3249, 0.0
    %v3387 = vadd.f32 %v3385, %v3386
    %v3388 = vsel %vm1695, %v3250, 0.0
    %v3389 = vadd.f32 %v3387, %v3388
    %v3390 = vsel %vm1695, %v3251, 0.0
    %v3391 = vadd.f32 %v3389, %v3390
    %v3392 = vsel %vm1695, %v3252, 0.0
    %v3393 = vadd.f32 %v3391, %v3392
    %v3394 = vsel %vm1695, %v3253, 0.0
    %v3395 = vadd.f32 %v3393, %v3394
    %v3396 = vsel %vm1695, %v3254, 0.0
    %v3397 = vadd.f32 %v3395, %v3396
    %v3398 = vsel %vm1695, %v3255, 0.0
    %v3399 = vadd.f32 %v3397, %v3398
    %v3400 = vrot.slane %v3399, 4
    %v3401 = vadd.f32 %v3399, %v3400
    %v3402 = vrot.slane %v3401, 2
    %v3403 = vadd.f32 %v3401, %v3402
    %v3404 = vrot.slane %v3403, 1
    %v3405 = vadd.f32 %v3403, %v3404
    %v3406 = vmul.f32 %v3240, %v3240
    %v3407 = vmul.f32 %v3241, %v3241
    %v3408 = vmul.f32 %v3242, %v3242
    %v3409 = vmul.f32 %v3243, %v3243
    %v3410 = vmul.f32 %v3244, %v3244
    %v3411 = vmul.f32 %v3245, %v3245
    %v3412 = vmul.f32 %v3246, %v3246
    %v3413 = vmul.f32 %v3247, %v3247
    %v3414 = vmul.f32 %v3248, %v3248
    %v3415 = vmul.f32 %v3249, %v3249
    %v3416 = vmul.f32 %v3250, %v3250
    %v3417 = vmul.f32 %v3251, %v3251
    %v3418 = vmul.f32 %v3252, %v3252
    %v3419 = vmul.f32 %v3253, %v3253
    %v3420 = vmul.f32 %v3254, %v3254
    %v3421 = vmul.f32 %v3255, %v3255
    %v3422 = vsel %vm1695, %v3406, 0.0
    %v3423 = vsel %vm1695, %v3407, 0.0
    %v3424 = vadd.f32 %v3422, %v3423
    %v3425 = vsel %vm1695, %v3408, 0.0
    %v3426 = vadd.f32 %v3424, %v3425
    %v3427 = vsel %vm1695, %v3409, 0.0
    %v3428 = vadd.f32 %v3426, %v3427
    %v3429 = vsel %vm1695, %v3410, 0.0
    %v3430 = vadd.f32 %v3428, %v3429
    %v3431 = vsel %vm1695, %v3411, 0.0
    %v3432 = vadd.f32 %v3430, %v3431
    %v3433 = vsel %vm1695, %v3412, 0.0
    %v3434 = vadd.f32 %v3432, %v3433
    %v3435 = vsel %vm1695, %v3413, 0.0
    %v3436 = vadd.f32 %v3434, %v3435
    %v3437 = vsel %vm1695, %v3414, 0.0
    %v3438 = vadd.f32 %v3436, %v3437
    %v3439 = vsel %vm1695, %v3415, 0.0
    %v3440 = vadd.f32 %v3438, %v3439
    %v3441 = vsel %vm1695, %v3416, 0.0
    %v3442 = vadd.f32 %v3440, %v3441
    %v3443 = vsel %vm1695, %v3417, 0.0
    %v3444 = vadd.f32 %v3442, %v3443
    %v3445 = vsel %vm1695, %v3418, 0.0
    %v3446 = vadd.f32 %v3444, %v3445
    %v3447 = vsel %vm1695, %v3419, 0.0
    %v3448 = vadd.f32 %v3446, %v3447
    %v3449 = vsel %vm1695, %v3420, 0.0
    %v3450 = vadd.f32 %v3448, %v3449
    %v3451 = vsel %vm1695, %v3421, 0.0
    %v3452 = vadd.f32 %v3450, %v3451
    %v3453 = vrot.slane %v3452, 4
    %v3454 = vadd.f32 %v3452, %v3453
    %v3455 = vrot.slane %v3454, 2
    %v3456 = vadd.f32 %v3454, %v3455
    %v3457 = vrot.slane %v3456, 1
    %v3458 = vadd.f32 %v3456, %v3457
    %v3459 = vadd.f32 %v2621, %v3405
    %v3460 = vadd.f32 %v2622, %v3458
    %v3461 = vld [vmem:[%s965 + $0x1] sm:$0xff]
    %v3462 = vld [vmem:[%s965 + $0x11] sm:$0xff]
    %v3463 = vld [vmem:[%s965 + $0x21] sm:$0xff]
    %v3464 = vld [vmem:[%s965 + $0x31] sm:$0xff]
    %v3465 = vld [vmem:[%s965 + $0x41] sm:$0xff]
    %v3466 = vld [vmem:[%s965 + $0x51] sm:$0xff]
    %v3467 = vld [vmem:[%s965 + $0x61] sm:$0xff]
    %v3468 = vld [vmem:[%s965 + $0x71] sm:$0xff]
    %v3469 = vld [vmem:[%s965 + $0xa1] sm:$0xff]
    %v3470 = vld [vmem:[%s965 + $0xb1] sm:$0xff]
    %v3471 = vld [vmem:[%s965 + $0xc1] sm:$0xff]
    %v3472 = vld [vmem:[%s965 + $0xd1] sm:$0xff]
    %v3473 = vld [vmem:[%s965 + $0xe1] sm:$0xff]
    %v3474 = vld [vmem:[%s965 + $0xf1] sm:$0xff]
    %v3475 = vld [vmem:[%s965 + $0x101] sm:$0xff]
    %v3476 = vld [vmem:[%s965 + $0x111] sm:$0xff]
    %v3477 = vpack.c.bf16 %v3462, %v3461
    %v3478 = vpack.c.bf16 %v3464, %v3463
    %v3479 = vpack.c.bf16 %v3466, %v3465
    %v3480 = vpack.c.bf16 %v3468, %v3467
    %v3481 = vpack.c.bf16 %v3470, %v3469
    %v3482 = vpack.c.bf16 %v3472, %v3471
    %v3483 = vpack.c.bf16 %v3474, %v3473
    %v3484 = vpack.c.bf16 %v3476, %v3475
    %s3485 = scalar_lea.vmem [#allocation8], 48
    %v3486 = vld [vmem:[%s3485] sm:$0xf]
    %v3487 = vld [vmem:[%s965 + $0x2] sm:$0xff]
    %v3488 = vld [vmem:[%s965 + $0x12] sm:$0xff]
    %v3489 = vld [vmem:[%s965 + $0x22] sm:$0xff]
    %v3490 = vld [vmem:[%s965 + $0x32] sm:$0xff]
    %v3491 = vld [vmem:[%s965 + $0x42] sm:$0xff]
    %v3492 = vld [vmem:[%s965 + $0x52] sm:$0xff]
    %v3493 = vld [vmem:[%s965 + $0x62] sm:$0xff]
    %v3494 = vld [vmem:[%s965 + $0x72] sm:$0xff]
    %v3495 = vld [vmem:[%s965 + $0xa2] sm:$0xff]
    %v3496 = vld [vmem:[%s965 + $0xb2] sm:$0xff]
    %v3497 = vld [vmem:[%s965 + $0xc2] sm:$0xff]
    %v3498 = vld [vmem:[%s965 + $0xd2] sm:$0xff]
    %v3499 = vld [vmem:[%s965 + $0xe2] sm:$0xff]
    %v3500 = vld [vmem:[%s965 + $0xf2] sm:$0xff]
    %v3501 = vld [vmem:[%s965 + $0x102] sm:$0xff]
    %v3502 = vld [vmem:[%s965 + $0x112] sm:$0xff]
    %v3503 = vpack.c.bf16 %v3488, %v3487
    %v3504 = vpack.c.bf16 %v3490, %v3489
    %v3505 = vpack.c.bf16 %v3492, %v3491
    %v3506 = vpack.c.bf16 %v3494, %v3493
    %v3507 = vpack.c.bf16 %v3496, %v3495
    %v3508 = vpack.c.bf16 %v3498, %v3497
    %v3509 = vpack.c.bf16 %v3500, %v3499
    %v3510 = vpack.c.bf16 %v3502, %v3501
    %s3511 = scalar_lea.vmem [#allocation8], 52
    %v3512 = vld [vmem:[%s3511] sm:$0xf]
    %v3514 = vsel %vm913, %v3503, 0
    %v3517 = vsel %vm913, %v3504, 0
    %v3520 = vsel %vm913, %v3505, 0
    %v3523 = vsel %vm913, %v3506, 0
    %v3526 = vsel %vm913, %v3507, 0
    %v3529 = vsel %vm913, %v3508, 0
    %v3532 = vsel %vm913, %v3509, 0
    %v3535 = vsel %vm913, %v3510, 0
    %v3538 = vsel %vm1057, %v3512, 0
    %3540 = vmatprep.subr.bf16.mxu0 0
    %3541 = vmatpush1.bf16.msra.mxu0 %v3538
    %3542 = vmatprep.subr.bf16.mxu0 0
    %3543 = vmatpush1.bf16.msra.mxu0 0
    %3544 = vmatprep.subr.bf16.mxu0 0
    %3545 = vmatpush1.bf16.msra.mxu0 0
    %3546 = vmatprep.subr.bf16.mxu0 0
    %3547 = vmatpush1.bf16.msra.mxu0 0
    %3548 = vmatprep.subr.bf16.mxu0 0
    %3549 = vmatpush1.bf16.msra.mxu0 0
    %3550 = vmatprep.subr.bf16.mxu0 0
    %3551 = vmatpush1.bf16.msra.mxu0 0
    %3552 = vmatprep.subr.bf16.mxu0 0
    %3553 = vmatpush1.bf16.msra.mxu0 0
    %3554 = vmatprep.subr.bf16.mxu0 0
    %3555 = vmatpush1.bf16.msra.mxu0 0
    %3556 = vmatprep.subr.bf16.mxu0 0
    %3557 = vmatpush1.bf16.msra.mxu0 0
    %3558 = vmatprep.subr.bf16.mxu0 0
    %3559 = vmatpush1.bf16.msra.mxu0 0
    %3560 = vmatprep.subr.bf16.mxu0 0
    %3561 = vmatpush1.bf16.msra.mxu0 0
    %3562 = vmatprep.subr.bf16.mxu0 0
    %3563 = vmatpush1.bf16.msra.mxu0 0
    %3564 = vmatprep.subr.bf16.mxu0 0
    %3565 = vmatpush1.bf16.msra.mxu0 0
    %3566 = vmatprep.subr.bf16.mxu0 0
    %3567 = vmatpush1.bf16.msra.mxu0 0
    %3568 = vmatprep.subr.bf16.mxu0 0
    %3569 = vmatpush1.bf16.msra.mxu0 0
    %3570 = vmatprep.subr.bf16.mxu0 0
    %3571 = vmatpush1.bf16.msra.mxu0 0
    %3572 = vmatprep.mubr.bf16.mxu0 0
    %3573 = vmatmul.mubr.bf16.gmra.mrb[0].mxu0 %v3514
    %v3574 = vpop.f32.mrb[0].mxu0
    %v3575 = vadd.f32 0.0, %v3574
    %v3576 = vpop.f32.mrb[0].mxu0
    %v3577 = vpop.f32.mrb[0].mxu0
    %v3578 = vadd.f32 0.0, %v3577
    %v3579 = vpop.f32.mrb[0].mxu0
    %3580 = vmatprep.mubr.bf16.mxu0 0
    %3581 = vmatmul.mubr.bf16.gmra.mrb[0].mxu0 %v3517
    %v3582 = vpop.f32.mrb[0].mxu0
    %v3583 = vadd.f32 0.0, %v3582
    %v3584 = vpop.f32.mrb[0].mxu0
    %v3585 = vpop.f32.mrb[0].mxu0
    %v3586 = vadd.f32 0.0, %v3585
    %v3587 = vpop.f32.mrb[0].mxu0
    %3588 = vmatprep.mubr.bf16.mxu0 0
    %3589 = vmatmul.mubr.bf16.gmra.mrb[0].mxu0 %v3520
    %v3590 = vpop.f32.mrb[0].mxu0
    %v3591 = vadd.f32 0.0, %v3590
    %v3592 = vpop.f32.mrb[0].mxu0
    %v3593 = vpop.f32.mrb[0].mxu0
    %v3594 = vadd.f32 0.0, %v3593
    %v3595 = vpop.f32.mrb[0].mxu0
    %3596 = vmatprep.mubr.bf16.mxu0 0
    %3597 = vmatmul.mubr.bf16.gmra.mrb[0].mxu0 %v3523
    %v3598 = vpop.f32.mrb[0].mxu0
    %v3599 = vadd.f32 0.0, %v3598
    %v3600 = vpop.f32.mrb[0].mxu0
    %v3601 = vpop.f32.mrb[0].mxu0
    %v3602 = vadd.f32 0.0, %v3601
    %v3603 = vpop.f32.mrb[0].mxu0
    %3604 = vmatprep.mubr.bf16.mxu0 0
    %3605 = vmatmul.mubr.bf16.gmra.mrb[0].mxu0 %v3526
    %v3606 = vpop.f32.mrb[0].mxu0
    %v3607 = vadd.f32 0.0, %v3606
    %v3608 = vpop.f32.mrb[0].mxu0
    %v3609 = vpop.f32.mrb[0].mxu0
    %v3610 = vadd.f32 0.0, %v3609
    %v3611 = vpop.f32.mrb[0].mxu0
    %3612 = vmatprep.mubr.bf16.mxu0 0
    %3613 = vmatmul.mubr.bf16.gmra.mrb[0].mxu0 %v3529
    %v3614 = vpop.f32.mrb[0].mxu0
    %v3615 = vadd.f32 0.0, %v3614
    %v3616 = vpop.f32.mrb[0].mxu0
    %v3617 = vpop.f32.mrb[0].mxu0
    %v3618 = vadd.f32 0.0, %v3617
    %v3619 = vpop.f32.mrb[0].mxu0
    %3620 = vmatprep.mubr.bf16.mxu0 0
    %3621 = vmatmul.mubr.bf16.gmra.mrb[0].mxu0 %v3532
    %v3622 = vpop.f32.mrb[0].mxu0
    %v3623 = vadd.f32 0.0, %v3622
    %v3624 = vpop.f32.mrb[0].mxu0
    %v3625 = vpop.f32.mrb[0].mxu0
    %v3626 = vadd.f32 0.0, %v3625
    %v3627 = vpop.f32.mrb[0].mxu0
    %3628 = vmatprep.mubr.bf16.mxu0 0
    %3629 = vmatmul.mubr.bf16.gmra.mrb[0].mxu0 %v3535
    %v3630 = vpop.f32.mrb[0].mxu0
    %v3631 = vadd.f32 0.0, %v3630
    %v3632 = vpop.f32.mrb[0].mxu0
    %v3633 = vpop.f32.mrb[0].mxu0
    %v3634 = vadd.f32 0.0, %v3633
    %v3635 = vpop.f32.mrb[0].mxu0
    %3636 = vdwg.mxu0
    %v3638 = vsel %vm913, %v3477, 0
    %v3641 = vsel %vm913, %v3478, 0
    %v3644 = vsel %vm913, %v3479, 0
    %v3647 = vsel %vm913, %v3480, 0
    %v3650 = vsel %vm913, %v3481, 0
    %v3653 = vsel %vm913, %v3482, 0
    %v3656 = vsel %vm913, %v3483, 0
    %v3659 = vsel %vm913, %v3484, 0
    %v3662 = vsel %vm1057, %v3486, 0
    %3664 = vmatprep.subr.bf16.mxu0 0
    %3665 = vmatpush1.bf16.msra.mxu0 %v3662
    %3666 = vmatprep.subr.bf16.mxu0 0
    %3667 = vmatpush1.bf16.msra.mxu0 0
    %3668 = vmatprep.subr.bf16.mxu0 0
    %3669 = vmatpush1.bf16.msra.mxu0 0
    %3670 = vmatprep.subr.bf16.mxu0 0
    %3671 = vmatpush1.bf16.msra.mxu0 0
    %3672 = vmatprep.subr.bf16.mxu0 0
    %3673 = vmatpush1.bf16.msra.mxu0 0
    %3674 = vmatprep.subr.bf16.mxu0 0
    %3675 = vmatpush1.bf16.msra.mxu0 0
    %3676 = vmatprep.subr.bf16.mxu0 0
    %3677 = vmatpush1.bf16.msra.mxu0 0
    %3678 = vmatprep.subr.bf16.mxu0 0
    %3679 = vmatpush1.bf16.msra.mxu0 0
    %3680 = vmatprep.subr.bf16.mxu0 0
    %3681 = vmatpush1.bf16.msra.mxu0 0
    %3682 = vmatprep.subr.bf16.mxu0 0
    %3683 = vmatpush1.bf16.msra.mxu0 0
    %3684 = vmatprep.subr.bf16.mxu0 0
    %3685 = vmatpush1.bf16.msra.mxu0 0
    %3686 = vmatprep.subr.bf16.mxu0 0
    %3687 = vmatpush1.bf16.msra.mxu0 0
    %3688 = vmatprep.subr.bf16.mxu0 0
    %3689 = vmatpush1.bf16.msra.mxu0 0
    %3690 = vmatprep.subr.bf16.mxu0 0
    %3691 = vmatpush1.bf16.msra.mxu0 0
    %3692 = vmatprep.subr.bf16.mxu0 0
    %3693 = vmatpush1.bf16.msra.mxu0 0
    %3694 = vmatprep.subr.bf16.mxu0 0
    %3695 = vmatpush1.bf16.msra.mxu0 0
    %3696 = vmatprep.mubr.bf16.mxu0 0
    %3697 = vmatmul.mubr.bf16.gmra.mrb[0].mxu0 %v3638
    %v3698 = vpop.f32.mrb[0].mxu0
    %v3699 = vadd.f32 %v3575, %v3698
    %v3700 = vpop.f32.mrb[0].mxu0
    %v3701 = vpop.f32.mrb[0].mxu0
    %v3702 = vadd.f32 %v3578, %v3701
    %v3703 = vpop.f32.mrb[0].mxu0
    %3704 = vmatprep.mubr.bf16.mxu0 0
    %3705 = vmatmul.mubr.bf16.gmra.mrb[0].mxu0 %v3641
    %v3706 = vpop.f32.mrb[0].mxu0
    %v3707 = vadd.f32 %v3583, %v3706
    %v3708 = vpop.f32.mrb[0].mxu0
    %v3709 = vpop.f32.mrb[0].mxu0
    %v3710 = vadd.f32 %v3586, %v3709
    %v3711 = vpop.f32.mrb[0].mxu0
    %3712 = vmatprep.mubr.bf16.mxu0 0
    %3713 = vmatmul.mubr.bf16.gmra.mrb[0].mxu0 %v3644
    %v3714 = vpop.f32.mrb[0].mxu0
    %v3715 = vadd.f32 %v3591, %v3714
    %v3716 = vpop.f32.mrb[0].mxu0
    %v3717 = vpop.f32.mrb[0].mxu0
    %v3718 = vadd.f32 %v3594, %v3717
    %v3719 = vpop.f32.mrb[0].mxu0
    %3720 = vmatprep.mubr.bf16.mxu0 0
    %3721 = vmatmul.mubr.bf16.gmra.mrb[0].mxu0 %v3647
    %v3722 = vpop.f32.mrb[0].mxu0
    %v3723 = vadd.f32 %v3599, %v3722
    %v3724 = vpop.f32.mrb[0].mxu0
    %v3725 = vpop.f32.mrb[0].mxu0
    %v3726 = vadd.f32 %v3602, %v3725
    %v3727 = vpop.f32.mrb[0].mxu0
    %3728 = vmatprep.mubr.bf16.mxu0 0
    %3729 = vmatmul.mubr.bf16.gmra.mrb[0].mxu0 %v3650
    %v3730 = vpop.f32.mrb[0].mxu0
    %v3731 = vadd.f32 %v3607, %v3730
    %v3732 = vpop.f32.mrb[0].mxu0
    %v3733 = vpop.f32.mrb[0].mxu0
    %v3734 = vadd.f32 %v3610, %v3733
    %v3735 = vpop.f32.mrb[0].mxu0
    %3736 = vmatprep.mubr.bf16.mxu0 0
    %3737 = vmatmul.mubr.bf16.gmra.mrb[0].mxu0 %v3653
    %v3738 = vpop.f32.mrb[0].mxu0
    %v3739 = vadd.f32 %v3615, %v3738
    %v3740 = vpop.f32.mrb[0].mxu0
    %v3741 = vpop.f32.mrb[0].mxu0
    %v3742 = vadd.f32 %v3618, %v3741
    %v3743 = vpop.f32.mrb[0].mxu0
    %3744 = vmatprep.mubr.bf16.mxu0 0
    %3745 = vmatmul.mubr.bf16.gmra.mrb[0].mxu0 %v3656
    %v3746 = vpop.f32.mrb[0].mxu0
    %v3747 = vadd.f32 %v3623, %v3746
    %v3748 = vpop.f32.mrb[0].mxu0
    %v3749 = vpop.f32.mrb[0].mxu0
    %v3750 = vadd.f32 %v3626, %v3749
    %v3751 = vpop.f32.mrb[0].mxu0
    %3752 = vmatprep.mubr.bf16.mxu0 0
    %3753 = vmatmul.mubr.bf16.gmra.mrb[0].mxu0 %v3659
    %v3754 = vpop.f32.mrb[0].mxu0
    %v3755 = vadd.f32 %v3631, %v3754
    %v3756 = vpop.f32.mrb[0].mxu0
    %v3757 = vpop.f32.mrb[0].mxu0
    %v3758 = vadd.f32 %v3634, %v3757
    %v3759 = vpop.f32.mrb[0].mxu0
    %3760 = vdwg.mxu0
    %v3761 = vld [vmem:[%s2923 + $0x1] sm:$0xff]
    %v3762 = vld [vmem:[%s2923 + $0x11] sm:$0xff]
    %v3763 = vld [vmem:[%s2923 + $0x21] sm:$0xff]
    %v3764 = vld [vmem:[%s2923 + $0x31] sm:$0xff]
    %v3765 = vld [vmem:[%s2923 + $0x41] sm:$0xff]
    %v3766 = vld [vmem:[%s2923 + $0x51] sm:$0xff]
    %v3767 = vld [vmem:[%s2923 + $0x61] sm:$0xff]
    %v3768 = vld [vmem:[%s2923 + $0x71] sm:$0xff]
    %v3769 = vld [vmem:[%s2923 + $0xa1] sm:$0xff]
    %v3770 = vld [vmem:[%s2923 + $0xb1] sm:$0xff]
    %v3771 = vld [vmem:[%s2923 + $0xc1] sm:$0xff]
    %v3772 = vld [vmem:[%s2923 + $0xd1] sm:$0xff]
    %v3773 = vld [vmem:[%s2923 + $0xe1] sm:$0xff]
    %v3774 = vld [vmem:[%s2923 + $0xf1] sm:$0xff]
    %v3775 = vld [vmem:[%s2923 + $0x101] sm:$0xff]
    %v3776 = vld [vmem:[%s2923 + $0x111] sm:$0xff]
    %v3777 = vpack.c.bf16 %v3762, %v3761
    %v3778 = vpack.c.bf16 %v3764, %v3763
    %v3779 = vpack.c.bf16 %v3766, %v3765
    %v3780 = vpack.c.bf16 %v3768, %v3767
    %v3781 = vpack.c.bf16 %v3770, %v3769
    %v3782 = vpack.c.bf16 %v3772, %v3771
    %v3783 = vpack.c.bf16 %v3774, %v3773
    %v3784 = vpack.c.bf16 %v3776, %v3775
    %s3785 = scalar_lea.vmem [#allocation8], 56
    %v3786 = vld [vmem:[%s3785] sm:$0xf]
    %v3788 = vsel %vm913, %v3777, 0
    %v3791 = vsel %vm913, %v3778, 0
    %v3794 = vsel %vm913, %v3779, 0
    %v3797 = vsel %vm913, %v3780, 0
    %v3800 = vsel %vm913, %v3781, 0
    %v3803 = vsel %vm913, %v3782, 0
    %v3806 = vsel %vm913, %v3783, 0
    %v3809 = vsel %vm913, %v3784, 0
    %v3812 = vsel %vm1057, %v3786, 0
    %3814 = vmatprep.subr.bf16.mxu0 0
    %3815 = vmatpush1.bf16.msra.mxu0 %v3812
    %3816 = vmatprep.subr.bf16.mxu0 0
    %3817 = vmatpush1.bf16.msra.mxu0 0
    %3818 = vmatprep.subr.bf16.mxu0 0
    %3819 = vmatpush1.bf16.msra.mxu0 0
    %3820 = vmatprep.subr.bf16.mxu0 0
    %3821 = vmatpush1.bf16.msra.mxu0 0
    %3822 = vmatprep.subr.bf16.mxu0 0
    %3823 = vmatpush1.bf16.msra.mxu0 0
    %3824 = vmatprep.subr.bf16.mxu0 0
    %3825 = vmatpush1.bf16.msra.mxu0 0
    %3826 = vmatprep.subr.bf16.mxu0 0
    %3827 = vmatpush1.bf16.msra.mxu0 0
    %3828 = vmatprep.subr.bf16.mxu0 0
    %3829 = vmatpush1.bf16.msra.mxu0 0
    %3830 = vmatprep.subr.bf16.mxu0 0
    %3831 = vmatpush1.bf16.msra.mxu0 0
    %3832 = vmatprep.subr.bf16.mxu0 0
    %3833 = vmatpush1.bf16.msra.mxu0 0
    %3834 = vmatprep.subr.bf16.mxu0 0
    %3835 = vmatpush1.bf16.msra.mxu0 0
    %3836 = vmatprep.subr.bf16.mxu0 0
    %3837 = vmatpush1.bf16.msra.mxu0 0
    %3838 = vmatprep.subr.bf16.mxu0 0
    %3839 = vmatpush1.bf16.msra.mxu0 0
    %3840 = vmatprep.subr.bf16.mxu0 0
    %3841 = vmatpush1.bf16.msra.mxu0 0
    %3842 = vmatprep.subr.bf16.mxu0 0
    %3843 = vmatpush1.bf16.msra.mxu0 0
    %3844 = vmatprep.subr.bf16.mxu0 0
    %3845 = vmatpush1.bf16.msra.mxu0 0
    %3846 = vmatprep.mubr.bf16.mxu0 0
    %3847 = vmatmul.mubr.bf16.gmra.mrb[0].mxu0 %v3788
    %v3848 = vpop.f32.mrb[0].mxu0
    %v3849 = vadd.f32 0.0, %v3848
    %v3850 = vpop.f32.mrb[0].mxu0
    %v3851 = vpop.f32.mrb[0].mxu0
    %v3852 = vadd.f32 0.0, %v3851
    %v3853 = vpop.f32.mrb[0].mxu0
    %3854 = vmatprep.mubr.bf16.mxu0 0
    %3855 = vmatmul.mubr.bf16.gmra.mrb[0].mxu0 %v3791
    %v3856 = vpop.f32.mrb[0].mxu0
    %v3857 = vadd.f32 0.0, %v3856
    %v3858 = vpop.f32.mrb[0].mxu0
    %v3859 = vpop.f32.mrb[0].mxu0
    %v3860 = vadd.f32 0.0, %v3859
    %v3861 = vpop.f32.mrb[0].mxu0
    %3862 = vmatprep.mubr.bf16.mxu0 0
    %3863 = vmatmul.mubr.bf16.gmra.mrb[0].mxu0 %v3794
    %v3864 = vpop.f32.mrb[0].mxu0
    %v3865 = vadd.f32 0.0, %v3864
    %v3866 = vpop.f32.mrb[0].mxu0
    %v3867 = vpop.f32.mrb[0].mxu0
    %v3868 = vadd.f32 0.0, %v3867
    %v3869 = vpop.f32.mrb[0].mxu0
    %3870 = vmatprep.mubr.bf16.mxu0 0
    %3871 = vmatmul.mubr.bf16.gmra.mrb[0].mxu0 %v3797
    %v3872 = vpop.f32.mrb[0].mxu0
    %v3873 = vadd.f32 0.0, %v3872
    %v3874 = vpop.f32.mrb[0].mxu0
    %v3875 = vpop.f32.mrb[0].mxu0
    %v3876 = vadd.f32 0.0, %v3875
    %v3877 = vpop.f32.mrb[0].mxu0
    %3878 = vmatprep.mubr.bf16.mxu0 0
    %3879 = vmatmul.mubr.bf16.gmra.mrb[0].mxu0 %v3800
    %v3880 = vpop.f32.mrb[0].mxu0
    %v3881 = vadd.f32 0.0, %v3880
    %v3882 = vpop.f32.mrb[0].mxu0
    %v3883 = vpop.f32.mrb[0].mxu0
    %v3884 = vadd.f32 0.0, %v3883
    %v3885 = vpop.f32.mrb[0].mxu0
    %3886 = vmatprep.mubr.bf16.mxu0 0
    %3887 = vmatmul.mubr.bf16.gmra.mrb[0].mxu0 %v3803
    %v3888 = vpop.f32.mrb[0].mxu0
    %v3889 = vadd.f32 0.0, %v3888
    %v3890 = vpop.f32.mrb[0].mxu0
    %v3891 = vpop.f32.mrb[0].mxu0
    %v3892 = vadd.f32 0.0, %v3891
    %v3893 = vpop.f32.mrb[0].mxu0
    %3894 = vmatprep.mubr.bf16.mxu0 0
    %3895 = vmatmul.mubr.bf16.gmra.mrb[0].mxu0 %v3806
    %v3896 = vpop.f32.mrb[0].mxu0
    %v3897 = vadd.f32 0.0, %v3896
    %v3898 = vpop.f32.mrb[0].mxu0
    %v3899 = vpop.f32.mrb[0].mxu0
    %v3900 = vadd.f32 0.0, %v3899
    %v3901 = vpop.f32.mrb[0].mxu0
    %3902 = vmatprep.mubr.bf16.mxu0 0
    %3903 = vmatmul.mubr.bf16.gmra.mrb[0].mxu0 %v3809
    %v3904 = vpop.f32.mrb[0].mxu0
    %v3905 = vadd.f32 0.0, %v3904
    %v3906 = vpop.f32.mrb[0].mxu0
    %v3907 = vpop.f32.mrb[0].mxu0
    %v3908 = vadd.f32 0.0, %v3907
    %v3909 = vpop.f32.mrb[0].mxu0
    %3910 = vdwg.mxu0
    %v3911 = vadd.f32 %v3699, %v3849
    %v3912 = vadd.f32 %v3702, %v3852
    %v3913 = vadd.f32 %v3707, %v3857
    %v3914 = vadd.f32 %v3710, %v3860
    %v3915 = vadd.f32 %v3715, %v3865
    %v3916 = vadd.f32 %v3718, %v3868
    %v3917 = vadd.f32 %v3723, %v3873
    %v3918 = vadd.f32 %v3726, %v3876
    %v3919 = vadd.f32 %v3731, %v3881
    %v3920 = vadd.f32 %v3734, %v3884
    %v3921 = vadd.f32 %v3739, %v3889
    %v3922 = vadd.f32 %v3742, %v3892
    %v3923 = vadd.f32 %v3747, %v3897
    %v3924 = vadd.f32 %v3750, %v3900
    %v3925 = vadd.f32 %v3755, %v3905
    %v3926 = vadd.f32 %v3758, %v3908
    %v3927 = vld [vmem:[%s2923 + $0x2] sm:$0xff]
    %v3928 = vld [vmem:[%s2923 + $0x12] sm:$0xff]
    %v3929 = vld [vmem:[%s2923 + $0x22] sm:$0xff]
    %v3930 = vld [vmem:[%s2923 + $0x32] sm:$0xff]
    %v3931 = vld [vmem:[%s2923 + $0x42] sm:$0xff]
    %v3932 = vld [vmem:[%s2923 + $0x52] sm:$0xff]
    %v3933 = vld [vmem:[%s2923 + $0x62] sm:$0xff]
    %v3934 = vld [vmem:[%s2923 + $0x72] sm:$0xff]
    %v3935 = vld [vmem:[%s2923 + $0xa2] sm:$0xff]
    %v3936 = vld [vmem:[%s2923 + $0xb2] sm:$0xff]
    %v3937 = vld [vmem:[%s2923 + $0xc2] sm:$0xff]
    %v3938 = vld [vmem:[%s2923 + $0xd2] sm:$0xff]
    %v3939 = vld [vmem:[%s2923 + $0xe2] sm:$0xff]
    %v3940 = vld [vmem:[%s2923 + $0xf2] sm:$0xff]
    %v3941 = vld [vmem:[%s2923 + $0x102] sm:$0xff]
    %v3942 = vld [vmem:[%s2923 + $0x112] sm:$0xff]
    %v3943 = vpack.c.bf16 %v3928, %v3927
    %v3944 = vpack.c.bf16 %v3930, %v3929
    %v3945 = vpack.c.bf16 %v3932, %v3931
    %v3946 = vpack.c.bf16 %v3934, %v3933
    %v3947 = vpack.c.bf16 %v3936, %v3935
    %v3948 = vpack.c.bf16 %v3938, %v3937
    %v3949 = vpack.c.bf16 %v3940, %v3939
    %v3950 = vpack.c.bf16 %v3942, %v3941
    %s3951 = scalar_lea.vmem [#allocation8], 60
    %v3952 = vld [vmem:[%s3951] sm:$0xf]
    %v3954 = vsel %vm913, %v3943, 0
    %v3957 = vsel %vm913, %v3944, 0
    %v3960 = vsel %vm913, %v3945, 0
    %v3963 = vsel %vm913, %v3946, 0
    %v3966 = vsel %vm913, %v3947, 0
    %v3969 = vsel %vm913, %v3948, 0
    %v3972 = vsel %vm913, %v3949, 0
    %v3975 = vsel %vm913, %v3950, 0
    %v3978 = vsel %vm1057, %v3952, 0
    %3980 = vmatprep.subr.bf16.mxu0 0
    %3981 = vmatpush1.bf16.msra.mxu0 %v3978
    %3982 = vmatprep.subr.bf16.mxu0 0
    %3983 = vmatpush1.bf16.msra.mxu0 0
    %3984 = vmatprep.subr.bf16.mxu0 0
    %3985 = vmatpush1.bf16.msra.mxu0 0
    %3986 = vmatprep.subr.bf16.mxu0 0
    %3987 = vmatpush1.bf16.msra.mxu0 0
    %3988 = vmatprep.subr.bf16.mxu0 0
    %3989 = vmatpush1.bf16.msra.mxu0 0
    %3990 = vmatprep.subr.bf16.mxu0 0
    %3991 = vmatpush1.bf16.msra.mxu0 0
    %3992 = vmatprep.subr.bf16.mxu0 0
    %3993 = vmatpush1.bf16.msra.mxu0 0
    %3994 = vmatprep.subr.bf16.mxu0 0
    %3995 = vmatpush1.bf16.msra.mxu0 0
    %3996 = vmatprep.subr.bf16.mxu0 0
    %3997 = vmatpush1.bf16.msra.mxu0 0
    %3998 = vmatprep.subr.bf16.mxu0 0
    %3999 = vmatpush1.bf16.msra.mxu0 0
    %4000 = vmatprep.subr.bf16.mxu0 0
    %4001 = vmatpush1.bf16.msra.mxu0 0
    %4002 = vmatprep.subr.bf16.mxu0 0
    %4003 = vmatpush1.bf16.msra.mxu0 0
    %4004 = vmatprep.subr.bf16.mxu0 0
    %4005 = vmatpush1.bf16.msra.mxu0 0
    %4006 = vmatprep.subr.bf16.mxu0 0
    %4007 = vmatpush1.bf16.msra.mxu0 0
    %4008 = vmatprep.subr.bf16.mxu0 0
    %4009 = vmatpush1.bf16.msra.mxu0 0
    %4010 = vmatprep.subr.bf16.mxu0 0
    %4011 = vmatpush1.bf16.msra.mxu0 0
    %4012 = vmatprep.mubr.bf16.mxu0 0
    %4013 = vmatmul.mubr.bf16.gmra.mrb[0].mxu0 %v3954
    %v4014 = vpop.f32.mrb[0].mxu0
    %v4015 = vadd.f32 0.0, %v4014
    %v4016 = vpop.f32.mrb[0].mxu0
    %v4017 = vpop.f32.mrb[0].mxu0
    %v4018 = vadd.f32 0.0, %v4017
    %v4019 = vpop.f32.mrb[0].mxu0
    %4020 = vmatprep.mubr.bf16.mxu0 0
    %4021 = vmatmul.mubr.bf16.gmra.mrb[0].mxu0 %v3957
    %v4022 = vpop.f32.mrb[0].mxu0
    %v4023 = vadd.f32 0.0, %v4022
    %v4024 = vpop.f32.mrb[0].mxu0
    %v4025 = vpop.f32.mrb[0].mxu0
    %v4026 = vadd.f32 0.0, %v4025
    %v4027 = vpop.f32.mrb[0].mxu0
    %4028 = vmatprep.mubr.bf16.mxu0 0
    %4029 = vmatmul.mubr.bf16.gmra.mrb[0].mxu0 %v3960
    %v4030 = vpop.f32.mrb[0].mxu0
    %v4031 = vadd.f32 0.0, %v4030
    %v4032 = vpop.f32.mrb[0].mxu0
    %v4033 = vpop.f32.mrb[0].mxu0
    %v4034 = vadd.f32 0.0, %v4033
    %v4035 = vpop.f32.mrb[0].mxu0
    %4036 = vmatprep.mubr.bf16.mxu0 0
    %4037 = vmatmul.mubr.bf16.gmra.mrb[0].mxu0 %v3963
    %v4038 = vpop.f32.mrb[0].mxu0
    %v4039 = vadd.f32 0.0, %v4038
    %v4040 = vpop.f32.mrb[0].mxu0
    %v4041 = vpop.f32.mrb[0].mxu0
    %v4042 = vadd.f32 0.0, %v4041
    %v4043 = vpop.f32.mrb[0].mxu0
    %4044 = vmatprep.mubr.bf16.mxu0 0
    %4045 = vmatmul.mubr.bf16.gmra.mrb[0].mxu0 %v3966
    %v4046 = vpop.f32.mrb[0].mxu0
    %v4047 = vadd.f32 0.0, %v4046
    %v4048 = vpop.f32.mrb[0].mxu0
    %v4049 = vpop.f32.mrb[0].mxu0
    %v4050 = vadd.f32 0.0, %v4049
    %v4051 = vpop.f32.mrb[0].mxu0
    %4052 = vmatprep.mubr.bf16.mxu0 0
    %4053 = vmatmul.mubr.bf16.gmra.mrb[0].mxu0 %v3969
    %v4054 = vpop.f32.mrb[0].mxu0
    %v4055 = vadd.f32 0.0, %v4054
    %v4056 = vpop.f32.mrb[0].mxu0
    %v4057 = vpop.f32.mrb[0].mxu0
    %v4058 = vadd.f32 0.0, %v4057
    %v4059 = vpop.f32.mrb[0].mxu0
    %4060 = vmatprep.mubr.bf16.mxu0 0
    %4061 = vmatmul.mubr.bf16.gmra.mrb[0].mxu0 %v3972
    %v4062 = vpop.f32.mrb[0].mxu0
    %v4063 = vadd.f32 0.0, %v4062
    %v4064 = vpop.f32.mrb[0].mxu0
    %v4065 = vpop.f32.mrb[0].mxu0
    %v4066 = vadd.f32 0.0, %v4065
    %v4067 = vpop.f32.mrb[0].mxu0
    %4068 = vmatprep.mubr.bf16.mxu0 0
    %4069 = vmatmul.mubr.bf16.gmra.mrb[0].mxu0 %v3975
    %v4070 = vpop.f32.mrb[0].mxu0
    %v4071 = vadd.f32 0.0, %v4070
    %v4072 = vpop.f32.mrb[0].mxu0
    %v4073 = vpop.f32.mrb[0].mxu0
    %v4074 = vadd.f32 0.0, %v4073
    %v4075 = vpop.f32.mrb[0].mxu0
    %4076 = vdwg.mxu0
    %v4077 = vadd.f32 %v3911, %v4015
    %v4078 = vadd.f32 %v3912, %v4018
    %v4079 = vadd.f32 %v3913, %v4023
    %v4080 = vadd.f32 %v3914, %v4026
    %v4081 = vadd.f32 %v3915, %v4031
    %v4082 = vadd.f32 %v3916, %v4034
    %v4083 = vadd.f32 %v3917, %v4039
    %v4084 = vadd.f32 %v3918, %v4042
    %v4085 = vadd.f32 %v3919, %v4047
    %v4086 = vadd.f32 %v3920, %v4050
    %v4087 = vadd.f32 %v3921, %v4055
    %v4088 = vadd.f32 %v3922, %v4058
    %v4089 = vadd.f32 %v3923, %v4063
    %v4090 = vadd.f32 %v3924, %v4066
    %v4091 = vadd.f32 %v3925, %v4071
    %v4092 = vadd.f32 %v3926, %v4074
    %v4093 = vpack.c.bf16 %v4078, %v4077
    %v4094 = vpack.c.bf16 %v4080, %v4079
    %v4095 = vpack.c.bf16 %v4082, %v4081
    %v4096 = vpack.c.bf16 %v4084, %v4083
    %v4097 = vpack.c.bf16 %v4086, %v4085
    %v4098 = vpack.c.bf16 %v4088, %v4087
    %v4099 = vpack.c.bf16 %v4090, %v4089
    %v4100 = vpack.c.bf16 %v4092, %v4091
    %v4109 = vunpack.c.l.b16 %v4093
    %v4110 = vunpack.c.h.b16 %v4093
    %v4111 = vunpack.c.l.b16 %v4094
    %v4112 = vunpack.c.h.b16 %v4094
    %v4113 = vunpack.c.l.b16 %v4095
    %v4114 = vunpack.c.h.b16 %v4095
    %v4115 = vunpack.c.l.b16 %v4096
    %v4116 = vunpack.c.h.b16 %v4096
    %v4117 = vunpack.c.l.b16 %v4097
    %v4118 = vunpack.c.h.b16 %v4097
    %v4119 = vunpack.c.l.b16 %v4098
    %v4120 = vunpack.c.h.b16 %v4098
    %v4121 = vunpack.c.l.b16 %v4099
    %v4122 = vunpack.c.h.b16 %v4099
    %v4123 = vunpack.c.l.b16 %v4100
    %v4124 = vunpack.c.h.b16 %v4100
    %v4125 = vpack.c.b16 %v4109, %v4109
    %v4126 = vpack.c.b16 %v4110, %v4110
    %v4127 = vpack.c.b16 %v4111, %v4111
    %v4128 = vpack.c.b16 %v4112, %v4112
    %v4129 = vpack.c.b16 %v4113, %v4113
    %v4130 = vpack.c.b16 %v4114, %v4114
    %v4131 = vpack.c.b16 %v4115, %v4115
    %v4132 = vpack.c.b16 %v4116, %v4116
    %v4133 = vpack.c.b16 %v4117, %v4117
    %v4134 = vpack.c.b16 %v4118, %v4118
    %v4135 = vpack.c.b16 %v4119, %v4119
    %v4136 = vpack.c.b16 %v4120, %v4120
    %v4137 = vpack.c.b16 %v4121, %v4121
    %v4138 = vpack.c.b16 %v4122, %v4122
    %v4139 = vpack.c.b16 %v4123, %v4123
    %v4140 = vpack.c.b16 %v4124, %v4124
    %4141 = vrot.lane.b32.xlu0 %v4125, 12
    %v4142 = vpop.permute.xlu0 %4141
    %4143 = vrot.lane.b32.xlu0 %v4126, 12
    %v4144 = vpop.permute.xlu0 %4143
    %4145 = vrot.lane.b32.xlu0 %v4127, 12
    %v4146 = vpop.permute.xlu0 %4145
    %4147 = vrot.lane.b32.xlu0 %v4128, 12
    %v4148 = vpop.permute.xlu0 %4147
    %4149 = vrot.lane.b32.xlu0 %v4129, 12
    %v4150 = vpop.permute.xlu0 %4149
    %4151 = vrot.lane.b32.xlu0 %v4130, 12
    %v4152 = vpop.permute.xlu0 %4151
    %4153 = vrot.lane.b32.xlu0 %v4131, 12
    %v4154 = vpop.permute.xlu0 %4153
    %4155 = vrot.lane.b32.xlu0 %v4132, 12
    %v4156 = vpop.permute.xlu0 %4155
    %4157 = vrot.lane.b32.xlu0 %v4133, 12
    %v4158 = vpop.permute.xlu0 %4157
    %4159 = vrot.lane.b32.xlu0 %v4134, 12
    %v4160 = vpop.permute.xlu0 %4159
    %4161 = vrot.lane.b32.xlu0 %v4135, 12
    %v4162 = vpop.permute.xlu0 %4161
    %4163 = vrot.lane.b32.xlu0 %v4136, 12
    %v4164 = vpop.permute.xlu0 %4163
    %4165 = vrot.lane.b32.xlu0 %v4137, 12
    %v4166 = vpop.permute.xlu0 %4165
    %4167 = vrot.lane.b32.xlu0 %v4138, 12
    %v4168 = vpop.permute.xlu0 %4167
    %4169 = vrot.lane.b32.xlu0 %v4139, 12
    %v4170 = vpop.permute.xlu0 %4169
    %4171 = vrot.lane.b32.xlu0 %v4140, 12
    %v4172 = vpop.permute.xlu0 %4171
    %vm4189 = vcmask 126048
    %4190 = vst.msk [vmem:[#allocation9] sm:$0xf] %vm4189, %v4142
    %4191 = vst.msk [vmem:[#allocation9 + $0x4] sm:$0xf] %vm4189, %v4144
    %4192 = vst.msk [vmem:[#allocation9 + $0x8] sm:$0xf] %vm4189, %v4146
    %4193 = vst.msk [vmem:[#allocation9 + $0xc] sm:$0xf] %vm4189, %v4148
    %4194 = vst.msk [vmem:[#allocation9 + $0x10] sm:$0xf] %vm4189, %v4150
    %4195 = vst.msk [vmem:[#allocation9 + $0x14] sm:$0xf] %vm4189, %v4152
    %4196 = vst.msk [vmem:[#allocation9 + $0x18] sm:$0xf] %vm4189, %v4154
    %4197 = vst.msk [vmem:[#allocation9 + $0x1c] sm:$0xf] %vm4189, %v4156
    %4198 = vst.msk [vmem:[#allocation9 + $0x20] sm:$0xf] %vm4189, %v4158
    %4199 = vst.msk [vmem:[#allocation9 + $0x24] sm:$0xf] %vm4189, %v4160
    %4200 = vst.msk [vmem:[#allocation9 + $0x28] sm:$0xf] %vm4189, %v4162
    %4201 = vst.msk [vmem:[#allocation9 + $0x2c] sm:$0xf] %vm4189, %v4164
    %4202 = vst.msk [vmem:[#allocation9 + $0x30] sm:$0xf] %vm4189, %v4166
    %4203 = vst.msk [vmem:[#allocation9 + $0x34] sm:$0xf] %vm4189, %v4168
    %4204 = vst.msk [vmem:[#allocation9 + $0x38] sm:$0xf] %vm4189, %v4170
    %4205 = vst.msk [vmem:[#allocation9 + $0x3c] sm:$0xf] %vm4189, %v4172
    %v4206 = vsel %vm1695, %v4077, 0.0
    %v4207 = vsel %vm1695, %v4078, 0.0
    %v4208 = vadd.f32 %v4206, %v4207
    %v4209 = vsel %vm1695, %v4079, 0.0
    %v4210 = vadd.f32 %v4208, %v4209
    %v4211 = vsel %vm1695, %v4080, 0.0
    %v4212 = vadd.f32 %v4210, %v4211
    %v4213 = vsel %vm1695, %v4081, 0.0
    %v4214 = vadd.f32 %v4212, %v4213
    %v4215 = vsel %vm1695, %v4082, 0.0
    %v4216 = vadd.f32 %v4214, %v4215
    %v4217 = vsel %vm1695, %v4083, 0.0
    %v4218 = vadd.f32 %v4216, %v4217
    %v4219 = vsel %vm1695, %v4084, 0.0
    %v4220 = vadd.f32 %v4218, %v4219
    %v4221 = vsel %vm1695, %v4085, 0.0
    %v4222 = vadd.f32 %v4220, %v4221
    %v4223 = vsel %vm1695, %v4086, 0.0
    %v4224 = vadd.f32 %v4222, %v4223
    %v4225 = vsel %vm1695, %v4087, 0.0
    %v4226 = vadd.f32 %v4224, %v4225
    %v4227 = vsel %vm1695, %v4088, 0.0
    %v4228 = vadd.f32 %v4226, %v4227
    %v4229 = vsel %vm1695, %v4089, 0.0
    %v4230 = vadd.f32 %v4228, %v4229
    %v4231 = vsel %vm1695, %v4090, 0.0
    %v4232 = vadd.f32 %v4230, %v4231
    %v4233 = vsel %vm1695, %v4091, 0.0
    %v4234 = vadd.f32 %v4232, %v4233
    %v4235 = vsel %vm1695, %v4092, 0.0
    %v4236 = vadd.f32 %v4234, %v4235
    %v4237 = vrot.slane %v4236, 4
    %v4238 = vadd.f32 %v4236, %v4237
    %v4239 = vrot.slane %v4238, 2
    %v4240 = vadd.f32 %v4238, %v4239
    %v4241 = vrot.slane %v4240, 1
    %v4242 = vadd.f32 %v4240, %v4241
    %v4243 = vmul.f32 %v4077, %v4077
    %v4244 = vmul.f32 %v4078, %v4078
    %v4245 = vmul.f32 %v4079, %v4079
    %v4246 = vmul.f32 %v4080, %v4080
    %v4247 = vmul.f32 %v4081, %v4081
    %v4248 = vmul.f32 %v4082, %v4082
    %v4249 = vmul.f32 %v4083, %v4083
    %v4250 = vmul.f32 %v4084, %v4084
    %v4251 = vmul.f32 %v4085, %v4085
    %v4252 = vmul.f32 %v4086, %v4086
    %v4253 = vmul.f32 %v4087, %v4087
    %v4254 = vmul.f32 %v4088, %v4088
    %v4255 = vmul.f32 %v4089, %v4089
    %v4256 = vmul.f32 %v4090, %v4090
    %v4257 = vmul.f32 %v4091, %v4091
    %v4258 = vmul.f32 %v4092, %v4092
    %v4259 = vsel %vm1695, %v4243, 0.0
    %v4260 = vsel %vm1695, %v4244, 0.0
    %v4261 = vadd.f32 %v4259, %v4260
    %v4262 = vsel %vm1695, %v4245, 0.0
    %v4263 = vadd.f32 %v4261, %v4262
    %v4264 = vsel %vm1695, %v4246, 0.0
    %v4265 = vadd.f32 %v4263, %v4264
    %v4266 = vsel %vm1695, %v4247, 0.0
    %v4267 = vadd.f32 %v4265, %v4266
    %v4268 = vsel %vm1695, %v4248, 0.0
    %v4269 = vadd.f32 %v4267, %v4268
    %v4270 = vsel %vm1695, %v4249, 0.0
    %v4271 = vadd.f32 %v4269, %v4270
    %v4272 = vsel %vm1695, %v4250, 0.0
    %v4273 = vadd.f32 %v4271, %v4272
    %v4274 = vsel %vm1695, %v4251, 0.0
    %v4275 = vadd.f32 %v4273, %v4274
    %v4276 = vsel %vm1695, %v4252, 0.0
    %v4277 = vadd.f32 %v4275, %v4276
    %v4278 = vsel %vm1695, %v4253, 0.0
    %v4279 = vadd.f32 %v4277, %v4278
    %v4280 = vsel %vm1695, %v4254, 0.0
    %v4281 = vadd.f32 %v4279, %v4280
    %v4282 = vsel %vm1695, %v4255, 0.0
    %v4283 = vadd.f32 %v4281, %v4282
    %v4284 = vsel %vm1695, %v4256, 0.0
    %v4285 = vadd.f32 %v4283, %v4284
    %v4286 = vsel %vm1695, %v4257, 0.0
    %v4287 = vadd.f32 %v4285, %v4286
    %v4288 = vsel %vm1695, %v4258, 0.0
    %v4289 = vadd.f32 %v4287, %v4288
    %v4290 = vrot.slane %v4289, 4
    %v4291 = vadd.f32 %v4289, %v4290
    %v4292 = vrot.slane %v4291, 2
    %v4293 = vadd.f32 %v4291, %v4292
    %v4294 = vrot.slane %v4293, 1
    %v4295 = vadd.f32 %v4293, %v4294
    %v4296 = vadd.f32 %v3459, %v4242
    %v4297 = vadd.f32 %v3460, %v4295
    %vm4298 = vcmask 24576
    %4299 = vst.msk [vmem:[#allocation10] sm:$0x1] %vm4298, %v4296
    %4300 = vst.msk [vmem:[#allocation10 + $0x1] sm:$0x1] %vm4298, %v4297
    // Predicated region
    $region26: #{unet_block_innermost_forward.2} parent=1 // pred_check
      _
    $region27: #{unet_block_innermost_forward.2} parent=1 // pred_check_branch
      %4302 = sbr.rel (0) target = $region29
    $region28: #{unet_block_innermost_forward.2} parent=1 // pred_region
      %s4304 = ssub.s32 1024, 1024
      %4305 = vsyncadd [#allocation5], %s4304
      %s4306 = sshll.u32 [#allocation9], 4
      %s4307 = int_to_ptr.vmem [resolvable:$true] %s4306
      %4312 = dma.vmem_to_hbm [thread:$0]  %s4307, 1024, %s3, [#allocation5], 64, 64, 4
    $region29: #{unet_block_innermost_forward.2} parent=1 // pred_fallthru
      _
    // Predicated region
    $region30: #{unet_block_innermost_forward.2} parent=1 // pred_check
      _
    $region31: #{unet_block_innermost_forward.2} parent=1 // pred_check_branch
      %4314 = sbr.rel (0) target = $region33
    $region32: #{unet_block_innermost_forward.2} parent=1 // pred_region
      %s4316 = ssub.s32 32, 32
      %4317 = vsyncadd [#allocation11], %s4316
      %s4319 = sshll.u32 [#allocation10], 4
      %s4320 = int_to_ptr.vmem [resolvable:$true] %s4319
      %4322 = dma.vmem_to_hbm [thread:$0]  %s4320, 32, %s4, [#allocation11]
    $region33: #{unet_block_innermost_forward.2} parent=1 // pred_fallthru
      _
    // Predicated region
    $region34: #{unet_block_innermost_forward.2} parent=1 // pred_check
      _
    $region35: #{unet_block_innermost_forward.2} parent=1 // pred_check_branch
      %4324 = sbr.rel (0) target = $region37
    $region36: #{unet_block_innermost_forward.2} parent=1 // pred_region
      %4325 = dma.done [#allocation5], 1024
    $region37: #{unet_block_innermost_forward.2} parent=1 // pred_fallthru
      _
    // Predicated region
    $region38: #{unet_block_innermost_forward.2} parent=1 // pred_check
      _
    $region39: #{unet_block_innermost_forward.2} parent=1 // pred_check_branch
      %4327 = sbr.rel (0) target = $region41
    $region40: #{unet_block_innermost_forward.2} parent=1 // pred_region
      %4328 = dma.done [#allocation11], 32
    $region41: #{unet_block_innermost_forward.2} parent=1 // pred_fallthru
      _
    %4329 = vsyncpa [#allocation4], 1
    %4330 = vsyncpa [#allocation7], 1
    %4331 = vsyncpa [#allocation5], 1
    %4332 = vsyncpa [#allocation11], 1

</llo_original>
